<compile_context>
chip_gen: v5e
topology: v5e:2x2
jax: 0.10.0
libtpu: 0.0.40
codegen_flags: <defaults>
</compile_context>

<pallas_src>
import math

import numpy as np
import jax
import jax.numpy as jnp
from jax import lax
from jax.experimental import pallas as pl
from jax.experimental.pallas import tpu as pltpu

# ---- module hyper-parameters (defaults of Upscale_Conv_block) ----
IN_CHANNELS = 4
OUT_CHANNELS = 4
KERNEL_SIZE = 3          # 3x3 conv, padding='same', padding_mode='zeros'
UPSCALE = 2              # upscale_factor r
CH = 0                   # Ch crop (default)
CW = 0                   # Cw crop (default)


def _build_kernel_constants(ws, bs, wu, bu, wc, bc, r):
    """Fold shortcut conv, pixel-shuffle, final conv and all biases into matmul weights."""
    ws = np.asarray(ws, np.float32); bs = np.asarray(bs, np.float32)
    wu = np.asarray(wu, np.float32); bu = np.asarray(bu, np.float32)
    wc = np.asarray(wc, np.float32); bc = np.asarray(bc, np.float32)
    C4, Cin, KH, KW = wu.shape
    Cout = C4 // (r * r)

    # upscale conv as one im2col matmul: column = tap-major (t = dy*KW+dx), channel-minor
    wu_s = np.transpose(wu, (0, 2, 3, 1)).reshape(C4, KH * KW * Cin)

    # final 3x3 conv on the upscaled map, decomposed per output sub-grid (i, j):
    #   out[co, 2h+i, 2w+j] = sum_{dy,dx,cp} wc[co,cp,dy,dx] * relu(Y)[cp*r*r+p*r+q, h+da, w+db]
    #   with u0 = i+dy-1 -> p = u0 % r, da = u0 // r (same for columns).
    wy = np.zeros((KH * KW, r * r * Cout, C4), np.float32)   # indexed by tap td=(da+1)*3+(db+1)
    wx = np.zeros((r * r * Cout, KH * KW * Cin), np.float32)  # shortcut conv (shuffle folded)
    bf = np.zeros((r * r * Cout,), np.float32)                # fused bias
    for i in range(r):
        for j in range(r):
            sub = i * r + j
            for co in range(Cout):
                row = sub * Cout + co
                csrc = co * r * r + i * r + j                 # pixel-shuffle channel pick
                bf[row] = bc[co] + bs[csrc]
                for dy in range(KH):
                    for dx in range(KW):
                        t = dy * KW + dx
                        wx[row, t * Cin:(t + 1) * Cin] = ws[csrc, :, dy, dx]
                for dy in range(KH):
                    u0 = i + dy - 1
                    p, da = u0 % r, u0 // r
                    for dx in range(KW):
                        v0 = j + dx - 1
                        q, db = v0 % r, v0 // r
                        td = (da + 1) * 3 + (db + 1)
                        for cp in range(Cout):
                            wy[td, row, cp * r * r + p * r + q] += wc[co, cp, dy, dx]
    # merge the 9 per-tap matmuls into ONE K = 9*C4 matmul (tap-major K, channel-minor)
    wy2d = np.transpose(wy, (1, 0, 2)).reshape(r * r * Cout, KH * KW * C4)
    return wu_s, wy2d, wx, bf.reshape(-1, 1), bu.reshape(-1, 1)


def _pick_lane_batch(N, Lpad, max_lane_block):
    """Largest divisor B of N that keeps >=2 grid steps (v7x megacore) and a bounded
    lane width (bounded per-step VMEM)."""
    best = 1
    for b in range(1, N + 1):
        if N % b == 0 and b * Lpad <= max_lane_block and (N // b) >= 2:
            best = b
    return best


def upscale_conv_block_pallas(X, params, *, r=UPSCALE, Ch=CH, Cw=CW, max_lane_block=4096):
    ws, bs, wu, bu, wc, bc = params
    N, Cin, H, W = X.shape
    C4 = wu.shape[0]
    Cout = C4 // (r * r)
    KH, KW = wu.shape[2], wu.shape[3]
    assert KH == 3 and KW == 3 and r == 2, "fold assumes kernel_size=3, upscale_factor=2"
    NT = KH * KW
    RC = r * r * Cout
    Hp, Wp = H + 2, W + 2
    Lp = Hp * Wp
    Lpad = ((Lp + 127) // 128) * 128                # lane-dense per-image spatial length
    G = ((Wp + 1 + 127) // 128) * 128               # guard >= max tap shift, keeps the read
                                                    # window 128-aligned
    B = _pick_lane_batch(N, Lpad, max_lane_block)   # images folded onto lanes per grid step
    NG = N // B
    BL = B * Lpad

    # ---- wrapper-side (XLA) prep: 9-tap im2col on the padded low-res grid, lane-batched ----
    # TODO(synk): at production H*W build this im2col in-kernel (shifted stores of the padded
    # (Cin, BL) input, same trick as the y-tap stack below) to cut the 9x input HBM
    # replication; at 16x16 per image it is noise.
    xpe = jnp.pad(X, ((0, 0), (0, 0), (2, 2), (2, 2)))
    slabs = [xpe[:, :, dy:dy + Hp, dx:dx + Wp].reshape(N, Cin, Lp)
             for dy in range(KH) for dx in range(KW)]
    xs = jnp.concatenate(slabs, axis=1)                              # (N, 9*Cin, Lp)
    xs = jnp.pad(xs, ((0, 0), (0, 0), (0, Lpad - Lp)))               # zero lane padding
    xs = xs.reshape(NG, B, NT * Cin, Lpad).transpose(0, 2, 1, 3).reshape(NG, NT * Cin, BL)

    # interior mask of the padded grid (ring + lane padding = 0), tiled over the B images
    m1 = np.zeros((Hp, Wp), np.float32)
    m1[1:-1, 1:-1] = 1.0
    m1 = np.pad(m1.reshape(-1), (0, Lpad - Lp))
    mask = jnp.asarray(np.tile(m1, B)[None, :])                      # (1, BL)

    wu_s, wy2d, wx, bf, bu_c = map(jnp.asarray,
                                   _build_kernel_constants(ws, bs, wu, bu, wc, bc, r))

    def kernel(xs_ref, wu_ref, bu_ref, mask_ref, wy_ref, wx_ref, bf_ref,
               o_ref, ystk_ref):
        x_taps = xs_ref[0]                                           # (9*Cin, BL) raw X taps
        # shortcut conv (pixel shuffle + both biases folded into wx / bf)
        acc = jnp.dot(wx_ref[...], x_taps, preferred_element_type=jnp.float32) + bf_ref[...]
        # main upscale conv on relu(X) taps (+bias, relu); zero the padded ring / lane padding
        y = jnp.dot(wu_ref[...], jnp.maximum(x_taps, 0.0),
                    preferred_element_type=jnp.float32) + bu_ref[...]
        y = jnp.maximum(y, 0.0) * mask_ref[...]                      # (C4, BL)
        # stack the 9 shifted low-res taps of y (tap-major sublane rows) via shifted stores.
        # Read-window lanes not covered by a store only ever feed cropped ring / lane-padding
        # output columns, so the scratch is never zeroed (per-step, megacore-safe).
        for td in range(NT):
            s = (td // 3 - 1) * Wp + (td % 3 - 1)
            ystk_ref[td * C4:(td + 1) * C4, G - s:G - s + BL] = y
        # final 3x3 conv on the pixel-shuffled map as ONE K = 9*C4 matmul
        acc = acc + jnp.dot(wy_ref[...], ystk_ref[:, G:G + BL],
                            preferred_element_type=jnp.float32)
        o_ref[0] = acc                                               # (RC, BL) lane-dense store

    out = pl.pallas_call(
        kernel,
        out_shape=jax.ShapeDtypeStruct((NG, RC, BL), jnp.float32),
        grid_spec=pltpu.PrefetchScalarGridSpec(
            num_scalar_prefetch=0,
            grid=(NG,),
            in_specs=[
                pl.BlockSpec((1, NT * Cin, BL), lambda n: (n, 0, 0)),   # im2col taps (B images)
                pl.BlockSpec((C4, NT * Cin), lambda n: (0, 0)),         # wu_s
                pl.BlockSpec((C4, 1), lambda n: (0, 0)),                # bu
                pl.BlockSpec((1, BL), lambda n: (0, 0)),                # interior mask
                pl.BlockSpec((RC, NT * C4), lambda n: (0, 0)),          # wy (merged K=144)
                pl.BlockSpec((RC, NT * Cin), lambda n: (0, 0)),         # wx (shortcut)
                pl.BlockSpec((RC, 1), lambda n: (0, 0)),                # fused bias
            ],
            out_specs=pl.BlockSpec((1, RC, BL), lambda n: (n, 0, 0)),
            scratch_shapes=[pltpu.VMEM((NT * C4, BL + 2 * G), jnp.float32)],
        ),
        compiler_params=pltpu.CompilerParams(
            dimension_semantics=("parallel",)),
    )(xs, wu_s, bu_c, mask, wy2d, wx, bf)

    # un-fold: split lane-batched images, drop lane padding, crop ring, interleave sub-grids
    o = out.reshape(NG, RC, B, Lpad).transpose(0, 2, 1, 3).reshape(N, RC, Lpad)[:, :, :Lp]
    o = o.reshape(N, r, r, Cout, Hp, Wp)[:, :, :, :, 1:-1, 1:-1]
    o = o.transpose(0, 3, 4, 1, 5, 2).reshape(N, Cout, H * r, W * r)
    # TODO(synk): the H2>H / W2>W center-crop branch of the torch forward is only
    # reachable with non-'same' padding and is not implemented here.
    return o[:, :, Ch:, Cw:]


# ----------------------------- pure-JAX reference ------------------------------
def _conv2d_same(x, w, b):
    out = lax.conv_general_dilated(
        x, w, window_strides=(1, 1), padding="SAME",
        dimension_numbers=("NCHW", "OIHW", "NCHW"),
        precision=lax.Precision.HIGHEST)
    return out + b[None, :, None, None]


def _pixel_shuffle(x, r):
    N, C, H, W = x.shape
    c = C // (r * r)
    x = x.reshape(N, c, r, r, H, W)
    return x.transpose(0, 1, 4, 2, 5, 3).reshape(N, c, H * r, W * r)


def reference_forward(X, params, *, r=UPSCALE, Ch=CH, Cw=CW):
    ws, bs, wu, bu, wc, bc = params
    x_short = _pixel_shuffle(_conv2d_same(X, ws, bs), r)
    a = jax.nn.relu(X)
    a = _pixel_shuffle(_conv2d_same(a, wu, bu), r)
    a = jax.nn.relu(a)
    a = _conv2d_same(a, wc, bc)
    a = a + x_short
    return a[:, :, Ch:, Cw:]


def init_params(key, in_ch=IN_CHANNELS, out_ch=OUT_CHANNELS, k=KERNEL_SIZE, r=UPSCALE):
    """PyTorch-default-like uniform init; conv weights in OIHW, biases 1-D."""
    ks = jax.random.split(key, 6)
    c4 = out_ch * r * r

    def conv_w(kk, o, i):
        bound = 1.0 / math.sqrt(i * k * k)
        return jax.random.uniform(kk, (o, i, k, k), jnp.float32, -bound, bound)

    def conv_b(kk, o, i):
        bound = 1.0 / math.sqrt(i * k * k)
        return jax.random.uniform(kk, (o,), jnp.float32, -bound, bound)

    ws = conv_w(ks[0], c4, in_ch); bs = conv_b(ks[1], c4, in_ch)
    wu = conv_w(ks[2], c4, in_ch); bu = conv_b(ks[3], c4, in_ch)
    wc = conv_w(ks[4], out_ch, out_ch); bc = conv_b(ks[5], out_ch, out_ch)
    return (ws, bs, wu, bu, wc, bc)


if __name__ == "__main__":
    key = jax.random.PRNGKey(0)
    kp, kx = jax.random.split(key)
    params = init_params(kp)

    # small batch, but big enough to exercise the lane-batching (B=4 images/step, grid=2)
    N, H, W = 8, 16, 16
    X = jax.random.normal(kx, (N, IN_CHANNELS, H, W), jnp.float32)

    out = jax.block_until_ready(upscale_conv_block_pallas(X, params))
    ref = jax.block_until_ready(reference_forward(X, params))

    assert out.shape == (N, OUT_CHANNELS, H * UPSCALE, W * UPSCALE), out.shape
    err = float(jnp.max(jnp.abs(out - ref)))
    assert err < 2e-4, f"max abs err {err}"
    print("KERNEL_OK")
</pallas_src>

<mosaic_0001>
module attributes {stable_mosaic.version = 11 : i64} {
  func.func @kernel(%arg0: i32, %arg1: memref<1x36x1536xf32, #tpu.memory_space<vmem>>, %arg2: memref<16x36xf32, #tpu.memory_space<vmem>>, %arg3: memref<16x1xf32, #tpu.memory_space<vmem>>, %arg4: memref<1x1536xf32, #tpu.memory_space<vmem>>, %arg5: memref<16x144xf32, #tpu.memory_space<vmem>>, %arg6: memref<16x36xf32, #tpu.memory_space<vmem>>, %arg7: memref<16x1xf32, #tpu.memory_space<vmem>>, %arg8: memref<1x16x1536xf32, #tpu.memory_space<vmem>>, %arg9: memref<144x1792xf32, #tpu.memory_space<vmem>>) attributes {dimension_semantics = [#tpu.dimension_semantics<parallel>], iteration_bounds = array<i64: 2>, scalar_prefetch = 0 : i64, scratch_operands = 1 : i64, tpu.core_type = #tpu.core_type<tc>, window_params = [{transform_indices = @transform_0, window_bounds = array<i64: 1, 36, 1536>}, {pipeline_mode = #tpu.pipeline_mode<synchronous>, transform_indices = @transform_1, window_bounds = array<i64: 16, 36>}, {pipeline_mode = #tpu.pipeline_mode<synchronous>, transform_indices = @transform_2, window_bounds = array<i64: 16, 1>}, {pipeline_mode = #tpu.pipeline_mode<synchronous>, transform_indices = @transform_3, window_bounds = array<i64: 1, 1536>}, {pipeline_mode = #tpu.pipeline_mode<synchronous>, transform_indices = @transform_4, window_bounds = array<i64: 16, 144>}, {pipeline_mode = #tpu.pipeline_mode<synchronous>, transform_indices = @transform_5, window_bounds = array<i64: 16, 36>}, {pipeline_mode = #tpu.pipeline_mode<synchronous>, transform_indices = @transform_6, window_bounds = array<i64: 16, 1>}, {transform_indices = @transform_7, window_bounds = array<i64: 1, 16, 1536>}]} {
    %c0 = arith.constant 0 : index
    %c0_0 = arith.constant 0 : index
    %c0_1 = arith.constant 0 : index
    %0 = vector.load %arg1[%c0, %c0_0, %c0_1] : memref<1x36x1536xf32, #tpu.memory_space<vmem>>, vector<1x36x1536xf32>
    %1 = vector.shape_cast %0 : vector<1x36x1536xf32> to vector<36x1536xf32>
    %c0_2 = arith.constant 0 : index
    %c0_3 = arith.constant 0 : index
    %2 = vector.load %arg6[%c0_2, %c0_3] : memref<16x36xf32, #tpu.memory_space<vmem>>, vector<16x36xf32>
    %cst = arith.constant dense<0.000000e+00> : vector<16x1536xf32>
    %3 = tpu.matmul %2, %1, %cst {dimension_numbers = #tpu.dot_dimension_numbers<[1], [0], [0], [1], [0, 0, 1, 1], [], []>} : vector<16x36xf32>, vector<36x1536xf32>, vector<16x1536xf32> -> vector<16x1536xf32>
    %c0_4 = arith.constant 0 : index
    %c0_5 = arith.constant 0 : index
    %4 = vector.load %arg7[%c0_4, %c0_5] : memref<16x1xf32, #tpu.memory_space<vmem>>, vector<16x1xf32>
    %5 = vector.broadcast %4 : vector<16x1xf32> to vector<16x1536xf32>
    %6 = arith.addf %3, %5 : vector<16x1536xf32>
    %c0_6 = arith.constant 0 : index
    %c0_7 = arith.constant 0 : index
    %7 = vector.load %arg2[%c0_6, %c0_7] : memref<16x36xf32, #tpu.memory_space<vmem>>, vector<16x36xf32>
    %cst_8 = arith.constant 0.000000e+00 : f32
    %8 = vector.broadcast %cst_8 : f32 to vector<36x1536xf32>
    %9 = arith.maximumf %1, %8 : vector<36x1536xf32>
    %cst_9 = arith.constant dense<0.000000e+00> : vector<16x1536xf32>
    %10 = tpu.matmul %7, %9, %cst_9 {dimension_numbers = #tpu.dot_dimension_numbers<[1], [0], [0], [1], [0, 0, 1, 1], [], []>} : vector<16x36xf32>, vector<36x1536xf32>, vector<16x1536xf32> -> vector<16x1536xf32>
    %c0_10 = arith.constant 0 : index
    %c0_11 = arith.constant 0 : index
    %11 = vector.load %arg3[%c0_10, %c0_11] : memref<16x1xf32, #tpu.memory_space<vmem>>, vector<16x1xf32>
    %12 = vector.broadcast %11 : vector<16x1xf32> to vector<16x1536xf32>
    %13 = arith.addf %10, %12 : vector<16x1536xf32>
    %cst_12 = arith.constant 0.000000e+00 : f32
    %14 = vector.broadcast %cst_12 : f32 to vector<16x1536xf32>
    %15 = arith.maximumf %13, %14 : vector<16x1536xf32>
    %c0_13 = arith.constant 0 : index
    %c0_14 = arith.constant 0 : index
    %16 = vector.load %arg4[%c0_13, %c0_14] : memref<1x1536xf32, #tpu.memory_space<vmem>>, vector<1x1536xf32>
    %17 = vector.broadcast %16 : vector<1x1536xf32> to vector<16x1536xf32>
    %18 = arith.mulf %15, %17 : vector<16x1536xf32>
    %c0_15 = arith.constant 0 : index
    %c147 = arith.constant 147 : index
    %19 = vector.load %arg9[%c0_15, %c147] : memref<144x1792xf32, #tpu.memory_space<vmem>>, vector<16x1536xf32>
    tpu.vector_store %arg9[%c0_15, %c147], %18 {strides = array<i32>} : memref<144x1792xf32, #tpu.memory_space<vmem>>, vector<16x1536xf32>,
    %c16 = arith.constant 16 : index
    %c146 = arith.constant 146 : index
    %20 = vector.load %arg9[%c16, %c146] : memref<144x1792xf32, #tpu.memory_space<vmem>>, vector<16x1536xf32>
    tpu.vector_store %arg9[%c16, %c146], %18 {strides = array<i32>} : memref<144x1792xf32, #tpu.memory_space<vmem>>, vector<16x1536xf32>,
    %c32 = arith.constant 32 : index
    %c145 = arith.constant 145 : index
    %21 = vector.load %arg9[%c32, %c145] : memref<144x1792xf32, #tpu.memory_space<vmem>>, vector<16x1536xf32>
    tpu.vector_store %arg9[%c32, %c145], %18 {strides = array<i32>} : memref<144x1792xf32, #tpu.memory_space<vmem>>, vector<16x1536xf32>,
    %c48 = arith.constant 48 : index
    %c129 = arith.constant 129 : index
    %22 = vector.load %arg9[%c48, %c129] : memref<144x1792xf32, #tpu.memory_space<vmem>>, vector<16x1536xf32>
    tpu.vector_store %arg9[%c48, %c129], %18 {strides = array<i32>} : memref<144x1792xf32, #tpu.memory_space<vmem>>, vector<16x1536xf32>,
    %c64 = arith.constant 64 : index
    %c128 = arith.constant 128 : index
    %23 = vector.load %arg9[%c64, %c128] : memref<144x1792xf32, #tpu.memory_space<vmem>>, vector<16x1536xf32>
    tpu.vector_store %arg9[%c64, %c128], %18 {strides = array<i32>} : memref<144x1792xf32, #tpu.memory_space<vmem>>, vector<16x1536xf32>,
    %c80 = arith.constant 80 : index
    %c127 = arith.constant 127 : index
    %24 = vector.load %arg9[%c80, %c127] : memref<144x1792xf32, #tpu.memory_space<vmem>>, vector<16x1536xf32>
    tpu.vector_store %arg9[%c80, %c127], %18 {strides = array<i32>} : memref<144x1792xf32, #tpu.memory_space<vmem>>, vector<16x1536xf32>,
    %c96 = arith.constant 96 : index
    %c111 = arith.constant 111 : index
    %25 = vector.load %arg9[%c96, %c111] : memref<144x1792xf32, #tpu.memory_space<vmem>>, vector<16x1536xf32>
    tpu.vector_store %arg9[%c96, %c111], %18 {strides = array<i32>} : memref<144x1792xf32, #tpu.memory_space<vmem>>, vector<16x1536xf32>,
    %c112 = arith.constant 112 : index
    %c110 = arith.constant 110 : index
    %26 = vector.load %arg9[%c112, %c110] : memref<144x1792xf32, #tpu.memory_space<vmem>>, vector<16x1536xf32>
    tpu.vector_store %arg9[%c112, %c110], %18 {strides = array<i32>} : memref<144x1792xf32, #tpu.memory_space<vmem>>, vector<16x1536xf32>,
    %c128_16 = arith.constant 128 : index
    %c109 = arith.constant 109 : index
    %27 = vector.load %arg9[%c128_16, %c109] : memref<144x1792xf32, #tpu.memory_space<vmem>>, vector<16x1536xf32>
    tpu.vector_store %arg9[%c128_16, %c109], %18 {strides = array<i32>} : memref<144x1792xf32, #tpu.memory_space<vmem>>, vector<16x1536xf32>,
    %c0_17 = arith.constant 0 : index
    %c0_18 = arith.constant 0 : index
    %28 = vector.load %arg5[%c0_17, %c0_18] : memref<16x144xf32, #tpu.memory_space<vmem>>, vector<16x144xf32>
    %c0_19 = arith.constant 0 : index
    %c128_20 = arith.constant 128 : index
    %29 = vector.load %arg9[%c0_19, %c128_20] : memref<144x1792xf32, #tpu.memory_space<vmem>>, vector<144x1536xf32>
    %cst_21 = arith.constant dense<0.000000e+00> : vector<16x1536xf32>
    %30 = tpu.matmul %28, %29, %cst_21 {dimension_numbers = #tpu.dot_dimension_numbers<[1], [0], [0], [1], [0, 0, 1, 1], [], []>} : vector<16x144xf32>, vector<144x1536xf32>, vector<16x1536xf32> -> vector<16x1536xf32>
    %31 = arith.addf %6, %30 : vector<16x1536xf32>
    %c0_22 = arith.constant 0 : index
    %c0_23 = arith.constant 0 : index
    %c0_24 = arith.constant 0 : index
    %32 = vector.load %arg8[%c0_22, %c0_23, %c0_24] : memref<1x16x1536xf32, #tpu.memory_space<vmem>>, vector<1x16x1536xf32>
    %33 = vector.shape_cast %32 : vector<1x16x1536xf32> to vector<16x1536xf32>
    %34 = vector.shape_cast %31 : vector<16x1536xf32> to vector<1x16x1536xf32>
    tpu.vector_store %arg8[%c0_22, %c0_23, %c0_24], %34 {strides = array<i32>} : memref<1x16x1536xf32, #tpu.memory_space<vmem>>, vector<1x16x1536xf32>,
    return
  }
  func.func @transform_0(%arg0: i32) -> (i32, i32, i32) {
    %c0_i32 = arith.constant 0 : i32
    %c0_i32_0 = arith.constant 0 : i32
    %c0_i32_1 = arith.constant 0 : i32
    return %arg0, %c0_i32, %c0_i32_0 : i32, i32, i32
  }
  func.func @transform_1(%arg0: i32) -> (i32, i32) {
    %c0_i32 = arith.constant 0 : i32
    %c0_i32_0 = arith.constant 0 : i32
    %c0_i32_1 = arith.constant 0 : i32
    return %c0_i32, %c0_i32_0 : i32, i32
  }
  func.func @transform_2(%arg0: i32) -> (i32, i32) {
    %c0_i32 = arith.constant 0 : i32
    %c0_i32_0 = arith.constant 0 : i32
    %c0_i32_1 = arith.constant 0 : i32
    return %c0_i32, %c0_i32_0 : i32, i32
  }
  func.func @transform_3(%arg0: i32) -> (i32, i32) {
    %c0_i32 = arith.constant 0 : i32
    %c0_i32_0 = arith.constant 0 : i32
    %c0_i32_1 = arith.constant 0 : i32
    return %c0_i32, %c0_i32_0 : i32, i32
  }
  func.func @transform_4(%arg0: i32) -> (i32, i32) {
    %c0_i32 = arith.constant 0 : i32
    %c0_i32_0 = arith.constant 0 : i32
    %c0_i32_1 = arith.constant 0 : i32
    return %c0_i32, %c0_i32_0 : i32, i32
  }
  func.func @transform_5(%arg0: i32) -> (i32, i32) {
    %c0_i32 = arith.constant 0 : i32
    %c0_i32_0 = arith.constant 0 : i32
    %c0_i32_1 = arith.constant 0 : i32
    return %c0_i32, %c0_i32_0 : i32, i32
  }
  func.func @transform_6(%arg0: i32) -> (i32, i32) {
    %c0_i32 = arith.constant 0 : i32
    %c0_i32_0 = arith.constant 0 : i32
    %c0_i32_1 = arith.constant 0 : i32
    return %c0_i32, %c0_i32_0 : i32, i32
  }
  func.func @transform_7(%arg0: i32) -> (i32, i32, i32) {
    %c0_i32 = arith.constant 0 : i32
    %c0_i32_0 = arith.constant 0 : i32
    %c0_i32_1 = arith.constant 0 : i32
    return %arg0, %c0_i32, %c0_i32_0 : i32, i32, i32
  }
}

</mosaic_0001>

<llo_original>
// kernel: tpu_custom_call.1
$region0: #{tpu_custom_call.1}
  #allocation0 [shape = 'u32[]', space=smem, size = 0x4, offset = 0x4, fixed_abs, tag = 'smem constant byte address 0x4 - core index']
  #allocation1 [shape = 'u32[72,128]{1,0:T(1,128)}', space=vmem, size = 0x9000, scoped, tag = 'internal scratch']
  #allocation2 [shape = 'f32[144,1792]{1,0:T(8,128)}', space=vmem, size = 0xfc000, scoped, tag = 'scratch operand']
  %s0 = inlined_call_operand.vmem [shape: f32[2,36,1536], index: 0, kind: input, shape index: {}]
  %s1 = inlined_call_operand.vmem [shape: f32[16,36], index: 1, kind: input, shape index: {}]
  %s2 = inlined_call_operand.vmem [shape: f32[16,1], index: 2, kind: input, shape index: {}]
  %s3 = inlined_call_operand.vmem [shape: f32[1,1536], index: 3, kind: input, shape index: {}]
  %s4 = inlined_call_operand.vmem [shape: f32[16,144], index: 4, kind: input, shape index: {}]
  %s5 = inlined_call_operand.vmem [shape: f32[16,36], index: 5, kind: input, shape index: {}]
  %s6 = inlined_call_operand.vmem [shape: f32[16,1], index: 6, kind: input, shape index: {}]
  %s7 = inlined_call_operand.hbm [shape: f32[2,16,1536], index: 7, kind: output, shape index: {}]
  %s8 = sld [smem:[#allocation0]]
  $region61: #{tpu_custom_call.1} parent=0
    _
  %s10 = ssub.s32 1, %s8
  %s11 = scalar_select 0, %s10, %s8
  $region1: #{tpu_custom_call.1} parent=0
    #allocation3 [shape = 'u8[196608]{0}', space=vmem, size = 0x30000, scoped, tag = 'output window, operand 0']
    #allocation4 [shape = 's32[2]{0}', space=sflag, size = 0x8, scoped, tag = 'scoped memory for tpu_custom_call.1']
    %12 = vsyncpa [#allocation4], 0
    %s13 = scalar_lea.sflag [#allocation4], 1
    %14 = vsyncpa %s13, 0
    loop: start=0, step=1, limit=4
    $region2: #{tpu_custom_call.1} parent=1 // loop_pre_header
      _
    $region3: #{tpu_custom_call.1} parent=1 // loop_header
      %s16 = sphi 0, %s20
      %p17 = scmp.ge.s32.totalorder %s16, 4
      %s26 = sphi 0, %s28
      %s29 = sphi 0, %s26
      %s30 = sphi 0, %s29
      %s46 = sphi 0, %s30
      %s50 = sphi 0, %s50
      %s52 = sphi 0, %s50
      %s53 = sphi 0, %s52
      %s67 = sphi 0, %s53
      %s71 = sphi 0, %s71
      %s73 = sphi 0, %s71
      %s74 = sphi 0, %s73
      %s88 = sphi 0, %s74
      %s92 = sphi 0, %s92
      %s94 = sphi 0, %s92
      %s95 = sphi 0, %s94
      %s109 = sphi 0, %s95
      %s113 = sphi 0, %s113
      %s115 = sphi 0, %s113
      %s116 = sphi 0, %s115
      %s130 = sphi 0, %s116
      %s134 = sphi 0, %s134
      %s136 = sphi 0, %s134
      %s137 = sphi 0, %s136
      %s151 = sphi 0, %s137
      %s155 = sphi 0, %s155
      %s157 = sphi 0, %s155
      %s158 = sphi 0, %s157
      %s172 = sphi 0, %s158
      %s178 = sphi 0, %s180
      %s181 = sphi 0, %s178
      %s182 = sphi 0, %s181
      %s198 = sphi 0, %s182
    $region4: #{tpu_custom_call.1} parent=1 // loop_header_branch
      %19 = sbr.rel (%p17) target = $region8
    $region5: #{tpu_custom_call.1} parent=1 // loop_body
      %s21 = ssub.s32 %s16, 1
      %s22 = ssub.s32 %s16, 2
      %s23 = sadd.s32 %s16, 1
      %s24 = ssub.s32 %s16, %s23
      %p25 = scmp.eq.s32.totalorder %s24, 0
      %s27 = sadd.s32 %s26, 1
      %s28 = scalar_select %p25, %s26, %s27
      %p31 = pneg %p25
      %p32 = scmp.eq.s32.totalorder %s16, 1
      %p33 = por %p31, %p32
      %p34 = scmp.ne.s32.totalorder %s26, %s29
      %p35 = scmp.eq.s32.totalorder %s16, 0
      %p36 = por %p34, %p35
      %p37 = scmp.ne.s32.totalorder %s26, %s29
      %p38 = scmp.eq.s32.totalorder %s21, 1
      %p39 = por %p37, %p38
      %p40 = scmp.ne.s32.totalorder %s29, %s30
      %p41 = scmp.eq.s32.totalorder %s21, 0
      %p42 = por %p40, %p41
      %p43 = scmp.ne.s32.totalorder %s29, %s30
      %p44 = scmp.eq.s32.totalorder %s22, 1
      %p45 = por %p43, %p44
      %p47 = scmp.ne.s32.totalorder %s30, %s46
      %p48 = scmp.eq.s32.totalorder %s22, 0
      %p49 = por %p47, %p48
      %s51 = sadd.s32 %s50, 1
      %p54 = scmp.eq.s32.totalorder %s16, 1
      %p55 = scmp.ne.s32.totalorder %s50, %s52
      %p56 = scmp.eq.s32.totalorder %s16, 0
      %p57 = por %p55, %p56
      %p58 = scmp.ne.s32.totalorder %s50, %s52
      %p59 = scmp.eq.s32.totalorder %s21, 1
      %p60 = por %p58, %p59
      %p61 = scmp.ne.s32.totalorder %s52, %s53
      %p62 = scmp.eq.s32.totalorder %s21, 0
      %p63 = por %p61, %p62
      %p64 = scmp.ne.s32.totalorder %s52, %s53
      %p65 = scmp.eq.s32.totalorder %s22, 1
      %p66 = por %p64, %p65
      %p68 = scmp.ne.s32.totalorder %s53, %s67
      %p69 = scmp.eq.s32.totalorder %s22, 0
      %p70 = por %p68, %p69
      %s72 = sadd.s32 %s71, 1
      %p75 = scmp.eq.s32.totalorder %s16, 1
      %p76 = scmp.ne.s32.totalorder %s71, %s73
      %p77 = scmp.eq.s32.totalorder %s16, 0
      %p78 = por %p76, %p77
      %p79 = scmp.ne.s32.totalorder %s71, %s73
      %p80 = scmp.eq.s32.totalorder %s21, 1
      %p81 = por %p79, %p80
      %p82 = scmp.ne.s32.totalorder %s73, %s74
      %p83 = scmp.eq.s32.totalorder %s21, 0
      %p84 = por %p82, %p83
      %p85 = scmp.ne.s32.totalorder %s73, %s74
      %p86 = scmp.eq.s32.totalorder %s22, 1
      %p87 = por %p85, %p86
      %p89 = scmp.ne.s32.totalorder %s74, %s88
      %p90 = scmp.eq.s32.totalorder %s22, 0
      %p91 = por %p89, %p90
      %s93 = sadd.s32 %s92, 1
      %p96 = scmp.eq.s32.totalorder %s16, 1
      %p97 = scmp.ne.s32.totalorder %s92, %s94
      %p98 = scmp.eq.s32.totalorder %s16, 0
      %p99 = por %p97, %p98
      %p100 = scmp.ne.s32.totalorder %s92, %s94
      %p101 = scmp.eq.s32.totalorder %s21, 1
      %p102 = por %p100, %p101
      %p103 = scmp.ne.s32.totalorder %s94, %s95
      %p104 = scmp.eq.s32.totalorder %s21, 0
      %p105 = por %p103, %p104
      %p106 = scmp.ne.s32.totalorder %s94, %s95
      %p107 = scmp.eq.s32.totalorder %s22, 1
      %p108 = por %p106, %p107
      %p110 = scmp.ne.s32.totalorder %s95, %s109
      %p111 = scmp.eq.s32.totalorder %s22, 0
      %p112 = por %p110, %p111
      %s114 = sadd.s32 %s113, 1
      %p117 = scmp.eq.s32.totalorder %s16, 1
      %p118 = scmp.ne.s32.totalorder %s113, %s115
      %p119 = scmp.eq.s32.totalorder %s16, 0
      %p120 = por %p118, %p119
      %p121 = scmp.ne.s32.totalorder %s113, %s115
      %p122 = scmp.eq.s32.totalorder %s21, 1
      %p123 = por %p121, %p122
      %p124 = scmp.ne.s32.totalorder %s115, %s116
      %p125 = scmp.eq.s32.totalorder %s21, 0
      %p126 = por %p124, %p125
      %p127 = scmp.ne.s32.totalorder %s115, %s116
      %p128 = scmp.eq.s32.totalorder %s22, 1
      %p129 = por %p127, %p128
      %p131 = scmp.ne.s32.totalorder %s116, %s130
      %p132 = scmp.eq.s32.totalorder %s22, 0
      %p133 = por %p131, %p132
      %s135 = sadd.s32 %s134, 1
      %p138 = scmp.eq.s32.totalorder %s16, 1
      %p139 = scmp.ne.s32.totalorder %s134, %s136
      %p140 = scmp.eq.s32.totalorder %s16, 0
      %p141 = por %p139, %p140
      %p142 = scmp.ne.s32.totalorder %s134, %s136
      %p143 = scmp.eq.s32.totalorder %s21, 1
      %p144 = por %p142, %p143
      %p145 = scmp.ne.s32.totalorder %s136, %s137
      %p146 = scmp.eq.s32.totalorder %s21, 0
      %p147 = por %p145, %p146
      %p148 = scmp.ne.s32.totalorder %s136, %s137
      %p149 = scmp.eq.s32.totalorder %s22, 1
      %p150 = por %p148, %p149
      %p152 = scmp.ne.s32.totalorder %s137, %s151
      %p153 = scmp.eq.s32.totalorder %s22, 0
      %p154 = por %p152, %p153
      %s156 = sadd.s32 %s155, 1
      %p159 = scmp.eq.s32.totalorder %s16, 1
      %p160 = scmp.ne.s32.totalorder %s155, %s157
      %p161 = scmp.eq.s32.totalorder %s16, 0
      %p162 = por %p160, %p161
      %p163 = scmp.ne.s32.totalorder %s155, %s157
      %p164 = scmp.eq.s32.totalorder %s21, 1
      %p165 = por %p163, %p164
      %p166 = scmp.ne.s32.totalorder %s157, %s158
      %p167 = scmp.eq.s32.totalorder %s21, 0
      %p168 = por %p166, %p167
      %p169 = scmp.ne.s32.totalorder %s157, %s158
      %p170 = scmp.eq.s32.totalorder %s22, 1
      %p171 = por %p169, %p170
      %p173 = scmp.ne.s32.totalorder %s158, %s172
      %p174 = scmp.eq.s32.totalorder %s22, 0
      %p175 = por %p173, %p174
      %s176 = ssub.s32 %s16, %s23
      %p177 = scmp.eq.s32.totalorder %s176, 0
      %s179 = sadd.s32 %s178, 1
      %s180 = scalar_select %p177, %s178, %s179
      %p183 = pneg %p177
      %p184 = scmp.eq.s32.totalorder %s16, 1
      %p185 = por %p183, %p184
      %p186 = scmp.ne.s32.totalorder %s178, %s181
      %p187 = scmp.eq.s32.totalorder %s16, 0
      %p188 = por %p186, %p187
      %p189 = scmp.ne.s32.totalorder %s178, %s181
      %p190 = scmp.eq.s32.totalorder %s21, 1
      %p191 = por %p189, %p190
      %p192 = scmp.ne.s32.totalorder %s181, %s182
      %p193 = scmp.eq.s32.totalorder %s21, 0
      %p194 = por %p192, %p193
      %p195 = scmp.ne.s32.totalorder %s181, %s182
      %p196 = scmp.eq.s32.totalorder %s22, 1
      %p197 = por %p195, %p196
      %p199 = scmp.ne.s32.totalorder %s182, %s198
      %p200 = scmp.eq.s32.totalorder %s22, 0
      %p201 = por %p199, %p200
      %p202 = scmp.le.s32.totalorder 1, %s16
      %p203 = scmp.lt.s32.totalorder %s16, 3
      %p204 = pnand %p202, %p203
      %p205 = pneg %p204
      // Predicated region
      $region9: #{tpu_custom_call.1} parent=5 // pred_check
        _
      $region10: #{tpu_custom_call.1} parent=5 // pred_check_branch
        %207 = sbr.rel (%p204) target = $region12
      $region11: #{tpu_custom_call.1} parent=5 // pred_region
        %s208 = ssub.s32 %s16, 1
        // Predicated region
        $region13: #{tpu_custom_call.1} parent=11 // pred_check
          %p209 = pneg %p63
        $region14: #{tpu_custom_call.1} parent=11 // pred_check_branch
          %211 = sbr.rel (%p209) target = $region16
        $region15: #{tpu_custom_call.1} parent=11 // pred_region
          _
        $region16: #{tpu_custom_call.1} parent=11 // pred_fallthru
          _
        // Predicated region
        $region17: #{tpu_custom_call.1} parent=11 // pred_check
          %p212 = pneg %p84
        $region18: #{tpu_custom_call.1} parent=11 // pred_check_branch
          %214 = sbr.rel (%p212) target = $region20
        $region19: #{tpu_custom_call.1} parent=11 // pred_region
          _
        $region20: #{tpu_custom_call.1} parent=11 // pred_fallthru
          _
        // Predicated region
        $region21: #{tpu_custom_call.1} parent=11 // pred_check
          %p215 = pneg %p105
        $region22: #{tpu_custom_call.1} parent=11 // pred_check_branch
          %217 = sbr.rel (%p215) target = $region24
        $region23: #{tpu_custom_call.1} parent=11 // pred_region
          _
        $region24: #{tpu_custom_call.1} parent=11 // pred_fallthru
          _
        // Predicated region
        $region25: #{tpu_custom_call.1} parent=11 // pred_check
          %p218 = pneg %p126
        $region26: #{tpu_custom_call.1} parent=11 // pred_check_branch
          %220 = sbr.rel (%p218) target = $region28
        $region27: #{tpu_custom_call.1} parent=11 // pred_region
          _
        $region28: #{tpu_custom_call.1} parent=11 // pred_fallthru
          _
        // Predicated region
        $region29: #{tpu_custom_call.1} parent=11 // pred_check
          %p221 = pneg %p147
        $region30: #{tpu_custom_call.1} parent=11 // pred_check_branch
          %223 = sbr.rel (%p221) target = $region32
        $region31: #{tpu_custom_call.1} parent=11 // pred_region
          _
        $region32: #{tpu_custom_call.1} parent=11 // pred_fallthru
          _
        // Predicated region
        $region33: #{tpu_custom_call.1} parent=11 // pred_check
          %p224 = pneg %p168
        $region34: #{tpu_custom_call.1} parent=11 // pred_check_branch
          %226 = sbr.rel (%p224) target = $region36
        $region35: #{tpu_custom_call.1} parent=11 // pred_region
          _
        $region36: #{tpu_custom_call.1} parent=11 // pred_fallthru
          _
      $region12: #{tpu_custom_call.1} parent=5 // pred_fallthru
        _
      %p227 = scmp.lt.s32.totalorder %s16, 2
      // Predicated region
      $region37: #{tpu_custom_call.1} parent=5 // pred_check
        %p228 = pneg %p227
      $region38: #{tpu_custom_call.1} parent=5 // pred_check_branch
        %230 = sbr.rel (%p228) target = $region40
      $region39: #{tpu_custom_call.1} parent=5 // pred_region
        // Predicated region
        $region41: #{tpu_custom_call.1} parent=39 // pred_check
          %p231 = pneg %p36
        $region42: #{tpu_custom_call.1} parent=39 // pred_check_branch
          %233 = sbr.rel (%p231) target = $region44
        $region43: #{tpu_custom_call.1} parent=39 // pred_region
          %p234 = scmp.lt.s32.totalorder %s16, 1
          %s235 = scalar_select %p234, %s16, 1
          %s236 = smul.addr %s235, 60
          %s237 = smul.addr %s236, 8
          %s238 = scalar_lea.vmem %s0, %s237
        $region44: #{tpu_custom_call.1} parent=39 // pred_fallthru
          _
      $region40: #{tpu_custom_call.1} parent=5 // pred_fallthru
        _
      %p239 = scmp.le.s32.totalorder 1, %s16
      %p240 = scmp.lt.s32.totalorder %s16, 3
      %p241 = pnand %p239, %p240
      %p242 = pneg %p241
      // Predicated region
      $region45: #{tpu_custom_call.1} parent=5 // pred_check
        _
      $region46: #{tpu_custom_call.1} parent=5 // pred_check_branch
        %244 = sbr.rel (%p241) target = $region48
      $region47: #{tpu_custom_call.1} parent=5 // pred_region
        %s245 = ssub.s32 %s16, 1
        %p246 = scmp.lt.s32.totalorder %s21, 1
        %s247 = scalar_select %p246, %s21, 1
        %s248 = smul.addr %s247, 60
        %s249 = smul.addr %s248, 8
        %s250 = scalar_lea.vmem %s0, %s249
        %p251 = pneg %p42
        %p252 = pneg %p39
        %p253 = pneg %p63
        %p254 = pneg %p60
        %p255 = pneg %p84
        %p256 = pneg %p81
        %p257 = pneg %p105
        %p258 = pneg %p102
        %p259 = pneg %p126
        %p260 = pneg %p123
        %p261 = pneg %p147
        %p262 = pneg %p144
        %p263 = pneg %p168
        %p264 = pneg %p165
        %p265 = pneg %p194
        %p266 = pneg %p191
        %s267 = sand.u32 %s181, 1
        %s268 = scalar_lea.sflag [#allocation4], %s267
        %s269 = sand.u32 %s181, 1
        %s270 = smul.addr %s269, 192
        %s271 = scalar_lea.vmem [#allocation3], %s270
        %p272 = scmp.lt.s32.totalorder %s21, 1
        %s273 = scalar_select %p272, %s21, 1
        %s274 = smul.addr %s273, 60
        %s275 = smul.addr %s274, 8
        %s276 = scalar_lea.vmem %s0, %s275
        %v277 = vld [vmem:[%s276] sm:$0xff]
        %v278 = vld [vmem:[%s276 + $0x8] sm:$0xff]
        %v279 = vld [vmem:[%s276 + $0x10] sm:$0xff]
        %v280 = vld [vmem:[%s276 + $0x18] sm:$0xff]
        %v281 = vld [vmem:[%s276 + $0x20] sm:$0xff]
        %v282 = vld [vmem:[%s276 + $0x28] sm:$0xff]
        %v283 = vld [vmem:[%s276 + $0x30] sm:$0xff]
        %v284 = vld [vmem:[%s276 + $0x38] sm:$0xff]
        %v285 = vld [vmem:[%s276 + $0x40] sm:$0xff]
        %v286 = vld [vmem:[%s276 + $0x48] sm:$0xff]
        %v287 = vld [vmem:[%s276 + $0x50] sm:$0xff]
        %v288 = vld [vmem:[%s276 + $0x58] sm:$0xff]
        %v289 = vld [vmem:[%s276 + $0x60] sm:$0xff]
        %v290 = vld [vmem:[%s276 + $0x68] sm:$0xff]
        %v291 = vld [vmem:[%s276 + $0x70] sm:$0xff]
        %v292 = vld [vmem:[%s276 + $0x78] sm:$0xff]
        %v293 = vld [vmem:[%s276 + $0x80] sm:$0xff]
        %v294 = vld [vmem:[%s276 + $0x88] sm:$0xff]
        %v295 = vld [vmem:[%s276 + $0x90] sm:$0xff]
        %v296 = vld [vmem:[%s276 + $0x98] sm:$0xff]
        %v297 = vld [vmem:[%s276 + $0xa0] sm:$0xff]
        %v298 = vld [vmem:[%s276 + $0xa8] sm:$0xff]
        %v299 = vld [vmem:[%s276 + $0xb0] sm:$0xff]
        %v300 = vld [vmem:[%s276 + $0xb8] sm:$0xff]
        %v301 = vld [vmem:[%s276 + $0xc0] sm:$0xff]
        %v302 = vld [vmem:[%s276 + $0xc8] sm:$0xff]
        %v303 = vld [vmem:[%s276 + $0xd0] sm:$0xff]
        %v304 = vld [vmem:[%s276 + $0xd8] sm:$0xff]
        %v305 = vld [vmem:[%s276 + $0xe0] sm:$0xff]
        %v306 = vld [vmem:[%s276 + $0xe8] sm:$0xff]
        %v307 = vld [vmem:[%s276 + $0xf0] sm:$0xff]
        %v308 = vld [vmem:[%s276 + $0xf8] sm:$0xff]
        %v309 = vld [vmem:[%s276 + $0x100] sm:$0xff]
        %v310 = vld [vmem:[%s276 + $0x108] sm:$0xff]
        %v311 = vld [vmem:[%s276 + $0x110] sm:$0xff]
        %v312 = vld [vmem:[%s276 + $0x118] sm:$0xff]
        %v313 = vld [vmem:[%s276 + $0x120] sm:$0xff]
        %v314 = vld [vmem:[%s276 + $0x128] sm:$0xff]
        %v315 = vld [vmem:[%s276 + $0x130] sm:$0xff]
        %v316 = vld [vmem:[%s276 + $0x138] sm:$0xff]
        %v317 = vld [vmem:[%s276 + $0x140] sm:$0xff]
        %v318 = vld [vmem:[%s276 + $0x148] sm:$0xff]
        %v319 = vld [vmem:[%s276 + $0x150] sm:$0xff]
        %v320 = vld [vmem:[%s276 + $0x158] sm:$0xff]
        %v321 = vld [vmem:[%s276 + $0x160] sm:$0xff]
        %v322 = vld [vmem:[%s276 + $0x168] sm:$0xff]
        %v323 = vld [vmem:[%s276 + $0x170] sm:$0xff]
        %v324 = vld [vmem:[%s276 + $0x178] sm:$0xff]
        %v325 = vld [vmem:[%s276 + $0x180] sm:$0xf]
        %v326 = vld [vmem:[%s276 + $0x188] sm:$0xf]
        %v327 = vld [vmem:[%s276 + $0x190] sm:$0xf]
        %v328 = vld [vmem:[%s276 + $0x198] sm:$0xf]
        %v329 = vld [vmem:[%s276 + $0x1a0] sm:$0xf]
        %v330 = vld [vmem:[%s276 + $0x1a8] sm:$0xf]
        %v331 = vld [vmem:[%s276 + $0x1b0] sm:$0xf]
        %v332 = vld [vmem:[%s276 + $0x1b8] sm:$0xf]
        %v333 = vld [vmem:[%s276 + $0x1c0] sm:$0xf]
        %v334 = vld [vmem:[%s276 + $0x1c8] sm:$0xf]
        %v335 = vld [vmem:[%s276 + $0x1d0] sm:$0xf]
        %v336 = vld [vmem:[%s276 + $0x1d8] sm:$0xf]
        %v337 = vld [vmem:[%s5] sm:$0xff]
        %v338 = vld [vmem:[%s5 + $0x8] sm:$0xff]
        %v339 = vld [vmem:[%s6] sm:$0xff]
        %v340 = vld [vmem:[%s6 + $0x8] sm:$0xff]
        %342 = vset.pattern.permute.xlu0 0
        %343 = vperm.xlu0 %342, %v339
        %v344 = vpop.permute.xlu0 %343
        %347 = vset.pattern.permute.xlu0 0
        %348 = vperm.xlu0 %347, %v340
        %v349 = vpop.permute.xlu0 %348
        %vm351 = vcmask 293888
        %v353 = vsel %vm351, %v337, 0
        %v356 = vsel %vm351, %v338, 0
        %vm358 = vcmask 1043456
        %v360 = vsel %vm358, %v325, 0
        %v363 = vsel %vm358, %v326, 0
        %v366 = vsel %vm358, %v327, 0
        %v369 = vsel %vm358, %v328, 0
        %v372 = vsel %vm358, %v329, 0
        %v375 = vsel %vm358, %v330, 0
        %v378 = vsel %vm358, %v331, 0
        %v381 = vsel %vm358, %v332, 0
        %v384 = vsel %vm358, %v333, 0
        %v387 = vsel %vm358, %v334, 0
        %v390 = vsel %vm358, %v335, 0
        %v393 = vsel %vm358, %v336, 0
        %395 = vmatpush.msra.mxu0 0.0
        %396 = vmatpush.msra.mxu0 0.0
        %397 = vmatpush.msra.mxu0 0.0
        %398 = vmatpush.msra.mxu0 0.0
        %399 = vmatpush.msra.mxu0 0.0
        %400 = vmatpush.msra.mxu0 0.0
        %401 = vmatpush.msra.mxu0 0.0
        %402 = vmatpush.msra.mxu0 0.0
        %403 = vmatpush.msra.mxu0 0.0
        %404 = vmatpush.msra.mxu0 0.0
        %405 = vmatpush.msra.mxu0 0.0
        %406 = vmatpush.msra.mxu0 %v360
        %407 = vmatpush.msra.mxu0 %v313
        %408 = vmatpush.msra.mxu0 %v301
        %409 = vmatpush.msra.mxu0 %v289
        %410 = vmatpush.msra.mxu0 %v277
        %411 = vmatmul.f32.gmra.mxu0 %v353
        %v412 = vpop.f32.mrf.mxu0
        %v413 = vadd.f32 %v344, %v412
        %414 = vmatmul.f32.gmra.mxu0 %v356
        %v415 = vpop.f32.mrf.mxu0
        %v416 = vadd.f32 %v349, %v415
        %417 = vdwg.mxu0
        %418 = vmatpush.msra.mxu0 0.0
        %419 = vmatpush.msra.mxu0 0.0
        %420 = vmatpush.msra.mxu0 0.0
        %421 = vmatpush.msra.mxu0 0.0
        %422 = vmatpush.msra.mxu0 0.0
        %423 = vmatpush.msra.mxu0 0.0
        %424 = vmatpush.msra.mxu0 0.0
        %425 = vmatpush.msra.mxu0 0.0
        %426 = vmatpush.msra.mxu0 0.0
        %427 = vmatpush.msra.mxu0 0.0
        %428 = vmatpush.msra.mxu0 0.0
        %429 = vmatpush.msra.mxu0 %v363
        %430 = vmatpush.msra.mxu0 %v314
        %431 = vmatpush.msra.mxu0 %v302
        %432 = vmatpush.msra.mxu0 %v290
        %433 = vmatpush.msra.mxu0 %v278
        %434 = vmatmul.f32.gmra.mxu0 %v353
        %v435 = vpop.f32.mrf.mxu0
        %v436 = vadd.f32 %v344, %v435
        %437 = vmatmul.f32.gmra.mxu0 %v356
        %v438 = vpop.f32.mrf.mxu0
        %v439 = vadd.f32 %v349, %v438
        %440 = vdwg.mxu0
        %441 = vmatpush.msra.mxu0 0.0
        %442 = vmatpush.msra.mxu0 0.0
        %443 = vmatpush.msra.mxu0 0.0
        %444 = vmatpush.msra.mxu0 0.0
        %445 = vmatpush.msra.mxu0 0.0
        %446 = vmatpush.msra.mxu0 0.0
        %447 = vmatpush.msra.mxu0 0.0
        %448 = vmatpush.msra.mxu0 0.0
        %449 = vmatpush.msra.mxu0 0.0
        %450 = vmatpush.msra.mxu0 0.0
        %451 = vmatpush.msra.mxu0 0.0
        %452 = vmatpush.msra.mxu0 %v366
        %453 = vmatpush.msra.mxu0 %v315
        %454 = vmatpush.msra.mxu0 %v303
        %455 = vmatpush.msra.mxu0 %v291
        %456 = vmatpush.msra.mxu0 %v279
        %457 = vmatmul.f32.gmra.mxu0 %v353
        %v458 = vpop.f32.mrf.mxu0
        %v459 = vadd.f32 %v344, %v458
        %460 = vmatmul.f32.gmra.mxu0 %v356
        %v461 = vpop.f32.mrf.mxu0
        %v462 = vadd.f32 %v349, %v461
        %463 = vdwg.mxu0
        %464 = vmatpush.msra.mxu0 0.0
        %465 = vmatpush.msra.mxu0 0.0
        %466 = vmatpush.msra.mxu0 0.0
        %467 = vmatpush.msra.mxu0 0.0
        %468 = vmatpush.msra.mxu0 0.0
        %469 = vmatpush.msra.mxu0 0.0
        %470 = vmatpush.msra.mxu0 0.0
        %471 = vmatpush.msra.mxu0 0.0
        %472 = vmatpush.msra.mxu0 0.0
        %473 = vmatpush.msra.mxu0 0.0
        %474 = vmatpush.msra.mxu0 0.0
        %475 = vmatpush.msra.mxu0 %v369
        %476 = vmatpush.msra.mxu0 %v316
        %477 = vmatpush.msra.mxu0 %v304
        %478 = vmatpush.msra.mxu0 %v292
        %479 = vmatpush.msra.mxu0 %v280
        %480 = vmatmul.f32.gmra.mxu0 %v353
        %v481 = vpop.f32.mrf.mxu0
        %v482 = vadd.f32 %v344, %v481
        %483 = vmatmul.f32.gmra.mxu0 %v356
        %v484 = vpop.f32.mrf.mxu0
        %v485 = vadd.f32 %v349, %v484
        %486 = vdwg.mxu0
        %487 = vmatpush.msra.mxu0 0.0
        %488 = vmatpush.msra.mxu0 0.0
        %489 = vmatpush.msra.mxu0 0.0
        %490 = vmatpush.msra.mxu0 0.0
        %491 = vmatpush.msra.mxu0 0.0
        %492 = vmatpush.msra.mxu0 0.0
        %493 = vmatpush.msra.mxu0 0.0
        %494 = vmatpush.msra.mxu0 0.0
        %495 = vmatpush.msra.mxu0 0.0
        %496 = vmatpush.msra.mxu0 0.0
        %497 = vmatpush.msra.mxu0 0.0
        %498 = vmatpush.msra.mxu0 %v372
        %499 = vmatpush.msra.mxu0 %v317
        %500 = vmatpush.msra.mxu0 %v305
        %501 = vmatpush.msra.mxu0 %v293
        %502 = vmatpush.msra.mxu0 %v281
        %503 = vmatmul.f32.gmra.mxu0 %v353
        %v504 = vpop.f32.mrf.mxu0
        %v505 = vadd.f32 %v344, %v504
        %506 = vmatmul.f32.gmra.mxu0 %v356
        %v507 = vpop.f32.mrf.mxu0
        %v508 = vadd.f32 %v349, %v507
        %509 = vdwg.mxu0
        %510 = vmatpush.msra.mxu0 0.0
        %511 = vmatpush.msra.mxu0 0.0
        %512 = vmatpush.msra.mxu0 0.0
        %513 = vmatpush.msra.mxu0 0.0
        %514 = vmatpush.msra.mxu0 0.0
        %515 = vmatpush.msra.mxu0 0.0
        %516 = vmatpush.msra.mxu0 0.0
        %517 = vmatpush.msra.mxu0 0.0
        %518 = vmatpush.msra.mxu0 0.0
        %519 = vmatpush.msra.mxu0 0.0
        %520 = vmatpush.msra.mxu0 0.0
        %521 = vmatpush.msra.mxu0 %v375
        %522 = vmatpush.msra.mxu0 %v318
        %523 = vmatpush.msra.mxu0 %v306
        %524 = vmatpush.msra.mxu0 %v294
        %525 = vmatpush.msra.mxu0 %v282
        %526 = vmatmul.f32.gmra.mxu0 %v353
        %v527 = vpop.f32.mrf.mxu0
        %v528 = vadd.f32 %v344, %v527
        %529 = vmatmul.f32.gmra.mxu0 %v356
        %v530 = vpop.f32.mrf.mxu0
        %v531 = vadd.f32 %v349, %v530
        %532 = vdwg.mxu0
        %533 = vmatpush.msra.mxu0 0.0
        %534 = vmatpush.msra.mxu0 0.0
        %535 = vmatpush.msra.mxu0 0.0
        %536 = vmatpush.msra.mxu0 0.0
        %537 = vmatpush.msra.mxu0 0.0
        %538 = vmatpush.msra.mxu0 0.0
        %539 = vmatpush.msra.mxu0 0.0
        %540 = vmatpush.msra.mxu0 0.0
        %541 = vmatpush.msra.mxu0 0.0
        %542 = vmatpush.msra.mxu0 0.0
        %543 = vmatpush.msra.mxu0 0.0
        %544 = vmatpush.msra.mxu0 %v378
        %545 = vmatpush.msra.mxu0 %v319
        %546 = vmatpush.msra.mxu0 %v307
        %547 = vmatpush.msra.mxu0 %v295
        %548 = vmatpush.msra.mxu0 %v283
        %549 = vmatmul.f32.gmra.mxu0 %v353
        %v550 = vpop.f32.mrf.mxu0
        %v551 = vadd.f32 %v344, %v550
        %552 = vmatmul.f32.gmra.mxu0 %v356
        %v553 = vpop.f32.mrf.mxu0
        %v554 = vadd.f32 %v349, %v553
        %555 = vdwg.mxu0
        %556 = vmatpush.msra.mxu0 0.0
        %557 = vmatpush.msra.mxu0 0.0
        %558 = vmatpush.msra.mxu0 0.0
        %559 = vmatpush.msra.mxu0 0.0
        %560 = vmatpush.msra.mxu0 0.0
        %561 = vmatpush.msra.mxu0 0.0
        %562 = vmatpush.msra.mxu0 0.0
        %563 = vmatpush.msra.mxu0 0.0
        %564 = vmatpush.msra.mxu0 0.0
        %565 = vmatpush.msra.mxu0 0.0
        %566 = vmatpush.msra.mxu0 0.0
        %567 = vmatpush.msra.mxu0 %v381
        %568 = vmatpush.msra.mxu0 %v320
        %569 = vmatpush.msra.mxu0 %v308
        %570 = vmatpush.msra.mxu0 %v296
        %571 = vmatpush.msra.mxu0 %v284
        %572 = vmatmul.f32.gmra.mxu0 %v353
        %v573 = vpop.f32.mrf.mxu0
        %v574 = vadd.f32 %v344, %v573
        %575 = vmatmul.f32.gmra.mxu0 %v356
        %v576 = vpop.f32.mrf.mxu0
        %v577 = vadd.f32 %v349, %v576
        %578 = vdwg.mxu0
        %579 = vmatpush.msra.mxu0 0.0
        %580 = vmatpush.msra.mxu0 0.0
        %581 = vmatpush.msra.mxu0 0.0
        %582 = vmatpush.msra.mxu0 0.0
        %583 = vmatpush.msra.mxu0 0.0
        %584 = vmatpush.msra.mxu0 0.0
        %585 = vmatpush.msra.mxu0 0.0
        %586 = vmatpush.msra.mxu0 0.0
        %587 = vmatpush.msra.mxu0 0.0
        %588 = vmatpush.msra.mxu0 0.0
        %589 = vmatpush.msra.mxu0 0.0
        %590 = vmatpush.msra.mxu0 %v384
        %591 = vmatpush.msra.mxu0 %v321
        %592 = vmatpush.msra.mxu0 %v309
        %593 = vmatpush.msra.mxu0 %v297
        %594 = vmatpush.msra.mxu0 %v285
        %595 = vmatmul.f32.gmra.mxu0 %v353
        %v596 = vpop.f32.mrf.mxu0
        %v597 = vadd.f32 %v344, %v596
        %598 = vmatmul.f32.gmra.mxu0 %v356
        %v599 = vpop.f32.mrf.mxu0
        %v600 = vadd.f32 %v349, %v599
        %601 = vdwg.mxu0
        %602 = vmatpush.msra.mxu0 0.0
        %603 = vmatpush.msra.mxu0 0.0
        %604 = vmatpush.msra.mxu0 0.0
        %605 = vmatpush.msra.mxu0 0.0
        %606 = vmatpush.msra.mxu0 0.0
        %607 = vmatpush.msra.mxu0 0.0
        %608 = vmatpush.msra.mxu0 0.0
        %609 = vmatpush.msra.mxu0 0.0
        %610 = vmatpush.msra.mxu0 0.0
        %611 = vmatpush.msra.mxu0 0.0
        %612 = vmatpush.msra.mxu0 0.0
        %613 = vmatpush.msra.mxu0 %v387
        %614 = vmatpush.msra.mxu0 %v322
        %615 = vmatpush.msra.mxu0 %v310
        %616 = vmatpush.msra.mxu0 %v298
        %617 = vmatpush.msra.mxu0 %v286
        %618 = vmatmul.f32.gmra.mxu0 %v353
        %v619 = vpop.f32.mrf.mxu0
        %v620 = vadd.f32 %v344, %v619
        %621 = vmatmul.f32.gmra.mxu0 %v356
        %v622 = vpop.f32.mrf.mxu0
        %v623 = vadd.f32 %v349, %v622
        %624 = vdwg.mxu0
        %625 = vmatpush.msra.mxu0 0.0
        %626 = vmatpush.msra.mxu0 0.0
        %627 = vmatpush.msra.mxu0 0.0
        %628 = vmatpush.msra.mxu0 0.0
        %629 = vmatpush.msra.mxu0 0.0
        %630 = vmatpush.msra.mxu0 0.0
        %631 = vmatpush.msra.mxu0 0.0
        %632 = vmatpush.msra.mxu0 0.0
        %633 = vmatpush.msra.mxu0 0.0
        %634 = vmatpush.msra.mxu0 0.0
        %635 = vmatpush.msra.mxu0 0.0
        %636 = vmatpush.msra.mxu0 %v390
        %637 = vmatpush.msra.mxu0 %v323
        %638 = vmatpush.msra.mxu0 %v311
        %639 = vmatpush.msra.mxu0 %v299
        %640 = vmatpush.msra.mxu0 %v287
        %641 = vmatmul.f32.gmra.mxu0 %v353
        %v642 = vpop.f32.mrf.mxu0
        %v643 = vadd.f32 %v344, %v642
        %644 = vmatmul.f32.gmra.mxu0 %v356
        %v645 = vpop.f32.mrf.mxu0
        %v646 = vadd.f32 %v349, %v645
        %647 = vdwg.mxu0
        %648 = vmatpush.msra.mxu0 0.0
        %649 = vmatpush.msra.mxu0 0.0
        %650 = vmatpush.msra.mxu0 0.0
        %651 = vmatpush.msra.mxu0 0.0
        %652 = vmatpush.msra.mxu0 0.0
        %653 = vmatpush.msra.mxu0 0.0
        %654 = vmatpush.msra.mxu0 0.0
        %655 = vmatpush.msra.mxu0 0.0
        %656 = vmatpush.msra.mxu0 0.0
        %657 = vmatpush.msra.mxu0 0.0
        %658 = vmatpush.msra.mxu0 0.0
        %659 = vmatpush.msra.mxu0 %v393
        %660 = vmatpush.msra.mxu0 %v324
        %661 = vmatpush.msra.mxu0 %v312
        %662 = vmatpush.msra.mxu0 %v300
        %663 = vmatpush.msra.mxu0 %v288
        %664 = vmatmul.f32.gmra.mxu0 %v353
        %v665 = vpop.f32.mrf.mxu0
        %v666 = vadd.f32 %v344, %v665
        %667 = vmatmul.f32.gmra.mxu0 %v356
        %v668 = vpop.f32.mrf.mxu0
        %v669 = vadd.f32 %v349, %v668
        %670 = vdwg.mxu0
        %v671 = vld [vmem:[%s1] sm:$0xff]
        %v672 = vld [vmem:[%s1 + $0x8] sm:$0xff]
        %v673 = vmax.f32 %v277, 0.0
        %v674 = vmax.f32 %v278, 0.0
        %v675 = vmax.f32 %v279, 0.0
        %v676 = vmax.f32 %v280, 0.0
        %v677 = vmax.f32 %v281, 0.0
        %v678 = vmax.f32 %v282, 0.0
        %v679 = vmax.f32 %v283, 0.0
        %v680 = vmax.f32 %v284, 0.0
        %v681 = vmax.f32 %v285, 0.0
        %v682 = vmax.f32 %v286, 0.0
        %v683 = vmax.f32 %v287, 0.0
        %v684 = vmax.f32 %v288, 0.0
        %v685 = vmax.f32 %v289, 0.0
        %v686 = vmax.f32 %v290, 0.0
        %v687 = vmax.f32 %v291, 0.0
        %v688 = vmax.f32 %v292, 0.0
        %v689 = vmax.f32 %v293, 0.0
        %v690 = vmax.f32 %v294, 0.0
        %v691 = vmax.f32 %v295, 0.0
        %v692 = vmax.f32 %v296, 0.0
        %v693 = vmax.f32 %v297, 0.0
        %v694 = vmax.f32 %v298, 0.0
        %v695 = vmax.f32 %v299, 0.0
        %v696 = vmax.f32 %v300, 0.0
        %v697 = vmax.f32 %v301, 0.0
        %v698 = vmax.f32 %v302, 0.0
        %v699 = vmax.f32 %v303, 0.0
        %v700 = vmax.f32 %v304, 0.0
        %v701 = vmax.f32 %v305, 0.0
        %v702 = vmax.f32 %v306, 0.0
        %v703 = vmax.f32 %v307, 0.0
        %v704 = vmax.f32 %v308, 0.0
        %v705 = vmax.f32 %v309, 0.0
        %v706 = vmax.f32 %v310, 0.0
        %v707 = vmax.f32 %v311, 0.0
        %v708 = vmax.f32 %v312, 0.0
        %v709 = vmax.f32 %v313, 0.0
        %v710 = vmax.f32 %v314, 0.0
        %v711 = vmax.f32 %v315, 0.0
        %v712 = vmax.f32 %v316, 0.0
        %v713 = vmax.f32 %v317, 0.0
        %v714 = vmax.f32 %v318, 0.0
        %v715 = vmax.f32 %v319, 0.0
        %v716 = vmax.f32 %v320, 0.0
        %v717 = vmax.f32 %v321, 0.0
        %v718 = vmax.f32 %v322, 0.0
        %v719 = vmax.f32 %v323, 0.0
        %v720 = vmax.f32 %v324, 0.0
        %v721 = vmax.f32 %v325, 0.0
        %v722 = vmax.f32 %v326, 0.0
        %v723 = vmax.f32 %v327, 0.0
        %v724 = vmax.f32 %v328, 0.0
        %v725 = vmax.f32 %v329, 0.0
        %v726 = vmax.f32 %v330, 0.0
        %v727 = vmax.f32 %v331, 0.0
        %v728 = vmax.f32 %v332, 0.0
        %v729 = vmax.f32 %v333, 0.0
        %v730 = vmax.f32 %v334, 0.0
        %v731 = vmax.f32 %v335, 0.0
        %v732 = vmax.f32 %v336, 0.0
        %v733 = vld [vmem:[%s2] sm:$0xff]
        %v734 = vld [vmem:[%s2 + $0x8] sm:$0xff]
        %736 = vset.pattern.permute.xlu0 0
        %737 = vperm.xlu0 %736, %v733
        %v738 = vpop.permute.xlu0 %737
        %741 = vset.pattern.permute.xlu0 0
        %742 = vperm.xlu0 %741, %v734
        %v743 = vpop.permute.xlu0 %742
        %v746 = vsel %vm351, %v671, 0
        %v749 = vsel %vm351, %v672, 0
        %v752 = vsel %vm358, %v721, 0
        %v755 = vsel %vm358, %v722, 0
        %v758 = vsel %vm358, %v723, 0
        %v761 = vsel %vm358, %v724, 0
        %v764 = vsel %vm358, %v725, 0
        %v767 = vsel %vm358, %v726, 0
        %v770 = vsel %vm358, %v727, 0
        %v773 = vsel %vm358, %v728, 0
        %v776 = vsel %vm358, %v729, 0
        %v779 = vsel %vm358, %v730, 0
        %v782 = vsel %vm358, %v731, 0
        %v785 = vsel %vm358, %v732, 0
        %787 = vmatpush.msra.mxu0 0.0
        %788 = vmatpush.msra.mxu0 0.0
        %789 = vmatpush.msra.mxu0 0.0
        %790 = vmatpush.msra.mxu0 0.0
        %791 = vmatpush.msra.mxu0 0.0
        %792 = vmatpush.msra.mxu0 0.0
        %793 = vmatpush.msra.mxu0 0.0
        %794 = vmatpush.msra.mxu0 0.0
        %795 = vmatpush.msra.mxu0 0.0
        %796 = vmatpush.msra.mxu0 0.0
        %797 = vmatpush.msra.mxu0 0.0
        %798 = vmatpush.msra.mxu0 %v752
        %799 = vmatpush.msra.mxu0 %v709
        %800 = vmatpush.msra.mxu0 %v697
        %801 = vmatpush.msra.mxu0 %v685
        %802 = vmatpush.msra.mxu0 %v673
        %803 = vmatmul.f32.gmra.mxu0 %v746
        %v804 = vpop.f32.mrf.mxu0
        %v805 = vadd.f32 %v738, %v804
        %806 = vmatmul.f32.gmra.mxu0 %v749
        %v807 = vpop.f32.mrf.mxu0
        %v808 = vadd.f32 %v743, %v807
        %809 = vdwg.mxu0
        %810 = vmatpush.msra.mxu0 0.0
        %811 = vmatpush.msra.mxu0 0.0
        %812 = vmatpush.msra.mxu0 0.0
        %813 = vmatpush.msra.mxu0 0.0
        %814 = vmatpush.msra.mxu0 0.0
        %815 = vmatpush.msra.mxu0 0.0
        %816 = vmatpush.msra.mxu0 0.0
        %817 = vmatpush.msra.mxu0 0.0
        %818 = vmatpush.msra.mxu0 0.0
        %819 = vmatpush.msra.mxu0 0.0
        %820 = vmatpush.msra.mxu0 0.0
        %821 = vmatpush.msra.mxu0 %v755
        %822 = vmatpush.msra.mxu0 %v710
        %823 = vmatpush.msra.mxu0 %v698
        %824 = vmatpush.msra.mxu0 %v686
        %825 = vmatpush.msra.mxu0 %v674
        %826 = vmatmul.f32.gmra.mxu0 %v746
        %v827 = vpop.f32.mrf.mxu0
        %v828 = vadd.f32 %v738, %v827
        %829 = vmatmul.f32.gmra.mxu0 %v749
        %v830 = vpop.f32.mrf.mxu0
        %v831 = vadd.f32 %v743, %v830
        %832 = vdwg.mxu0
        %833 = vmatpush.msra.mxu0 0.0
        %834 = vmatpush.msra.mxu0 0.0
        %835 = vmatpush.msra.mxu0 0.0
        %836 = vmatpush.msra.mxu0 0.0
        %837 = vmatpush.msra.mxu0 0.0
        %838 = vmatpush.msra.mxu0 0.0
        %839 = vmatpush.msra.mxu0 0.0
        %840 = vmatpush.msra.mxu0 0.0
        %841 = vmatpush.msra.mxu0 0.0
        %842 = vmatpush.msra.mxu0 0.0
        %843 = vmatpush.msra.mxu0 0.0
        %844 = vmatpush.msra.mxu0 %v758
        %845 = vmatpush.msra.mxu0 %v711
        %846 = vmatpush.msra.mxu0 %v699
        %847 = vmatpush.msra.mxu0 %v687
        %848 = vmatpush.msra.mxu0 %v675
        %849 = vmatmul.f32.gmra.mxu0 %v746
        %v850 = vpop.f32.mrf.mxu0
        %v851 = vadd.f32 %v738, %v850
        %852 = vmatmul.f32.gmra.mxu0 %v749
        %v853 = vpop.f32.mrf.mxu0
        %v854 = vadd.f32 %v743, %v853
        %855 = vdwg.mxu0
        %856 = vmatpush.msra.mxu0 0.0
        %857 = vmatpush.msra.mxu0 0.0
        %858 = vmatpush.msra.mxu0 0.0
        %859 = vmatpush.msra.mxu0 0.0
        %860 = vmatpush.msra.mxu0 0.0
        %861 = vmatpush.msra.mxu0 0.0
        %862 = vmatpush.msra.mxu0 0.0
        %863 = vmatpush.msra.mxu0 0.0
        %864 = vmatpush.msra.mxu0 0.0
        %865 = vmatpush.msra.mxu0 0.0
        %866 = vmatpush.msra.mxu0 0.0
        %867 = vmatpush.msra.mxu0 %v761
        %868 = vmatpush.msra.mxu0 %v712
        %869 = vmatpush.msra.mxu0 %v700
        %870 = vmatpush.msra.mxu0 %v688
        %871 = vmatpush.msra.mxu0 %v676
        %872 = vmatmul.f32.gmra.mxu0 %v746
        %v873 = vpop.f32.mrf.mxu0
        %v874 = vadd.f32 %v738, %v873
        %875 = vmatmul.f32.gmra.mxu0 %v749
        %v876 = vpop.f32.mrf.mxu0
        %v877 = vadd.f32 %v743, %v876
        %878 = vdwg.mxu0
        %879 = vmatpush.msra.mxu0 0.0
        %880 = vmatpush.msra.mxu0 0.0
        %881 = vmatpush.msra.mxu0 0.0
        %882 = vmatpush.msra.mxu0 0.0
        %883 = vmatpush.msra.mxu0 0.0
        %884 = vmatpush.msra.mxu0 0.0
        %885 = vmatpush.msra.mxu0 0.0
        %886 = vmatpush.msra.mxu0 0.0
        %887 = vmatpush.msra.mxu0 0.0
        %888 = vmatpush.msra.mxu0 0.0
        %889 = vmatpush.msra.mxu0 0.0
        %890 = vmatpush.msra.mxu0 %v764
        %891 = vmatpush.msra.mxu0 %v713
        %892 = vmatpush.msra.mxu0 %v701
        %893 = vmatpush.msra.mxu0 %v689
        %894 = vmatpush.msra.mxu0 %v677
        %895 = vmatmul.f32.gmra.mxu0 %v746
        %v896 = vpop.f32.mrf.mxu0
        %v897 = vadd.f32 %v738, %v896
        %898 = vmatmul.f32.gmra.mxu0 %v749
        %v899 = vpop.f32.mrf.mxu0
        %v900 = vadd.f32 %v743, %v899
        %901 = vdwg.mxu0
        %902 = vmatpush.msra.mxu0 0.0
        %903 = vmatpush.msra.mxu0 0.0
        %904 = vmatpush.msra.mxu0 0.0
        %905 = vmatpush.msra.mxu0 0.0
        %906 = vmatpush.msra.mxu0 0.0
        %907 = vmatpush.msra.mxu0 0.0
        %908 = vmatpush.msra.mxu0 0.0
        %909 = vmatpush.msra.mxu0 0.0
        %910 = vmatpush.msra.mxu0 0.0
        %911 = vmatpush.msra.mxu0 0.0
        %912 = vmatpush.msra.mxu0 0.0
        %913 = vmatpush.msra.mxu0 %v767
        %914 = vmatpush.msra.mxu0 %v714
        %915 = vmatpush.msra.mxu0 %v702
        %916 = vmatpush.msra.mxu0 %v690
        %917 = vmatpush.msra.mxu0 %v678
        %918 = vmatmul.f32.gmra.mxu0 %v746
        %v919 = vpop.f32.mrf.mxu0
        %v920 = vadd.f32 %v738, %v919
        %921 = vmatmul.f32.gmra.mxu0 %v749
        %v922 = vpop.f32.mrf.mxu0
        %v923 = vadd.f32 %v743, %v922
        %924 = vdwg.mxu0
        %925 = vmatpush.msra.mxu0 0.0
        %926 = vmatpush.msra.mxu0 0.0
        %927 = vmatpush.msra.mxu0 0.0
        %928 = vmatpush.msra.mxu0 0.0
        %929 = vmatpush.msra.mxu0 0.0
        %930 = vmatpush.msra.mxu0 0.0
        %931 = vmatpush.msra.mxu0 0.0
        %932 = vmatpush.msra.mxu0 0.0
        %933 = vmatpush.msra.mxu0 0.0
        %934 = vmatpush.msra.mxu0 0.0
        %935 = vmatpush.msra.mxu0 0.0
        %936 = vmatpush.msra.mxu0 %v770
        %937 = vmatpush.msra.mxu0 %v715
        %938 = vmatpush.msra.mxu0 %v703
        %939 = vmatpush.msra.mxu0 %v691
        %940 = vmatpush.msra.mxu0 %v679
        %941 = vmatmul.f32.gmra.mxu0 %v746
        %v942 = vpop.f32.mrf.mxu0
        %v943 = vadd.f32 %v738, %v942
        %944 = vmatmul.f32.gmra.mxu0 %v749
        %v945 = vpop.f32.mrf.mxu0
        %v946 = vadd.f32 %v743, %v945
        %947 = vdwg.mxu0
        %948 = vmatpush.msra.mxu0 0.0
        %949 = vmatpush.msra.mxu0 0.0
        %950 = vmatpush.msra.mxu0 0.0
        %951 = vmatpush.msra.mxu0 0.0
        %952 = vmatpush.msra.mxu0 0.0
        %953 = vmatpush.msra.mxu0 0.0
        %954 = vmatpush.msra.mxu0 0.0
        %955 = vmatpush.msra.mxu0 0.0
        %956 = vmatpush.msra.mxu0 0.0
        %957 = vmatpush.msra.mxu0 0.0
        %958 = vmatpush.msra.mxu0 0.0
        %959 = vmatpush.msra.mxu0 %v773
        %960 = vmatpush.msra.mxu0 %v716
        %961 = vmatpush.msra.mxu0 %v704
        %962 = vmatpush.msra.mxu0 %v692
        %963 = vmatpush.msra.mxu0 %v680
        %964 = vmatmul.f32.gmra.mxu0 %v746
        %v965 = vpop.f32.mrf.mxu0
        %v966 = vadd.f32 %v738, %v965
        %967 = vmatmul.f32.gmra.mxu0 %v749
        %v968 = vpop.f32.mrf.mxu0
        %v969 = vadd.f32 %v743, %v968
        %970 = vdwg.mxu0
        %971 = vmatpush.msra.mxu0 0.0
        %972 = vmatpush.msra.mxu0 0.0
        %973 = vmatpush.msra.mxu0 0.0
        %974 = vmatpush.msra.mxu0 0.0
        %975 = vmatpush.msra.mxu0 0.0
        %976 = vmatpush.msra.mxu0 0.0
        %977 = vmatpush.msra.mxu0 0.0
        %978 = vmatpush.msra.mxu0 0.0
        %979 = vmatpush.msra.mxu0 0.0
        %980 = vmatpush.msra.mxu0 0.0
        %981 = vmatpush.msra.mxu0 0.0
        %982 = vmatpush.msra.mxu0 %v776
        %983 = vmatpush.msra.mxu0 %v717
        %984 = vmatpush.msra.mxu0 %v705
        %985 = vmatpush.msra.mxu0 %v693
        %986 = vmatpush.msra.mxu0 %v681
        %987 = vmatmul.f32.gmra.mxu0 %v746
        %v988 = vpop.f32.mrf.mxu0
        %v989 = vadd.f32 %v738, %v988
        %990 = vmatmul.f32.gmra.mxu0 %v749
        %v991 = vpop.f32.mrf.mxu0
        %v992 = vadd.f32 %v743, %v991
        %993 = vdwg.mxu0
        %994 = vmatpush.msra.mxu0 0.0
        %995 = vmatpush.msra.mxu0 0.0
        %996 = vmatpush.msra.mxu0 0.0
        %997 = vmatpush.msra.mxu0 0.0
        %998 = vmatpush.msra.mxu0 0.0
        %999 = vmatpush.msra.mxu0 0.0
        %1000 = vmatpush.msra.mxu0 0.0
        %1001 = vmatpush.msra.mxu0 0.0
        %1002 = vmatpush.msra.mxu0 0.0
        %1003 = vmatpush.msra.mxu0 0.0
        %1004 = vmatpush.msra.mxu0 0.0
        %1005 = vmatpush.msra.mxu0 %v779
        %1006 = vmatpush.msra.mxu0 %v718
        %1007 = vmatpush.msra.mxu0 %v706
        %1008 = vmatpush.msra.mxu0 %v694
        %1009 = vmatpush.msra.mxu0 %v682
        %1010 = vmatmul.f32.gmra.mxu0 %v746
        %v1011 = vpop.f32.mrf.mxu0
        %v1012 = vadd.f32 %v738, %v1011
        %1013 = vmatmul.f32.gmra.mxu0 %v749
        %v1014 = vpop.f32.mrf.mxu0
        %v1015 = vadd.f32 %v743, %v1014
        %1016 = vdwg.mxu0
        %1017 = vmatpush.msra.mxu0 0.0
        %1018 = vmatpush.msra.mxu0 0.0
        %1019 = vmatpush.msra.mxu0 0.0
        %1020 = vmatpush.msra.mxu0 0.0
        %1021 = vmatpush.msra.mxu0 0.0
        %1022 = vmatpush.msra.mxu0 0.0
        %1023 = vmatpush.msra.mxu0 0.0
        %1024 = vmatpush.msra.mxu0 0.0
        %1025 = vmatpush.msra.mxu0 0.0
        %1026 = vmatpush.msra.mxu0 0.0
        %1027 = vmatpush.msra.mxu0 0.0
        %1028 = vmatpush.msra.mxu0 %v782
        %1029 = vmatpush.msra.mxu0 %v719
        %1030 = vmatpush.msra.mxu0 %v707
        %1031 = vmatpush.msra.mxu0 %v695
        %1032 = vmatpush.msra.mxu0 %v683
        %1033 = vmatmul.f32.gmra.mxu0 %v746
        %v1034 = vpop.f32.mrf.mxu0
        %v1035 = vadd.f32 %v738, %v1034
        %1036 = vmatmul.f32.gmra.mxu0 %v749
        %v1037 = vpop.f32.mrf.mxu0
        %v1038 = vadd.f32 %v743, %v1037
        %1039 = vdwg.mxu0
        %1040 = vmatpush.msra.mxu0 0.0
        %1041 = vmatpush.msra.mxu0 0.0
        %1042 = vmatpush.msra.mxu0 0.0
        %1043 = vmatpush.msra.mxu0 0.0
        %1044 = vmatpush.msra.mxu0 0.0
        %1045 = vmatpush.msra.mxu0 0.0
        %1046 = vmatpush.msra.mxu0 0.0
        %1047 = vmatpush.msra.mxu0 0.0
        %1048 = vmatpush.msra.mxu0 0.0
        %1049 = vmatpush.msra.mxu0 0.0
        %1050 = vmatpush.msra.mxu0 0.0
        %1051 = vmatpush.msra.mxu0 %v785
        %1052 = vmatpush.msra.mxu0 %v720
        %1053 = vmatpush.msra.mxu0 %v708
        %1054 = vmatpush.msra.mxu0 %v696
        %1055 = vmatpush.msra.mxu0 %v684
        %1056 = vmatmul.f32.gmra.mxu0 %v746
        %v1057 = vpop.f32.mrf.mxu0
        %v1058 = vadd.f32 %v738, %v1057
        %1059 = vmatmul.f32.gmra.mxu0 %v749
        %v1060 = vpop.f32.mrf.mxu0
        %v1061 = vadd.f32 %v743, %v1060
        %1062 = vdwg.mxu0
        %v1063 = vmax.f32 %v805, 0.0
        %v1064 = vmax.f32 %v828, 0.0
        %v1065 = vmax.f32 %v851, 0.0
        %v1066 = vmax.f32 %v874, 0.0
        %v1067 = vmax.f32 %v897, 0.0
        %v1068 = vmax.f32 %v920, 0.0
        %v1069 = vmax.f32 %v943, 0.0
        %v1070 = vmax.f32 %v966, 0.0
        %v1071 = vmax.f32 %v989, 0.0
        %v1072 = vmax.f32 %v1012, 0.0
        %v1073 = vmax.f32 %v1035, 0.0
        %v1074 = vmax.f32 %v1058, 0.0
        %v1075 = vmax.f32 %v808, 0.0
        %v1076 = vmax.f32 %v831, 0.0
        %v1077 = vmax.f32 %v854, 0.0
        %v1078 = vmax.f32 %v877, 0.0
        %v1079 = vmax.f32 %v900, 0.0
        %v1080 = vmax.f32 %v923, 0.0
        %v1081 = vmax.f32 %v946, 0.0
        %v1082 = vmax.f32 %v969, 0.0
        %v1083 = vmax.f32 %v992, 0.0
        %v1084 = vmax.f32 %v1015, 0.0
        %v1085 = vmax.f32 %v1038, 0.0
        %v1086 = vmax.f32 %v1061, 0.0
        %v1087 = vld [vmem:[%s3] sm:$0xff]
        %v1088 = vld [vmem:[%s3 + $0x8] sm:$0xf]
        %v1091 = vperm.slane %v1087, 0
        %v1092 = vperm.slane %v1087, 1
        %v1093 = vperm.slane %v1087, 2
        %v1094 = vperm.slane %v1087, 3
        %v1095 = vperm.slane %v1087, 4
        %v1096 = vperm.slane %v1087, 5
        %v1097 = vperm.slane %v1087, 6
        %v1098 = vperm.slane %v1087, 7
        %v1099 = vperm.slane %v1088, 0
        %v1100 = vperm.slane %v1088, 1
        %v1101 = vperm.slane %v1088, 2
        %v1102 = vperm.slane %v1088, 3
        %v1115 = vmul.f32 %v1063, %v1091
        %v1116 = vmul.f32 %v1064, %v1092
        %v1117 = vmul.f32 %v1065, %v1093
        %v1118 = vmul.f32 %v1066, %v1094
        %v1119 = vmul.f32 %v1067, %v1095
        %v1120 = vmul.f32 %v1068, %v1096
        %v1121 = vmul.f32 %v1069, %v1097
        %v1122 = vmul.f32 %v1070, %v1098
        %v1123 = vmul.f32 %v1071, %v1099
        %v1124 = vmul.f32 %v1072, %v1100
        %v1125 = vmul.f32 %v1073, %v1101
        %v1126 = vmul.f32 %v1074, %v1102
        %v1127 = vmul.f32 %v1075, %v1091
        %v1128 = vmul.f32 %v1076, %v1092
        %v1129 = vmul.f32 %v1077, %v1093
        %v1130 = vmul.f32 %v1078, %v1094
        %v1131 = vmul.f32 %v1079, %v1095
        %v1132 = vmul.f32 %v1080, %v1096
        %v1133 = vmul.f32 %v1081, %v1097
        %v1134 = vmul.f32 %v1082, %v1098
        %v1135 = vmul.f32 %v1083, %v1099
        %v1136 = vmul.f32 %v1084, %v1100
        %v1137 = vmul.f32 %v1085, %v1101
        %v1138 = vmul.f32 %v1086, %v1102
        %1163 = vrot.lane.b32.xlu0 %v1115, 19
        %v1164 = vpop.permute.xlu0 %1163
        %1165 = vrot.lane.b32.xlu0 %v1116, 19
        %v1166 = vpop.permute.xlu0 %1165
        %1167 = vrot.lane.b32.xlu0 %v1117, 19
        %v1168 = vpop.permute.xlu0 %1167
        %1169 = vrot.lane.b32.xlu0 %v1118, 19
        %v1170 = vpop.permute.xlu0 %1169
        %1171 = vrot.lane.b32.xlu0 %v1119, 19
        %v1172 = vpop.permute.xlu0 %1171
        %1173 = vrot.lane.b32.xlu0 %v1120, 19
        %v1174 = vpop.permute.xlu0 %1173
        %1175 = vrot.lane.b32.xlu0 %v1121, 19
        %v1176 = vpop.permute.xlu0 %1175
        %1177 = vrot.lane.b32.xlu0 %v1122, 19
        %v1178 = vpop.permute.xlu0 %1177
        %1179 = vrot.lane.b32.xlu0 %v1123, 19
        %v1180 = vpop.permute.xlu0 %1179
        %1181 = vrot.lane.b32.xlu0 %v1124, 19
        %v1182 = vpop.permute.xlu0 %1181
        %1183 = vrot.lane.b32.xlu0 %v1125, 19
        %v1184 = vpop.permute.xlu0 %1183
        %1185 = vrot.lane.b32.xlu0 %v1126, 19
        %v1186 = vpop.permute.xlu0 %1185
        %1187 = vrot.lane.b32.xlu0 %v1127, 19
        %v1188 = vpop.permute.xlu0 %1187
        %1189 = vrot.lane.b32.xlu0 %v1128, 19
        %v1190 = vpop.permute.xlu0 %1189
        %1191 = vrot.lane.b32.xlu0 %v1129, 19
        %v1192 = vpop.permute.xlu0 %1191
        %1193 = vrot.lane.b32.xlu0 %v1130, 19
        %v1194 = vpop.permute.xlu0 %1193
        %1195 = vrot.lane.b32.xlu0 %v1131, 19
        %v1196 = vpop.permute.xlu0 %1195
        %1197 = vrot.lane.b32.xlu0 %v1132, 19
        %v1198 = vpop.permute.xlu0 %1197
        %1199 = vrot.lane.b32.xlu0 %v1133, 19
        %v1200 = vpop.permute.xlu0 %1199
        %1201 = vrot.lane.b32.xlu0 %v1134, 19
        %v1202 = vpop.permute.xlu0 %1201
        %1203 = vrot.lane.b32.xlu0 %v1135, 19
        %v1204 = vpop.permute.xlu0 %1203
        %1205 = vrot.lane.b32.xlu0 %v1136, 19
        %v1206 = vpop.permute.xlu0 %1205
        %1207 = vrot.lane.b32.xlu0 %v1137, 19
        %v1208 = vpop.permute.xlu0 %1207
        %1209 = vrot.lane.b32.xlu0 %v1138, 19
        %v1210 = vpop.permute.xlu0 %1209
        %vm1211 = vcmask 154624
        %v1212 = vsel %vm1211, %v1164, %v1166
        %v1213 = vsel %vm1211, %v1166, %v1168
        %v1214 = vsel %vm1211, %v1168, %v1170
        %v1215 = vsel %vm1211, %v1170, %v1172
        %v1216 = vsel %vm1211, %v1172, %v1174
        %v1217 = vsel %vm1211, %v1174, %v1176
        %v1218 = vsel %vm1211, %v1176, %v1178
        %v1219 = vsel %vm1211, %v1178, %v1180
        %v1220 = vsel %vm1211, %v1180, %v1182
        %v1221 = vsel %vm1211, %v1182, %v1184
        %v1222 = vsel %vm1211, %v1184, %v1186
        %v1223 = vsel %vm1211, %v1188, %v1190
        %v1224 = vsel %vm1211, %v1190, %v1192
        %v1225 = vsel %vm1211, %v1192, %v1194
        %v1226 = vsel %vm1211, %v1194, %v1196
        %v1227 = vsel %vm1211, %v1196, %v1198
        %v1228 = vsel %vm1211, %v1198, %v1200
        %v1229 = vsel %vm1211, %v1200, %v1202
        %v1230 = vsel %vm1211, %v1202, %v1204
        %v1231 = vsel %vm1211, %v1204, %v1206
        %v1232 = vsel %vm1211, %v1206, %v1208
        %v1233 = vsel %vm1211, %v1208, %v1210
        %vm1260 = vcmask 1047704
        %1261 = vst.msk [vmem:[#allocation2 + $0x8] sm:$0xff] %vm1260, %v1164
        %1262 = vst [vmem:[#allocation2 + $0x10] sm:$0xff] %v1212
        %1263 = vst [vmem:[#allocation2 + $0x18] sm:$0xff] %v1213
        %1264 = vst [vmem:[#allocation2 + $0x20] sm:$0xff] %v1214
        %1265 = vst [vmem:[#allocation2 + $0x28] sm:$0xff] %v1215
        %1266 = vst [vmem:[#allocation2 + $0x30] sm:$0xff] %v1216
        %1267 = vst [vmem:[#allocation2 + $0x38] sm:$0xff] %v1217
        %1268 = vst [vmem:[#allocation2 + $0x40] sm:$0xff] %v1218
        %1269 = vst [vmem:[#allocation2 + $0x48] sm:$0xff] %v1219
        %1270 = vst [vmem:[#allocation2 + $0x50] sm:$0xff] %v1220
        %1271 = vst [vmem:[#allocation2 + $0x58] sm:$0xff] %v1221
        %1272 = vst [vmem:[#allocation2 + $0x60] sm:$0xff] %v1222
        %1273 = vst.msk [vmem:[#allocation2 + $0x68] sm:$0xff] %vm1211, %v1186
        %1274 = vst.msk [vmem:[#allocation2 + $0x78] sm:$0xff] %vm1260, %v1188
        %1275 = vst [vmem:[#allocation2 + $0x80] sm:$0xff] %v1223
        %1276 = vst [vmem:[#allocation2 + $0x88] sm:$0xff] %v1224
        %1277 = vst [vmem:[#allocation2 + $0x90] sm:$0xff] %v1225
        %1278 = vst [vmem:[#allocation2 + $0x98] sm:$0xff] %v1226
        %1279 = vst [vmem:[#allocation2 + $0xa0] sm:$0xff] %v1227
        %1280 = vst [vmem:[#allocation2 + $0xa8] sm:$0xff] %v1228
        %1281 = vst [vmem:[#allocation2 + $0xb0] sm:$0xff] %v1229
        %1282 = vst [vmem:[#allocation2 + $0xb8] sm:$0xff] %v1230
        %1283 = vst [vmem:[#allocation2 + $0xc0] sm:$0xff] %v1231
        %1284 = vst [vmem:[#allocation2 + $0xc8] sm:$0xff] %v1232
        %1285 = vst [vmem:[#allocation2 + $0xd0] sm:$0xff] %v1233
        %1286 = vst.msk [vmem:[#allocation2 + $0xd8] sm:$0xff] %vm1211, %v1210
        %1287 = vrot.lane.b32.xlu0 %v1115, 18
        %v1288 = vpop.permute.xlu0 %1287
        %1289 = vrot.lane.b32.xlu0 %v1116, 18
        %v1290 = vpop.permute.xlu0 %1289
        %1291 = vrot.lane.b32.xlu0 %v1117, 18
        %v1292 = vpop.permute.xlu0 %1291
        %1293 = vrot.lane.b32.xlu0 %v1118, 18
        %v1294 = vpop.permute.xlu0 %1293
        %1295 = vrot.lane.b32.xlu0 %v1119, 18
        %v1296 = vpop.permute.xlu0 %1295
        %1297 = vrot.lane.b32.xlu0 %v1120, 18
        %v1298 = vpop.permute.xlu0 %1297
        %1299 = vrot.lane.b32.xlu0 %v1121, 18
        %v1300 = vpop.permute.xlu0 %1299
        %1301 = vrot.lane.b32.xlu0 %v1122, 18
        %v1302 = vpop.permute.xlu0 %1301
        %1303 = vrot.lane.b32.xlu0 %v1123, 18
        %v1304 = vpop.permute.xlu0 %1303
        %1305 = vrot.lane.b32.xlu0 %v1124, 18
        %v1306 = vpop.permute.xlu0 %1305
        %1307 = vrot.lane.b32.xlu0 %v1125, 18
        %v1308 = vpop.permute.xlu0 %1307
        %1309 = vrot.lane.b32.xlu0 %v1126, 18
        %v1310 = vpop.permute.xlu0 %1309
        %1311 = vrot.lane.b32.xlu0 %v1127, 18
        %v1312 = vpop.permute.xlu0 %1311
        %1313 = vrot.lane.b32.xlu0 %v1128, 18
        %v1314 = vpop.permute.xlu0 %1313
        %1315 = vrot.lane.b32.xlu0 %v1129, 18
        %v1316 = vpop.permute.xlu0 %1315
        %1317 = vrot.lane.b32.xlu0 %v1130, 18
        %v1318 = vpop.permute.xlu0 %1317
        %1319 = vrot.lane.b32.xlu0 %v1131, 18
        %v1320 = vpop.permute.xlu0 %1319
        %1321 = vrot.lane.b32.xlu0 %v1132, 18
        %v1322 = vpop.permute.xlu0 %1321
        %1323 = vrot.lane.b32.xlu0 %v1133, 18
        %v1324 = vpop.permute.xlu0 %1323
        %1325 = vrot.lane.b32.xlu0 %v1134, 18
        %v1326 = vpop.permute.xlu0 %1325
        %1327 = vrot.lane.b32.xlu0 %v1135, 18
        %v1328 = vpop.permute.xlu0 %1327
        %1329 = vrot.lane.b32.xlu0 %v1136, 18
        %v1330 = vpop.permute.xlu0 %1329
        %1331 = vrot.lane.b32.xlu0 %v1137, 18
        %v1332 = vpop.permute.xlu0 %1331
        %1333 = vrot.lane.b32.xlu0 %v1138, 18
        %v1334 = vpop.permute.xlu0 %1333
        %vm1335 = vcmask 146432
        %v1336 = vsel %vm1335, %v1288, %v1290
        %v1337 = vsel %vm1335, %v1290, %v1292
        %v1338 = vsel %vm1335, %v1292, %v1294
        %v1339 = vsel %vm1335, %v1294, %v1296
        %v1340 = vsel %vm1335, %v1296, %v1298
        %v1341 = vsel %vm1335, %v1298, %v1300
        %v1342 = vsel %vm1335, %v1300, %v1302
        %v1343 = vsel %vm1335, %v1302, %v1304
        %v1344 = vsel %vm1335, %v1304, %v1306
        %v1345 = vsel %vm1335, %v1306, %v1308
        %v1346 = vsel %vm1335, %v1308, %v1310
        %v1347 = vsel %vm1335, %v1312, %v1314
        %v1348 = vsel %vm1335, %v1314, %v1316
        %v1349 = vsel %vm1335, %v1316, %v1318
        %v1350 = vsel %vm1335, %v1318, %v1320
        %v1351 = vsel %vm1335, %v1320, %v1322
        %v1352 = vsel %vm1335, %v1322, %v1324
        %v1353 = vsel %vm1335, %v1324, %v1326
        %v1354 = vsel %vm1335, %v1326, %v1328
        %v1355 = vsel %vm1335, %v1328, %v1330
        %v1356 = vsel %vm1335, %v1330, %v1332
        %v1357 = vsel %vm1335, %v1332, %v1334
        %vm1384 = vcmask 1047696
        %1385 = vst.msk [vmem:[#allocation2 + $0xe8] sm:$0xff] %vm1384, %v1288
        %1386 = vst [vmem:[#allocation2 + $0xf0] sm:$0xff] %v1336
        %1387 = vst [vmem:[#allocation2 + $0xf8] sm:$0xff] %v1337
        %1388 = vst [vmem:[#allocation2 + $0x100] sm:$0xff] %v1338
        %1389 = vst [vmem:[#allocation2 + $0x108] sm:$0xff] %v1339
        %1390 = vst [vmem:[#allocation2 + $0x110] sm:$0xff] %v1340
        %1391 = vst [vmem:[#allocation2 + $0x118] sm:$0xff] %v1341
        %1392 = vst [vmem:[#allocation2 + $0x120] sm:$0xff] %v1342
        %1393 = vst [vmem:[#allocation2 + $0x128] sm:$0xff] %v1343
        %1394 = vst [vmem:[#allocation2 + $0x130] sm:$0xff] %v1344
        %1395 = vst [vmem:[#allocation2 + $0x138] sm:$0xff] %v1345
        %1396 = vst [vmem:[#allocation2 + $0x140] sm:$0xff] %v1346
        %1397 = vst.msk [vmem:[#allocation2 + $0x148] sm:$0xff] %vm1335, %v1310
        %1398 = vst.msk [vmem:[#allocation2 + $0x158] sm:$0xff] %vm1384, %v1312
        %1399 = vst [vmem:[#allocation2 + $0x160] sm:$0xff] %v1347
        %1400 = vst [vmem:[#allocation2 + $0x168] sm:$0xff] %v1348
        %1401 = vst [vmem:[#allocation2 + $0x170] sm:$0xff] %v1349
        %1402 = vst [vmem:[#allocation2 + $0x178] sm:$0xff] %v1350
        %1403 = vst [vmem:[#allocation2 + $0x180] sm:$0xff] %v1351
        %1404 = vst [vmem:[#allocation2 + $0x188] sm:$0xff] %v1352
        %1405 = vst [vmem:[#allocation2 + $0x190] sm:$0xff] %v1353
        %1406 = vst [vmem:[#allocation2 + $0x198] sm:$0xff] %v1354
        %1407 = vst [vmem:[#allocation2 + $0x1a0] sm:$0xff] %v1355
        %1408 = vst [vmem:[#allocation2 + $0x1a8] sm:$0xff] %v1356
        %1409 = vst [vmem:[#allocation2 + $0x1b0] sm:$0xff] %v1357
        %1410 = vst.msk [vmem:[#allocation2 + $0x1b8] sm:$0xff] %vm1335, %v1334
        %1411 = vrot.lane.b32.xlu0 %v1115, 17
        %v1412 = vpop.permute.xlu0 %1411
        %1413 = vrot.lane.b32.xlu0 %v1116, 17
        %v1414 = vpop.permute.xlu0 %1413
        %1415 = vrot.lane.b32.xlu0 %v1117, 17
        %v1416 = vpop.permute.xlu0 %1415
        %1417 = vrot.lane.b32.xlu0 %v1118, 17
        %v1418 = vpop.permute.xlu0 %1417
        %1419 = vrot.lane.b32.xlu0 %v1119, 17
        %v1420 = vpop.permute.xlu0 %1419
        %1421 = vrot.lane.b32.xlu0 %v1120, 17
        %v1422 = vpop.permute.xlu0 %1421
        %1423 = vrot.lane.b32.xlu0 %v1121, 17
        %v1424 = vpop.permute.xlu0 %1423
        %1425 = vrot.lane.b32.xlu0 %v1122, 17
        %v1426 = vpop.permute.xlu0 %1425
        %1427 = vrot.lane.b32.xlu0 %v1123, 17
        %v1428 = vpop.permute.xlu0 %1427
        %1429 = vrot.lane.b32.xlu0 %v1124, 17
        %v1430 = vpop.permute.xlu0 %1429
        %1431 = vrot.lane.b32.xlu0 %v1125, 17
        %v1432 = vpop.permute.xlu0 %1431
        %1433 = vrot.lane.b32.xlu0 %v1126, 17
        %v1434 = vpop.permute.xlu0 %1433
        %1435 = vrot.lane.b32.xlu0 %v1127, 17
        %v1436 = vpop.permute.xlu0 %1435
        %1437 = vrot.lane.b32.xlu0 %v1128, 17
        %v1438 = vpop.permute.xlu0 %1437
        %1439 = vrot.lane.b32.xlu0 %v1129, 17
        %v1440 = vpop.permute.xlu0 %1439
        %1441 = vrot.lane.b32.xlu0 %v1130, 17
        %v1442 = vpop.permute.xlu0 %1441
        %1443 = vrot.lane.b32.xlu0 %v1131, 17
        %v1444 = vpop.permute.xlu0 %1443
        %1445 = vrot.lane.b32.xlu0 %v1132, 17
        %v1446 = vpop.permute.xlu0 %1445
        %1447 = vrot.lane.b32.xlu0 %v1133, 17
        %v1448 = vpop.permute.xlu0 %1447
        %1449 = vrot.lane.b32.xlu0 %v1134, 17
        %v1450 = vpop.permute.xlu0 %1449
        %1451 = vrot.lane.b32.xlu0 %v1135, 17
        %v1452 = vpop.permute.xlu0 %1451
        %1453 = vrot.lane.b32.xlu0 %v1136, 17
        %v1454 = vpop.permute.xlu0 %1453
        %1455 = vrot.lane.b32.xlu0 %v1137, 17
        %v1456 = vpop.permute.xlu0 %1455
        %1457 = vrot.lane.b32.xlu0 %v1138, 17
        %v1458 = vpop.permute.xlu0 %1457
        %vm1459 = vcmask 138240
        %v1460 = vsel %vm1459, %v1412, %v1414
        %v1461 = vsel %vm1459, %v1414, %v1416
        %v1462 = vsel %vm1459, %v1416, %v1418
        %v1463 = vsel %vm1459, %v1418, %v1420
        %v1464 = vsel %vm1459, %v1420, %v1422
        %v1465 = vsel %vm1459, %v1422, %v1424
        %v1466 = vsel %vm1459, %v1424, %v1426
        %v1467 = vsel %vm1459, %v1426, %v1428
        %v1468 = vsel %vm1459, %v1428, %v1430
        %v1469 = vsel %vm1459, %v1430, %v1432
        %v1470 = vsel %vm1459, %v1432, %v1434
        %v1471 = vsel %vm1459, %v1436, %v1438
        %v1472 = vsel %vm1459, %v1438, %v1440
        %v1473 = vsel %vm1459, %v1440, %v1442
        %v1474 = vsel %vm1459, %v1442, %v1444
        %v1475 = vsel %vm1459, %v1444, %v1446
        %v1476 = vsel %vm1459, %v1446, %v1448
        %v1477 = vsel %vm1459, %v1448, %v1450
        %v1478 = vsel %vm1459, %v1450, %v1452
        %v1479 = vsel %vm1459, %v1452, %v1454
        %v1480 = vsel %vm1459, %v1454, %v1456
        %v1481 = vsel %vm1459, %v1456, %v1458
        %vm1508 = vcmask 1047688
        %1509 = vst.msk [vmem:[#allocation2 + $0x1c8] sm:$0xff] %vm1508, %v1412
        %1510 = vst [vmem:[#allocation2 + $0x1d0] sm:$0xff] %v1460
        %1511 = vst [vmem:[#allocation2 + $0x1d8] sm:$0xff] %v1461
        %1512 = vst [vmem:[#allocation2 + $0x1e0] sm:$0xff] %v1462
        %1513 = vst [vmem:[#allocation2 + $0x1e8] sm:$0xff] %v1463
        %1514 = vst [vmem:[#allocation2 + $0x1f0] sm:$0xff] %v1464
        %1515 = vst [vmem:[#allocation2 + $0x1f8] sm:$0xff] %v1465
        %1516 = vst [vmem:[#allocation2 + $0x200] sm:$0xff] %v1466
        %1517 = vst [vmem:[#allocation2 + $0x208] sm:$0xff] %v1467
        %1518 = vst [vmem:[#allocation2 + $0x210] sm:$0xff] %v1468
        %1519 = vst [vmem:[#allocation2 + $0x218] sm:$0xff] %v1469
        %1520 = vst [vmem:[#allocation2 + $0x220] sm:$0xff] %v1470
        %1521 = vst.msk [vmem:[#allocation2 + $0x228] sm:$0xff] %vm1459, %v1434
        %1522 = vst.msk [vmem:[#allocation2 + $0x238] sm:$0xff] %vm1508, %v1436
        %1523 = vst [vmem:[#allocation2 + $0x240] sm:$0xff] %v1471
        %1524 = vst [vmem:[#allocation2 + $0x248] sm:$0xff] %v1472
        %1525 = vst [vmem:[#allocation2 + $0x250] sm:$0xff] %v1473
        %1526 = vst [vmem:[#allocation2 + $0x258] sm:$0xff] %v1474
        %1527 = vst [vmem:[#allocation2 + $0x260] sm:$0xff] %v1475
        %1528 = vst [vmem:[#allocation2 + $0x268] sm:$0xff] %v1476
        %1529 = vst [vmem:[#allocation2 + $0x270] sm:$0xff] %v1477
        %1530 = vst [vmem:[#allocation2 + $0x278] sm:$0xff] %v1478
        %1531 = vst [vmem:[#allocation2 + $0x280] sm:$0xff] %v1479
        %1532 = vst [vmem:[#allocation2 + $0x288] sm:$0xff] %v1480
        %1533 = vst [vmem:[#allocation2 + $0x290] sm:$0xff] %v1481
        %1534 = vst.msk [vmem:[#allocation2 + $0x298] sm:$0xff] %vm1459, %v1458
        %1535 = vrot.lane.b32.xlu0 %v1115, 1
        %v1536 = vpop.permute.xlu0 %1535
        %1537 = vrot.lane.b32.xlu0 %v1116, 1
        %v1538 = vpop.permute.xlu0 %1537
        %1539 = vrot.lane.b32.xlu0 %v1117, 1
        %v1540 = vpop.permute.xlu0 %1539
        %1541 = vrot.lane.b32.xlu0 %v1118, 1
        %v1542 = vpop.permute.xlu0 %1541
        %1543 = vrot.lane.b32.xlu0 %v1119, 1
        %v1544 = vpop.permute.xlu0 %1543
        %1545 = vrot.lane.b32.xlu0 %v1120, 1
        %v1546 = vpop.permute.xlu0 %1545
        %1547 = vrot.lane.b32.xlu0 %v1121, 1
        %v1548 = vpop.permute.xlu0 %1547
        %1549 = vrot.lane.b32.xlu0 %v1122, 1
        %v1550 = vpop.permute.xlu0 %1549
        %1551 = vrot.lane.b32.xlu0 %v1123, 1
        %v1552 = vpop.permute.xlu0 %1551
        %1553 = vrot.lane.b32.xlu0 %v1124, 1
        %v1554 = vpop.permute.xlu0 %1553
        %1555 = vrot.lane.b32.xlu0 %v1125, 1
        %v1556 = vpop.permute.xlu0 %1555
        %1557 = vrot.lane.b32.xlu0 %v1126, 1
        %v1558 = vpop.permute.xlu0 %1557
        %1559 = vrot.lane.b32.xlu0 %v1127, 1
        %v1560 = vpop.permute.xlu0 %1559
        %1561 = vrot.lane.b32.xlu0 %v1128, 1
        %v1562 = vpop.permute.xlu0 %1561
        %1563 = vrot.lane.b32.xlu0 %v1129, 1
        %v1564 = vpop.permute.xlu0 %1563
        %1565 = vrot.lane.b32.xlu0 %v1130, 1
        %v1566 = vpop.permute.xlu0 %1565
        %1567 = vrot.lane.b32.xlu0 %v1131, 1
        %v1568 = vpop.permute.xlu0 %1567
        %1569 = vrot.lane.b32.xlu0 %v1132, 1
        %v1570 = vpop.permute.xlu0 %1569
        %1571 = vrot.lane.b32.xlu0 %v1133, 1
        %v1572 = vpop.permute.xlu0 %1571
        %1573 = vrot.lane.b32.xlu0 %v1134, 1
        %v1574 = vpop.permute.xlu0 %1573
        %1575 = vrot.lane.b32.xlu0 %v1135, 1
        %v1576 = vpop.permute.xlu0 %1575
        %1577 = vrot.lane.b32.xlu0 %v1136, 1
        %v1578 = vpop.permute.xlu0 %1577
        %1579 = vrot.lane.b32.xlu0 %v1137, 1
        %v1580 = vpop.permute.xlu0 %1579
        %1581 = vrot.lane.b32.xlu0 %v1138, 1
        %v1582 = vpop.permute.xlu0 %1581
        %vm1583 = vcmask 7168
        %v1584 = vsel %vm1583, %v1536, %v1538
        %v1585 = vsel %vm1583, %v1538, %v1540
        %v1586 = vsel %vm1583, %v1540, %v1542
        %v1587 = vsel %vm1583, %v1542, %v1544
        %v1588 = vsel %vm1583, %v1544, %v1546
        %v1589 = vsel %vm1583, %v1546, %v1548
        %v1590 = vsel %vm1583, %v1548, %v1550
        %v1591 = vsel %vm1583, %v1550, %v1552
        %v1592 = vsel %vm1583, %v1552, %v1554
        %v1593 = vsel %vm1583, %v1554, %v1556
        %v1594 = vsel %vm1583, %v1556, %v1558
        %v1595 = vsel %vm1583, %v1560, %v1562
        %v1596 = vsel %vm1583, %v1562, %v1564
        %v1597 = vsel %vm1583, %v1564, %v1566
        %v1598 = vsel %vm1583, %v1566, %v1568
        %v1599 = vsel %vm1583, %v1568, %v1570
        %v1600 = vsel %vm1583, %v1570, %v1572
        %v1601 = vsel %vm1583, %v1572, %v1574
        %v1602 = vsel %vm1583, %v1574, %v1576
        %v1603 = vsel %vm1583, %v1576, %v1578
        %v1604 = vsel %vm1583, %v1578, %v1580
        %v1605 = vsel %vm1583, %v1580, %v1582
        %vm1632 = vcmask 1047560
        %1633 = vst.msk [vmem:[#allocation2 + $0x2a8] sm:$0xff] %vm1632, %v1536
        %1634 = vst [vmem:[#allocation2 + $0x2b0] sm:$0xff] %v1584
        %1635 = vst [vmem:[#allocation2 + $0x2b8] sm:$0xff] %v1585
        %1636 = vst [vmem:[#allocation2 + $0x2c0] sm:$0xff] %v1586
        %1637 = vst [vmem:[#allocation2 + $0x2c8] sm:$0xff] %v1587
        %1638 = vst [vmem:[#allocation2 + $0x2d0] sm:$0xff] %v1588
        %1639 = vst [vmem:[#allocation2 + $0x2d8] sm:$0xff] %v1589
        %1640 = vst [vmem:[#allocation2 + $0x2e0] sm:$0xff] %v1590
        %1641 = vst [vmem:[#allocation2 + $0x2e8] sm:$0xff] %v1591
        %1642 = vst [vmem:[#allocation2 + $0x2f0] sm:$0xff] %v1592
        %1643 = vst [vmem:[#allocation2 + $0x2f8] sm:$0xff] %v1593
        %1644 = vst [vmem:[#allocation2 + $0x300] sm:$0xff] %v1594
        %1645 = vst.msk [vmem:[#allocation2 + $0x308] sm:$0xff] %vm1583, %v1558
        %1646 = vst.msk [vmem:[#allocation2 + $0x318] sm:$0xff] %vm1632, %v1560
        %1647 = vst [vmem:[#allocation2 + $0x320] sm:$0xff] %v1595
        %1648 = vst [vmem:[#allocation2 + $0x328] sm:$0xff] %v1596
        %1649 = vst [vmem:[#allocation2 + $0x330] sm:$0xff] %v1597
        %1650 = vst [vmem:[#allocation2 + $0x338] sm:$0xff] %v1598
        %1651 = vst [vmem:[#allocation2 + $0x340] sm:$0xff] %v1599
        %1652 = vst [vmem:[#allocation2 + $0x348] sm:$0xff] %v1600
        %1653 = vst [vmem:[#allocation2 + $0x350] sm:$0xff] %v1601
        %1654 = vst [vmem:[#allocation2 + $0x358] sm:$0xff] %v1602
        %1655 = vst [vmem:[#allocation2 + $0x360] sm:$0xff] %v1603
        %1656 = vst [vmem:[#allocation2 + $0x368] sm:$0xff] %v1604
        %1657 = vst [vmem:[#allocation2 + $0x370] sm:$0xff] %v1605
        %1658 = vst.msk [vmem:[#allocation2 + $0x378] sm:$0xff] %vm1583, %v1582
        %1659 = vst [vmem:[#allocation2 + $0x388] sm:$0xff] %v1115
        %1660 = vst [vmem:[#allocation2 + $0x390] sm:$0xff] %v1116
        %1661 = vst [vmem:[#allocation2 + $0x398] sm:$0xff] %v1117
        %1662 = vst [vmem:[#allocation2 + $0x3a0] sm:$0xff] %v1118
        %1663 = vst [vmem:[#allocation2 + $0x3a8] sm:$0xff] %v1119
        %1664 = vst [vmem:[#allocation2 + $0x3b0] sm:$0xff] %v1120
        %1665 = vst [vmem:[#allocation2 + $0x3b8] sm:$0xff] %v1121
        %1666 = vst [vmem:[#allocation2 + $0x3c0] sm:$0xff] %v1122
        %1667 = vst [vmem:[#allocation2 + $0x3c8] sm:$0xff] %v1123
        %1668 = vst [vmem:[#allocation2 + $0x3d0] sm:$0xff] %v1124
        %1669 = vst [vmem:[#allocation2 + $0x3d8] sm:$0xff] %v1125
        %1670 = vst [vmem:[#allocation2 + $0x3e0] sm:$0xff] %v1126
        %1671 = vst [vmem:[#allocation2 + $0x3f8] sm:$0xff] %v1127
        %1672 = vst [vmem:[#allocation2 + $0x400] sm:$0xff] %v1128
        %1673 = vst [vmem:[#allocation2 + $0x408] sm:$0xff] %v1129
        %1674 = vst [vmem:[#allocation2 + $0x410] sm:$0xff] %v1130
        %1675 = vst [vmem:[#allocation2 + $0x418] sm:$0xff] %v1131
        %1676 = vst [vmem:[#allocation2 + $0x420] sm:$0xff] %v1132
        %1677 = vst [vmem:[#allocation2 + $0x428] sm:$0xff] %v1133
        %1678 = vst [vmem:[#allocation2 + $0x430] sm:$0xff] %v1134
        %1679 = vst [vmem:[#allocation2 + $0x438] sm:$0xff] %v1135
        %1680 = vst [vmem:[#allocation2 + $0x440] sm:$0xff] %v1136
        %1681 = vst [vmem:[#allocation2 + $0x448] sm:$0xff] %v1137
        %1682 = vst [vmem:[#allocation2 + $0x450] sm:$0xff] %v1138
        %1683 = vrot.lane.b32.xlu0 %v1115, 127
        %v1684 = vpop.permute.xlu0 %1683
        %1685 = vrot.lane.b32.xlu0 %v1116, 127
        %v1686 = vpop.permute.xlu0 %1685
        %1687 = vrot.lane.b32.xlu0 %v1117, 127
        %v1688 = vpop.permute.xlu0 %1687
        %1689 = vrot.lane.b32.xlu0 %v1118, 127
        %v1690 = vpop.permute.xlu0 %1689
        %1691 = vrot.lane.b32.xlu0 %v1119, 127
        %v1692 = vpop.permute.xlu0 %1691
        %1693 = vrot.lane.b32.xlu0 %v1120, 127
        %v1694 = vpop.permute.xlu0 %1693
        %1695 = vrot.lane.b32.xlu0 %v1121, 127
        %v1696 = vpop.permute.xlu0 %1695
        %1697 = vrot.lane.b32.xlu0 %v1122, 127
        %v1698 = vpop.permute.xlu0 %1697
        %1699 = vrot.lane.b32.xlu0 %v1123, 127
        %v1700 = vpop.permute.xlu0 %1699
        %1701 = vrot.lane.b32.xlu0 %v1124, 127
        %v1702 = vpop.permute.xlu0 %1701
        %1703 = vrot.lane.b32.xlu0 %v1125, 127
        %v1704 = vpop.permute.xlu0 %1703
        %1705 = vrot.lane.b32.xlu0 %v1126, 127
        %v1706 = vpop.permute.xlu0 %1705
        %1707 = vrot.lane.b32.xlu0 %v1127, 127
        %v1708 = vpop.permute.xlu0 %1707
        %1709 = vrot.lane.b32.xlu0 %v1128, 127
        %v1710 = vpop.permute.xlu0 %1709
        %1711 = vrot.lane.b32.xlu0 %v1129, 127
        %v1712 = vpop.permute.xlu0 %1711
        %1713 = vrot.lane.b32.xlu0 %v1130, 127
        %v1714 = vpop.permute.xlu0 %1713
        %1715 = vrot.lane.b32.xlu0 %v1131, 127
        %v1716 = vpop.permute.xlu0 %1715
        %1717 = vrot.lane.b32.xlu0 %v1132, 127
        %v1718 = vpop.permute.xlu0 %1717
        %1719 = vrot.lane.b32.xlu0 %v1133, 127
        %v1720 = vpop.permute.xlu0 %1719
        %1721 = vrot.lane.b32.xlu0 %v1134, 127
        %v1722 = vpop.permute.xlu0 %1721
        %1723 = vrot.lane.b32.xlu0 %v1135, 127
        %v1724 = vpop.permute.xlu0 %1723
        %1725 = vrot.lane.b32.xlu0 %v1136, 127
        %v1726 = vpop.permute.xlu0 %1725
        %1727 = vrot.lane.b32.xlu0 %v1137, 127
        %v1728 = vpop.permute.xlu0 %1727
        %1729 = vrot.lane.b32.xlu0 %v1138, 127
        %v1730 = vpop.permute.xlu0 %1729
        %vm1731 = vcmask 1039360
        %v1732 = vsel %vm1731, %v1684, %v1686
        %v1733 = vsel %vm1731, %v1686, %v1688
        %v1734 = vsel %vm1731, %v1688, %v1690
        %v1735 = vsel %vm1731, %v1690, %v1692
        %v1736 = vsel %vm1731, %v1692, %v1694
        %v1737 = vsel %vm1731, %v1694, %v1696
        %v1738 = vsel %vm1731, %v1696, %v1698
        %v1739 = vsel %vm1731, %v1698, %v1700
        %v1740 = vsel %vm1731, %v1700, %v1702
        %v1741 = vsel %vm1731, %v1702, %v1704
        %v1742 = vsel %vm1731, %v1704, %v1706
        %v1743 = vsel %vm1731, %v1708, %v1710
        %v1744 = vsel %vm1731, %v1710, %v1712
        %v1745 = vsel %vm1731, %v1712, %v1714
        %v1746 = vsel %vm1731, %v1714, %v1716
        %v1747 = vsel %vm1731, %v1716, %v1718
        %v1748 = vsel %vm1731, %v1718, %v1720
        %v1749 = vsel %vm1731, %v1720, %v1722
        %v1750 = vsel %vm1731, %v1722, %v1724
        %v1751 = vsel %vm1731, %v1724, %v1726
        %v1752 = vsel %vm1731, %v1726, %v1728
        %v1753 = vsel %vm1731, %v1728, %v1730
        %vm1780 = vcmask 1048568
        %1781 = vst.msk [vmem:[#allocation2 + $0x460] sm:$0xff] %vm1780, %v1684
        %1782 = vst [vmem:[#allocation2 + $0x468] sm:$0xff] %v1732
        %1783 = vst [vmem:[#allocation2 + $0x470] sm:$0xff] %v1733
        %1784 = vst [vmem:[#allocation2 + $0x478] sm:$0xff] %v1734
        %1785 = vst [vmem:[#allocation2 + $0x480] sm:$0xff] %v1735
        %1786 = vst [vmem:[#allocation2 + $0x488] sm:$0xff] %v1736
        %1787 = vst [vmem:[#allocation2 + $0x490] sm:$0xff] %v1737
        %1788 = vst [vmem:[#allocation2 + $0x498] sm:$0xff] %v1738
        %1789 = vst [vmem:[#allocation2 + $0x4a0] sm:$0xff] %v1739
        %1790 = vst [vmem:[#allocation2 + $0x4a8] sm:$0xff] %v1740
        %1791 = vst [vmem:[#allocation2 + $0x4b0] sm:$0xff] %v1741
        %1792 = vst [vmem:[#allocation2 + $0x4b8] sm:$0xff] %v1742
        %1793 = vst.msk [vmem:[#allocation2 + $0x4c0] sm:$0xff] %vm1731, %v1706
        %1794 = vst.msk [vmem:[#allocation2 + $0x4d0] sm:$0xff] %vm1780, %v1708
        %1795 = vst [vmem:[#allocation2 + $0x4d8] sm:$0xff] %v1743
        %1796 = vst [vmem:[#allocation2 + $0x4e0] sm:$0xff] %v1744
        %1797 = vst [vmem:[#allocation2 + $0x4e8] sm:$0xff] %v1745
        %1798 = vst [vmem:[#allocation2 + $0x4f0] sm:$0xff] %v1746
        %1799 = vst [vmem:[#allocation2 + $0x4f8] sm:$0xff] %v1747
        %1800 = vst [vmem:[#allocation2 + $0x500] sm:$0xff] %v1748
        %1801 = vst [vmem:[#allocation2 + $0x508] sm:$0xff] %v1749
        %1802 = vst [vmem:[#allocation2 + $0x510] sm:$0xff] %v1750
        %1803 = vst [vmem:[#allocation2 + $0x518] sm:$0xff] %v1751
        %1804 = vst [vmem:[#allocation2 + $0x520] sm:$0xff] %v1752
        %1805 = vst [vmem:[#allocation2 + $0x528] sm:$0xff] %v1753
        %1806 = vst.msk [vmem:[#allocation2 + $0x530] sm:$0xff] %vm1731, %v1730
        %1807 = vrot.lane.b32.xlu0 %v1115, 111
        %v1808 = vpop.permute.xlu0 %1807
        %1809 = vrot.lane.b32.xlu0 %v1116, 111
        %v1810 = vpop.permute.xlu0 %1809
        %1811 = vrot.lane.b32.xlu0 %v1117, 111
        %v1812 = vpop.permute.xlu0 %1811
        %1813 = vrot.lane.b32.xlu0 %v1118, 111
        %v1814 = vpop.permute.xlu0 %1813
        %1815 = vrot.lane.b32.xlu0 %v1119, 111
        %v1816 = vpop.permute.xlu0 %1815
        %1817 = vrot.lane.b32.xlu0 %v1120, 111
        %v1818 = vpop.permute.xlu0 %1817
        %1819 = vrot.lane.b32.xlu0 %v1121, 111
        %v1820 = vpop.permute.xlu0 %1819
        %1821 = vrot.lane.b32.xlu0 %v1122, 111
        %v1822 = vpop.permute.xlu0 %1821
        %1823 = vrot.lane.b32.xlu0 %v1123, 111
        %v1824 = vpop.permute.xlu0 %1823
        %1825 = vrot.lane.b32.xlu0 %v1124, 111
        %v1826 = vpop.permute.xlu0 %1825
        %1827 = vrot.lane.b32.xlu0 %v1125, 111
        %v1828 = vpop.permute.xlu0 %1827
        %1829 = vrot.lane.b32.xlu0 %v1126, 111
        %v1830 = vpop.permute.xlu0 %1829
        %1831 = vrot.lane.b32.xlu0 %v1127, 111
        %v1832 = vpop.permute.xlu0 %1831
        %1833 = vrot.lane.b32.xlu0 %v1128, 111
        %v1834 = vpop.permute.xlu0 %1833
        %1835 = vrot.lane.b32.xlu0 %v1129, 111
        %v1836 = vpop.permute.xlu0 %1835
        %1837 = vrot.lane.b32.xlu0 %v1130, 111
        %v1838 = vpop.permute.xlu0 %1837
        %1839 = vrot.lane.b32.xlu0 %v1131, 111
        %v1840 = vpop.permute.xlu0 %1839
        %1841 = vrot.lane.b32.xlu0 %v1132, 111
        %v1842 = vpop.permute.xlu0 %1841
        %1843 = vrot.lane.b32.xlu0 %v1133, 111
        %v1844 = vpop.permute.xlu0 %1843
        %1845 = vrot.lane.b32.xlu0 %v1134, 111
        %v1846 = vpop.permute.xlu0 %1845
        %1847 = vrot.lane.b32.xlu0 %v1135, 111
        %v1848 = vpop.permute.xlu0 %1847
        %1849 = vrot.lane.b32.xlu0 %v1136, 111
        %v1850 = vpop.permute.xlu0 %1849
        %1851 = vrot.lane.b32.xlu0 %v1137, 111
        %v1852 = vpop.permute.xlu0 %1851
        %1853 = vrot.lane.b32.xlu0 %v1138, 111
        %v1854 = vpop.permute.xlu0 %1853
        %vm1855 = vcmask 908288
        %v1856 = vsel %vm1855, %v1808, %v1810
        %v1857 = vsel %vm1855, %v1810, %v1812
        %v1858 = vsel %vm1855, %v1812, %v1814
        %v1859 = vsel %vm1855, %v1814, %v1816
        %v1860 = vsel %vm1855, %v1816, %v1818
        %v1861 = vsel %vm1855, %v1818, %v1820
        %v1862 = vsel %vm1855, %v1820, %v1822
        %v1863 = vsel %vm1855, %v1822, %v1824
        %v1864 = vsel %vm1855, %v1824, %v1826
        %v1865 = vsel %vm1855, %v1826, %v1828
        %v1866 = vsel %vm1855, %v1828, %v1830
        %v1867 = vsel %vm1855, %v1832, %v1834
        %v1868 = vsel %vm1855, %v1834, %v1836
        %v1869 = vsel %vm1855, %v1836, %v1838
        %v1870 = vsel %vm1855, %v1838, %v1840
        %v1871 = vsel %vm1855, %v1840, %v1842
        %v1872 = vsel %vm1855, %v1842, %v1844
        %v1873 = vsel %vm1855, %v1844, %v1846
        %v1874 = vsel %vm1855, %v1846, %v1848
        %v1875 = vsel %vm1855, %v1848, %v1850
        %v1876 = vsel %vm1855, %v1850, %v1852
        %v1877 = vsel %vm1855, %v1852, %v1854
        %vm1904 = vcmask 1048440
        %1905 = vst.msk [vmem:[#allocation2 + $0x540] sm:$0xff] %vm1904, %v1808
        %1906 = vst [vmem:[#allocation2 + $0x548] sm:$0xff] %v1856
        %1907 = vst [vmem:[#allocation2 + $0x550] sm:$0xff] %v1857
        %1908 = vst [vmem:[#allocation2 + $0x558] sm:$0xff] %v1858
        %1909 = vst [vmem:[#allocation2 + $0x560] sm:$0xff] %v1859
        %1910 = vst [vmem:[#allocation2 + $0x568] sm:$0xff] %v1860
        %1911 = vst [vmem:[#allocation2 + $0x570] sm:$0xff] %v1861
        %1912 = vst [vmem:[#allocation2 + $0x578] sm:$0xff] %v1862
        %1913 = vst [vmem:[#allocation2 + $0x580] sm:$0xff] %v1863
        %1914 = vst [vmem:[#allocation2 + $0x588] sm:$0xff] %v1864
        %1915 = vst [vmem:[#allocation2 + $0x590] sm:$0xff] %v1865
        %1916 = vst [vmem:[#allocation2 + $0x598] sm:$0xff] %v1866
        %1917 = vst.msk [vmem:[#allocation2 + $0x5a0] sm:$0xff] %vm1855, %v1830
        %1918 = vst.msk [vmem:[#allocation2 + $0x5b0] sm:$0xff] %vm1904, %v1832
        %1919 = vst [vmem:[#allocation2 + $0x5b8] sm:$0xff] %v1867
        %1920 = vst [vmem:[#allocation2 + $0x5c0] sm:$0xff] %v1868
        %1921 = vst [vmem:[#allocation2 + $0x5c8] sm:$0xff] %v1869
        %1922 = vst [vmem:[#allocation2 + $0x5d0] sm:$0xff] %v1870
        %1923 = vst [vmem:[#allocation2 + $0x5d8] sm:$0xff] %v1871
        %1924 = vst [vmem:[#allocation2 + $0x5e0] sm:$0xff] %v1872
        %1925 = vst [vmem:[#allocation2 + $0x5e8] sm:$0xff] %v1873
        %1926 = vst [vmem:[#allocation2 + $0x5f0] sm:$0xff] %v1874
        %1927 = vst [vmem:[#allocation2 + $0x5f8] sm:$0xff] %v1875
        %1928 = vst [vmem:[#allocation2 + $0x600] sm:$0xff] %v1876
        %1929 = vst [vmem:[#allocation2 + $0x608] sm:$0xff] %v1877
        %1930 = vst.msk [vmem:[#allocation2 + $0x610] sm:$0xff] %vm1855, %v1854
        %1931 = vrot.lane.b32.xlu0 %v1115, 110
        %v1932 = vpop.permute.xlu0 %1931
        %1933 = vrot.lane.b32.xlu0 %v1116, 110
        %v1934 = vpop.permute.xlu0 %1933
        %1935 = vrot.lane.b32.xlu0 %v1117, 110
        %v1936 = vpop.permute.xlu0 %1935
        %1937 = vrot.lane.b32.xlu0 %v1118, 110
        %v1938 = vpop.permute.xlu0 %1937
        %1939 = vrot.lane.b32.xlu0 %v1119, 110
        %v1940 = vpop.permute.xlu0 %1939
        %1941 = vrot.lane.b32.xlu0 %v1120, 110
        %v1942 = vpop.permute.xlu0 %1941
        %1943 = vrot.lane.b32.xlu0 %v1121, 110
        %v1944 = vpop.permute.xlu0 %1943
        %1945 = vrot.lane.b32.xlu0 %v1122, 110
        %v1946 = vpop.permute.xlu0 %1945
        %1947 = vrot.lane.b32.xlu0 %v1123, 110
        %v1948 = vpop.permute.xlu0 %1947
        %1949 = vrot.lane.b32.xlu0 %v1124, 110
        %v1950 = vpop.permute.xlu0 %1949
        %1951 = vrot.lane.b32.xlu0 %v1125, 110
        %v1952 = vpop.permute.xlu0 %1951
        %1953 = vrot.lane.b32.xlu0 %v1126, 110
        %v1954 = vpop.permute.xlu0 %1953
        %1955 = vrot.lane.b32.xlu0 %v1127, 110
        %v1956 = vpop.permute.xlu0 %1955
        %1957 = vrot.lane.b32.xlu0 %v1128, 110
        %v1958 = vpop.permute.xlu0 %1957
        %1959 = vrot.lane.b32.xlu0 %v1129, 110
        %v1960 = vpop.permute.xlu0 %1959
        %1961 = vrot.lane.b32.xlu0 %v1130, 110
        %v1962 = vpop.permute.xlu0 %1961
        %1963 = vrot.lane.b32.xlu0 %v1131, 110
        %v1964 = vpop.permute.xlu0 %1963
        %1965 = vrot.lane.b32.xlu0 %v1132, 110
        %v1966 = vpop.permute.xlu0 %1965
        %1967 = vrot.lane.b32.xlu0 %v1133, 110
        %v1968 = vpop.permute.xlu0 %1967
        %1969 = vrot.lane.b32.xlu0 %v1134, 110
        %v1970 = vpop.permute.xlu0 %1969
        %1971 = vrot.lane.b32.xlu0 %v1135, 110
        %v1972 = vpop.permute.xlu0 %1971
        %1973 = vrot.lane.b32.xlu0 %v1136, 110
        %v1974 = vpop.permute.xlu0 %1973
        %1975 = vrot.lane.b32.xlu0 %v1137, 110
        %v1976 = vpop.permute.xlu0 %1975
        %1977 = vrot.lane.b32.xlu0 %v1138, 110
        %v1978 = vpop.permute.xlu0 %1977
        %vm1979 = vcmask 900096
        %v1980 = vsel %vm1979, %v1932, %v1934
        %v1981 = vsel %vm1979, %v1934, %v1936
        %v1982 = vsel %vm1979, %v1936, %v1938
        %v1983 = vsel %vm1979, %v1938, %v1940
        %v1984 = vsel %vm1979, %v1940, %v1942
        %v1985 = vsel %vm1979, %v1942, %v1944
        %v1986 = vsel %vm1979, %v1944, %v1946
        %v1987 = vsel %vm1979, %v1946, %v1948
        %v1988 = vsel %vm1979, %v1948, %v1950
        %v1989 = vsel %vm1979, %v1950, %v1952
        %v1990 = vsel %vm1979, %v1952, %v1954
        %v1991 = vsel %vm1979, %v1956, %v1958
        %v1992 = vsel %vm1979, %v1958, %v1960
        %v1993 = vsel %vm1979, %v1960, %v1962
        %v1994 = vsel %vm1979, %v1962, %v1964
        %v1995 = vsel %vm1979, %v1964, %v1966
        %v1996 = vsel %vm1979, %v1966, %v1968
        %v1997 = vsel %vm1979, %v1968, %v1970
        %v1998 = vsel %vm1979, %v1970, %v1972
        %v1999 = vsel %vm1979, %v1972, %v1974
        %v2000 = vsel %vm1979, %v1974, %v1976
        %v2001 = vsel %vm1979, %v1976, %v1978
        %vm2028 = vcmask 1048432
        %2029 = vst.msk [vmem:[#allocation2 + $0x620] sm:$0xff] %vm2028, %v1932
        %2030 = vst [vmem:[#allocation2 + $0x628] sm:$0xff] %v1980
        %2031 = vst [vmem:[#allocation2 + $0x630] sm:$0xff] %v1981
        %2032 = vst [vmem:[#allocation2 + $0x638] sm:$0xff] %v1982
        %2033 = vst [vmem:[#allocation2 + $0x640] sm:$0xff] %v1983
        %2034 = vst [vmem:[#allocation2 + $0x648] sm:$0xff] %v1984
        %2035 = vst [vmem:[#allocation2 + $0x650] sm:$0xff] %v1985
        %2036 = vst [vmem:[#allocation2 + $0x658] sm:$0xff] %v1986
        %2037 = vst [vmem:[#allocation2 + $0x660] sm:$0xff] %v1987
        %2038 = vst [vmem:[#allocation2 + $0x668] sm:$0xff] %v1988
        %2039 = vst [vmem:[#allocation2 + $0x670] sm:$0xff] %v1989
        %2040 = vst [vmem:[#allocation2 + $0x678] sm:$0xff] %v1990
        %2041 = vst.msk [vmem:[#allocation2 + $0x680] sm:$0xff] %vm1979, %v1954
        %2042 = vst.msk [vmem:[#allocation2 + $0x690] sm:$0xff] %vm2028, %v1956
        %2043 = vst [vmem:[#allocation2 + $0x698] sm:$0xff] %v1991
        %2044 = vst [vmem:[#allocation2 + $0x6a0] sm:$0xff] %v1992
        %2045 = vst [vmem:[#allocation2 + $0x6a8] sm:$0xff] %v1993
        %2046 = vst [vmem:[#allocation2 + $0x6b0] sm:$0xff] %v1994
        %2047 = vst [vmem:[#allocation2 + $0x6b8] sm:$0xff] %v1995
        %2048 = vst [vmem:[#allocation2 + $0x6c0] sm:$0xff] %v1996
        %2049 = vst [vmem:[#allocation2 + $0x6c8] sm:$0xff] %v1997
        %2050 = vst [vmem:[#allocation2 + $0x6d0] sm:$0xff] %v1998
        %2051 = vst [vmem:[#allocation2 + $0x6d8] sm:$0xff] %v1999
        %2052 = vst [vmem:[#allocation2 + $0x6e0] sm:$0xff] %v2000
        %2053 = vst [vmem:[#allocation2 + $0x6e8] sm:$0xff] %v2001
        %2054 = vst.msk [vmem:[#allocation2 + $0x6f0] sm:$0xff] %vm1979, %v1978
        %2055 = vrot.lane.b32.xlu0 %v1115, 109
        %v2056 = vpop.permute.xlu0 %2055
        %2057 = vrot.lane.b32.xlu0 %v1116, 109
        %v2058 = vpop.permute.xlu0 %2057
        %2059 = vrot.lane.b32.xlu0 %v1117, 109
        %v2060 = vpop.permute.xlu0 %2059
        %2061 = vrot.lane.b32.xlu0 %v1118, 109
        %v2062 = vpop.permute.xlu0 %2061
        %2063 = vrot.lane.b32.xlu0 %v1119, 109
        %v2064 = vpop.permute.xlu0 %2063
        %2065 = vrot.lane.b32.xlu0 %v1120, 109
        %v2066 = vpop.permute.xlu0 %2065
        %2067 = vrot.lane.b32.xlu0 %v1121, 109
        %v2068 = vpop.permute.xlu0 %2067
        %2069 = vrot.lane.b32.xlu0 %v1122, 109
        %v2070 = vpop.permute.xlu0 %2069
        %2071 = vrot.lane.b32.xlu0 %v1123, 109
        %v2072 = vpop.permute.xlu0 %2071
        %2073 = vrot.lane.b32.xlu0 %v1124, 109
        %v2074 = vpop.permute.xlu0 %2073
        %2075 = vrot.lane.b32.xlu0 %v1125, 109
        %v2076 = vpop.permute.xlu0 %2075
        %2077 = vrot.lane.b32.xlu0 %v1126, 109
        %v2078 = vpop.permute.xlu0 %2077
        %2079 = vrot.lane.b32.xlu0 %v1127, 109
        %v2080 = vpop.permute.xlu0 %2079
        %2081 = vrot.lane.b32.xlu0 %v1128, 109
        %v2082 = vpop.permute.xlu0 %2081
        %2083 = vrot.lane.b32.xlu0 %v1129, 109
        %v2084 = vpop.permute.xlu0 %2083
        %2085 = vrot.lane.b32.xlu0 %v1130, 109
        %v2086 = vpop.permute.xlu0 %2085
        %2087 = vrot.lane.b32.xlu0 %v1131, 109
        %v2088 = vpop.permute.xlu0 %2087
        %2089 = vrot.lane.b32.xlu0 %v1132, 109
        %v2090 = vpop.permute.xlu0 %2089
        %2091 = vrot.lane.b32.xlu0 %v1133, 109
        %v2092 = vpop.permute.xlu0 %2091
        %2093 = vrot.lane.b32.xlu0 %v1134, 109
        %v2094 = vpop.permute.xlu0 %2093
        %2095 = vrot.lane.b32.xlu0 %v1135, 109
        %v2096 = vpop.permute.xlu0 %2095
        %2097 = vrot.lane.b32.xlu0 %v1136, 109
        %v2098 = vpop.permute.xlu0 %2097
        %2099 = vrot.lane.b32.xlu0 %v1137, 109
        %v2100 = vpop.permute.xlu0 %2099
        %2101 = vrot.lane.b32.xlu0 %v1138, 109
        %v2102 = vpop.permute.xlu0 %2101
        %vm2103 = vcmask 891904
        %v2104 = vsel %vm2103, %v2056, %v2058
        %v2105 = vsel %vm2103, %v2058, %v2060
        %v2106 = vsel %vm2103, %v2060, %v2062
        %v2107 = vsel %vm2103, %v2062, %v2064
        %v2108 = vsel %vm2103, %v2064, %v2066
        %v2109 = vsel %vm2103, %v2066, %v2068
        %v2110 = vsel %vm2103, %v2068, %v2070
        %v2111 = vsel %vm2103, %v2070, %v2072
        %v2112 = vsel %vm2103, %v2072, %v2074
        %v2113 = vsel %vm2103, %v2074, %v2076
        %v2114 = vsel %vm2103, %v2076, %v2078
        %v2115 = vsel %vm2103, %v2080, %v2082
        %v2116 = vsel %vm2103, %v2082, %v2084
        %v2117 = vsel %vm2103, %v2084, %v2086
        %v2118 = vsel %vm2103, %v2086, %v2088
        %v2119 = vsel %vm2103, %v2088, %v2090
        %v2120 = vsel %vm2103, %v2090, %v2092
        %v2121 = vsel %vm2103, %v2092, %v2094
        %v2122 = vsel %vm2103, %v2094, %v2096
        %v2123 = vsel %vm2103, %v2096, %v2098
        %v2124 = vsel %vm2103, %v2098, %v2100
        %v2125 = vsel %vm2103, %v2100, %v2102
        %vm2152 = vcmask 1048424
        %2153 = vst.msk [vmem:[#allocation2 + $0x700] sm:$0xff] %vm2152, %v2056
        %2154 = vst [vmem:[#allocation2 + $0x708] sm:$0xff] %v2104
        %2155 = vst [vmem:[#allocation2 + $0x710] sm:$0xff] %v2105
        %2156 = vst [vmem:[#allocation2 + $0x718] sm:$0xff] %v2106
        %2157 = vst [vmem:[#allocation2 + $0x720] sm:$0xff] %v2107
        %2158 = vst [vmem:[#allocation2 + $0x728] sm:$0xff] %v2108
        %2159 = vst [vmem:[#allocation2 + $0x730] sm:$0xff] %v2109
        %2160 = vst [vmem:[#allocation2 + $0x738] sm:$0xff] %v2110
        %2161 = vst [vmem:[#allocation2 + $0x740] sm:$0xff] %v2111
        %2162 = vst [vmem:[#allocation2 + $0x748] sm:$0xff] %v2112
        %2163 = vst [vmem:[#allocation2 + $0x750] sm:$0xff] %v2113
        %2164 = vst [vmem:[#allocation2 + $0x758] sm:$0xff] %v2114
        %2165 = vst.msk [vmem:[#allocation2 + $0x760] sm:$0xff] %vm2103, %v2078
        %2166 = vst.msk [vmem:[#allocation2 + $0x770] sm:$0xff] %vm2152, %v2080
        %2167 = vst [vmem:[#allocation2 + $0x778] sm:$0xff] %v2115
        %2168 = vst [vmem:[#allocation2 + $0x780] sm:$0xff] %v2116
        %2169 = vst [vmem:[#allocation2 + $0x788] sm:$0xff] %v2117
        %2170 = vst [vmem:[#allocation2 + $0x790] sm:$0xff] %v2118
        %2171 = vst [vmem:[#allocation2 + $0x798] sm:$0xff] %v2119
        %2172 = vst [vmem:[#allocation2 + $0x7a0] sm:$0xff] %v2120
        %2173 = vst [vmem:[#allocation2 + $0x7a8] sm:$0xff] %v2121
        %2174 = vst [vmem:[#allocation2 + $0x7b0] sm:$0xff] %v2122
        %2175 = vst [vmem:[#allocation2 + $0x7b8] sm:$0xff] %v2123
        %2176 = vst [vmem:[#allocation2 + $0x7c0] sm:$0xff] %v2124
        %2177 = vst [vmem:[#allocation2 + $0x7c8] sm:$0xff] %v2125
        %2178 = vst.msk [vmem:[#allocation2 + $0x7d0] sm:$0xff] %vm2103, %v2102
        %v2179 = vld [vmem:[%s4] sm:$0xff]
        %v2180 = vld [vmem:[%s4 + $0x8] sm:$0xff]
        %v2181 = vld [vmem:[%s4 + $0x10] sm:$0xff]
        %v2182 = vld [vmem:[%s4 + $0x18] sm:$0xff]
        %v2183 = vld [vmem:[#allocation2 + $0x8] sm:$0xff]
        %v2184 = vld [vmem:[#allocation2 + $0x10] sm:$0xff]
        %v2185 = vld [vmem:[#allocation2 + $0x18] sm:$0xff]
        %v2186 = vld [vmem:[#allocation2 + $0x20] sm:$0xff]
        %v2187 = vld [vmem:[#allocation2 + $0x28] sm:$0xff]
        %v2188 = vld [vmem:[#allocation2 + $0x30] sm:$0xff]
        %v2189 = vld [vmem:[#allocation2 + $0x38] sm:$0xff]
        %v2190 = vld [vmem:[#allocation2 + $0x40] sm:$0xff]
        %v2191 = vld [vmem:[#allocation2 + $0x48] sm:$0xff]
        %v2192 = vld [vmem:[#allocation2 + $0x50] sm:$0xff]
        %v2193 = vld [vmem:[#allocation2 + $0x58] sm:$0xff]
        %v2194 = vld [vmem:[#allocation2 + $0x60] sm:$0xff]
        %v2195 = vld [vmem:[#allocation2 + $0x78] sm:$0xff]
        %v2196 = vld [vmem:[#allocation2 + $0x80] sm:$0xff]
        %v2197 = vld [vmem:[#allocation2 + $0x88] sm:$0xff]
        %v2198 = vld [vmem:[#allocation2 + $0x90] sm:$0xff]
        %v2199 = vld [vmem:[#allocation2 + $0x98] sm:$0xff]
        %v2200 = vld [vmem:[#allocation2 + $0xa0] sm:$0xff]
        %v2201 = vld [vmem:[#allocation2 + $0xa8] sm:$0xff]
        %v2202 = vld [vmem:[#allocation2 + $0xb0] sm:$0xff]
        %v2203 = vld [vmem:[#allocation2 + $0xb8] sm:$0xff]
        %v2204 = vld [vmem:[#allocation2 + $0xc0] sm:$0xff]
        %v2205 = vld [vmem:[#allocation2 + $0xc8] sm:$0xff]
        %v2206 = vld [vmem:[#allocation2 + $0xd0] sm:$0xff]
        %v2207 = vld [vmem:[#allocation2 + $0xe8] sm:$0xff]
        %v2208 = vld [vmem:[#allocation2 + $0xf0] sm:$0xff]
        %v2209 = vld [vmem:[#allocation2 + $0xf8] sm:$0xff]
        %v2210 = vld [vmem:[#allocation2 + $0x100] sm:$0xff]
        %v2211 = vld [vmem:[#allocation2 + $0x108] sm:$0xff]
        %v2212 = vld [vmem:[#allocation2 + $0x110] sm:$0xff]
        %v2213 = vld [vmem:[#allocation2 + $0x118] sm:$0xff]
        %v2214 = vld [vmem:[#allocation2 + $0x120] sm:$0xff]
        %v2215 = vld [vmem:[#allocation2 + $0x128] sm:$0xff]
        %v2216 = vld [vmem:[#allocation2 + $0x130] sm:$0xff]
        %v2217 = vld [vmem:[#allocation2 + $0x138] sm:$0xff]
        %v2218 = vld [vmem:[#allocation2 + $0x140] sm:$0xff]
        %v2219 = vld [vmem:[#allocation2 + $0x158] sm:$0xff]
        %v2220 = vld [vmem:[#allocation2 + $0x160] sm:$0xff]
        %v2221 = vld [vmem:[#allocation2 + $0x168] sm:$0xff]
        %v2222 = vld [vmem:[#allocation2 + $0x170] sm:$0xff]
        %v2223 = vld [vmem:[#allocation2 + $0x178] sm:$0xff]
        %v2224 = vld [vmem:[#allocation2 + $0x180] sm:$0xff]
        %v2225 = vld [vmem:[#allocation2 + $0x188] sm:$0xff]
        %v2226 = vld [vmem:[#allocation2 + $0x190] sm:$0xff]
        %v2227 = vld [vmem:[#allocation2 + $0x198] sm:$0xff]
        %v2228 = vld [vmem:[#allocation2 + $0x1a0] sm:$0xff]
        %v2229 = vld [vmem:[#allocation2 + $0x1a8] sm:$0xff]
        %v2230 = vld [vmem:[#allocation2 + $0x1b0] sm:$0xff]
        %v2231 = vld [vmem:[#allocation2 + $0x1c8] sm:$0xff]
        %v2232 = vld [vmem:[#allocation2 + $0x1d0] sm:$0xff]
        %v2233 = vld [vmem:[#allocation2 + $0x1d8] sm:$0xff]
        %v2234 = vld [vmem:[#allocation2 + $0x1e0] sm:$0xff]
        %v2235 = vld [vmem:[#allocation2 + $0x1e8] sm:$0xff]
        %v2236 = vld [vmem:[#allocation2 + $0x1f0] sm:$0xff]
        %v2237 = vld [vmem:[#allocation2 + $0x1f8] sm:$0xff]
        %v2238 = vld [vmem:[#allocation2 + $0x200] sm:$0xff]
        %v2239 = vld [vmem:[#allocation2 + $0x208] sm:$0xff]
        %v2240 = vld [vmem:[#allocation2 + $0x210] sm:$0xff]
        %v2241 = vld [vmem:[#allocation2 + $0x218] sm:$0xff]
        %v2242 = vld [vmem:[#allocation2 + $0x220] sm:$0xff]
        %v2243 = vld [vmem:[#allocation2 + $0x238] sm:$0xff]
        %v2244 = vld [vmem:[#allocation2 + $0x240] sm:$0xff]
        %v2245 = vld [vmem:[#allocation2 + $0x248] sm:$0xff]
        %v2246 = vld [vmem:[#allocation2 + $0x250] sm:$0xff]
        %v2247 = vld [vmem:[#allocation2 + $0x258] sm:$0xff]
        %v2248 = vld [vmem:[#allocation2 + $0x260] sm:$0xff]
        %v2249 = vld [vmem:[#allocation2 + $0x268] sm:$0xff]
        %v2250 = vld [vmem:[#allocation2 + $0x270] sm:$0xff]
        %v2251 = vld [vmem:[#allocation2 + $0x278] sm:$0xff]
        %v2252 = vld [vmem:[#allocation2 + $0x280] sm:$0xff]
        %v2253 = vld [vmem:[#allocation2 + $0x288] sm:$0xff]
        %v2254 = vld [vmem:[#allocation2 + $0x290] sm:$0xff]
        %v2255 = vld [vmem:[#allocation2 + $0x2a8] sm:$0xff]
        %v2256 = vld [vmem:[#allocation2 + $0x2b0] sm:$0xff]
        %v2257 = vld [vmem:[#allocation2 + $0x2b8] sm:$0xff]
        %v2258 = vld [vmem:[#allocation2 + $0x2c0] sm:$0xff]
        %v2259 = vld [vmem:[#allocation2 + $0x2c8] sm:$0xff]
        %v2260 = vld [vmem:[#allocation2 + $0x2d0] sm:$0xff]
        %v2261 = vld [vmem:[#allocation2 + $0x2d8] sm:$0xff]
        %v2262 = vld [vmem:[#allocation2 + $0x2e0] sm:$0xff]
        %v2263 = vld [vmem:[#allocation2 + $0x2e8] sm:$0xff]
        %v2264 = vld [vmem:[#allocation2 + $0x2f0] sm:$0xff]
        %v2265 = vld [vmem:[#allocation2 + $0x2f8] sm:$0xff]
        %v2266 = vld [vmem:[#allocation2 + $0x300] sm:$0xff]
        %v2267 = vld [vmem:[#allocation2 + $0x318] sm:$0xff]
        %v2268 = vld [vmem:[#allocation2 + $0x320] sm:$0xff]
        %v2269 = vld [vmem:[#allocation2 + $0x328] sm:$0xff]
        %v2270 = vld [vmem:[#allocation2 + $0x330] sm:$0xff]
        %v2271 = vld [vmem:[#allocation2 + $0x338] sm:$0xff]
        %v2272 = vld [vmem:[#allocation2 + $0x340] sm:$0xff]
        %v2273 = vld [vmem:[#allocation2 + $0x348] sm:$0xff]
        %v2274 = vld [vmem:[#allocation2 + $0x350] sm:$0xff]
        %v2275 = vld [vmem:[#allocation2 + $0x358] sm:$0xff]
        %v2276 = vld [vmem:[#allocation2 + $0x360] sm:$0xff]
        %v2277 = vld [vmem:[#allocation2 + $0x368] sm:$0xff]
        %v2278 = vld [vmem:[#allocation2 + $0x370] sm:$0xff]
        %v2279 = vld [vmem:[#allocation2 + $0x388] sm:$0xff]
        %v2280 = vld [vmem:[#allocation2 + $0x390] sm:$0xff]
        %v2281 = vld [vmem:[#allocation2 + $0x398] sm:$0xff]
        %v2282 = vld [vmem:[#allocation2 + $0x3a0] sm:$0xff]
        %v2283 = vld [vmem:[#allocation2 + $0x3a8] sm:$0xff]
        %v2284 = vld [vmem:[#allocation2 + $0x3b0] sm:$0xff]
        %v2285 = vld [vmem:[#allocation2 + $0x3b8] sm:$0xff]
        %v2286 = vld [vmem:[#allocation2 + $0x3c0] sm:$0xff]
        %v2287 = vld [vmem:[#allocation2 + $0x3c8] sm:$0xff]
        %v2288 = vld [vmem:[#allocation2 + $0x3d0] sm:$0xff]
        %v2289 = vld [vmem:[#allocation2 + $0x3d8] sm:$0xff]
        %v2290 = vld [vmem:[#allocation2 + $0x3e0] sm:$0xff]
        %v2291 = vld [vmem:[#allocation2 + $0x3f8] sm:$0xff]
        %v2292 = vld [vmem:[#allocation2 + $0x400] sm:$0xff]
        %v2293 = vld [vmem:[#allocation2 + $0x408] sm:$0xff]
        %v2294 = vld [vmem:[#allocation2 + $0x410] sm:$0xff]
        %v2295 = vld [vmem:[#allocation2 + $0x418] sm:$0xff]
        %v2296 = vld [vmem:[#allocation2 + $0x420] sm:$0xff]
        %v2297 = vld [vmem:[#allocation2 + $0x428] sm:$0xff]
        %v2298 = vld [vmem:[#allocation2 + $0x430] sm:$0xff]
        %v2299 = vld [vmem:[#allocation2 + $0x438] sm:$0xff]
        %v2300 = vld [vmem:[#allocation2 + $0x440] sm:$0xff]
        %v2301 = vld [vmem:[#allocation2 + $0x448] sm:$0xff]
        %v2302 = vld [vmem:[#allocation2 + $0x450] sm:$0xff]
        %v2303 = vld [vmem:[#allocation2 + $0x468] sm:$0xff]
        %v2304 = vld [vmem:[#allocation2 + $0x470] sm:$0xff]
        %v2305 = vld [vmem:[#allocation2 + $0x478] sm:$0xff]
        %v2306 = vld [vmem:[#allocation2 + $0x480] sm:$0xff]
        %v2307 = vld [vmem:[#allocation2 + $0x488] sm:$0xff]
        %v2308 = vld [vmem:[#allocation2 + $0x490] sm:$0xff]
        %v2309 = vld [vmem:[#allocation2 + $0x498] sm:$0xff]
        %v2310 = vld [vmem:[#allocation2 + $0x4a0] sm:$0xff]
        %v2311 = vld [vmem:[#allocation2 + $0x4a8] sm:$0xff]
        %v2312 = vld [vmem:[#allocation2 + $0x4b0] sm:$0xff]
        %v2313 = vld [vmem:[#allocation2 + $0x4b8] sm:$0xff]
        %v2314 = vld [vmem:[#allocation2 + $0x4c0] sm:$0xff]
        %v2315 = vld [vmem:[#allocation2 + $0x4d8] sm:$0xff]
        %v2316 = vld [vmem:[#allocation2 + $0x4e0] sm:$0xff]
        %v2317 = vld [vmem:[#allocation2 + $0x4e8] sm:$0xff]
        %v2318 = vld [vmem:[#allocation2 + $0x4f0] sm:$0xff]
        %v2319 = vld [vmem:[#allocation2 + $0x4f8] sm:$0xff]
        %v2320 = vld [vmem:[#allocation2 + $0x500] sm:$0xff]
        %v2321 = vld [vmem:[#allocation2 + $0x508] sm:$0xff]
        %v2322 = vld [vmem:[#allocation2 + $0x510] sm:$0xff]
        %v2323 = vld [vmem:[#allocation2 + $0x518] sm:$0xff]
        %v2324 = vld [vmem:[#allocation2 + $0x520] sm:$0xff]
        %v2325 = vld [vmem:[#allocation2 + $0x528] sm:$0xff]
        %v2326 = vld [vmem:[#allocation2 + $0x530] sm:$0xff]
        %v2327 = vld [vmem:[#allocation2 + $0x548] sm:$0xff]
        %v2328 = vld [vmem:[#allocation2 + $0x550] sm:$0xff]
        %v2329 = vld [vmem:[#allocation2 + $0x558] sm:$0xff]
        %v2330 = vld [vmem:[#allocation2 + $0x560] sm:$0xff]
        %v2331 = vld [vmem:[#allocation2 + $0x568] sm:$0xff]
        %v2332 = vld [vmem:[#allocation2 + $0x570] sm:$0xff]
        %v2333 = vld [vmem:[#allocation2 + $0x578] sm:$0xff]
        %v2334 = vld [vmem:[#allocation2 + $0x580] sm:$0xff]
        %v2335 = vld [vmem:[#allocation2 + $0x588] sm:$0xff]
        %v2336 = vld [vmem:[#allocation2 + $0x590] sm:$0xff]
        %v2337 = vld [vmem:[#allocation2 + $0x598] sm:$0xff]
        %v2338 = vld [vmem:[#allocation2 + $0x5a0] sm:$0xff]
        %v2339 = vld [vmem:[#allocation2 + $0x5b8] sm:$0xff]
        %v2340 = vld [vmem:[#allocation2 + $0x5c0] sm:$0xff]
        %v2341 = vld [vmem:[#allocation2 + $0x5c8] sm:$0xff]
        %v2342 = vld [vmem:[#allocation2 + $0x5d0] sm:$0xff]
        %v2343 = vld [vmem:[#allocation2 + $0x5d8] sm:$0xff]
        %v2344 = vld [vmem:[#allocation2 + $0x5e0] sm:$0xff]
        %v2345 = vld [vmem:[#allocation2 + $0x5e8] sm:$0xff]
        %v2346 = vld [vmem:[#allocation2 + $0x5f0] sm:$0xff]
        %v2347 = vld [vmem:[#allocation2 + $0x5f8] sm:$0xff]
        %v2348 = vld [vmem:[#allocation2 + $0x600] sm:$0xff]
        %v2349 = vld [vmem:[#allocation2 + $0x608] sm:$0xff]
        %v2350 = vld [vmem:[#allocation2 + $0x610] sm:$0xff]
        %v2351 = vld [vmem:[#allocation2 + $0x628] sm:$0xff]
        %v2352 = vld [vmem:[#allocation2 + $0x630] sm:$0xff]
        %v2353 = vld [vmem:[#allocation2 + $0x638] sm:$0xff]
        %v2354 = vld [vmem:[#allocation2 + $0x640] sm:$0xff]
        %v2355 = vld [vmem:[#allocation2 + $0x648] sm:$0xff]
        %v2356 = vld [vmem:[#allocation2 + $0x650] sm:$0xff]
        %v2357 = vld [vmem:[#allocation2 + $0x658] sm:$0xff]
        %v2358 = vld [vmem:[#allocation2 + $0x660] sm:$0xff]
        %v2359 = vld [vmem:[#allocation2 + $0x668] sm:$0xff]
        %v2360 = vld [vmem:[#allocation2 + $0x670] sm:$0xff]
        %v2361 = vld [vmem:[#allocation2 + $0x678] sm:$0xff]
        %v2362 = vld [vmem:[#allocation2 + $0x680] sm:$0xff]
        %v2363 = vld [vmem:[#allocation2 + $0x698] sm:$0xff]
        %v2364 = vld [vmem:[#allocation2 + $0x6a0] sm:$0xff]
        %v2365 = vld [vmem:[#allocation2 + $0x6a8] sm:$0xff]
        %v2366 = vld [vmem:[#allocation2 + $0x6b0] sm:$0xff]
        %v2367 = vld [vmem:[#allocation2 + $0x6b8] sm:$0xff]
        %v2368 = vld [vmem:[#allocation2 + $0x6c0] sm:$0xff]
        %v2369 = vld [vmem:[#allocation2 + $0x6c8] sm:$0xff]
        %v2370 = vld [vmem:[#allocation2 + $0x6d0] sm:$0xff]
        %v2371 = vld [vmem:[#allocation2 + $0x6d8] sm:$0xff]
        %v2372 = vld [vmem:[#allocation2 + $0x6e0] sm:$0xff]
        %v2373 = vld [vmem:[#allocation2 + $0x6e8] sm:$0xff]
        %v2374 = vld [vmem:[#allocation2 + $0x6f0] sm:$0xff]
        %v2375 = vld [vmem:[#allocation2 + $0x708] sm:$0xff]
        %v2376 = vld [vmem:[#allocation2 + $0x710] sm:$0xff]
        %v2377 = vld [vmem:[#allocation2 + $0x718] sm:$0xff]
        %v2378 = vld [vmem:[#allocation2 + $0x720] sm:$0xff]
        %v2379 = vld [vmem:[#allocation2 + $0x728] sm:$0xff]
        %v2380 = vld [vmem:[#allocation2 + $0x730] sm:$0xff]
        %v2381 = vld [vmem:[#allocation2 + $0x738] sm:$0xff]
        %v2382 = vld [vmem:[#allocation2 + $0x740] sm:$0xff]
        %v2383 = vld [vmem:[#allocation2 + $0x748] sm:$0xff]
        %v2384 = vld [vmem:[#allocation2 + $0x750] sm:$0xff]
        %v2385 = vld [vmem:[#allocation2 + $0x758] sm:$0xff]
        %v2386 = vld [vmem:[#allocation2 + $0x760] sm:$0xff]
        %v2387 = vld [vmem:[#allocation2 + $0x778] sm:$0xff]
        %v2388 = vld [vmem:[#allocation2 + $0x780] sm:$0xff]
        %v2389 = vld [vmem:[#allocation2 + $0x788] sm:$0xff]
        %v2390 = vld [vmem:[#allocation2 + $0x790] sm:$0xff]
        %v2391 = vld [vmem:[#allocation2 + $0x798] sm:$0xff]
        %v2392 = vld [vmem:[#allocation2 + $0x7a0] sm:$0xff]
        %v2393 = vld [vmem:[#allocation2 + $0x7a8] sm:$0xff]
        %v2394 = vld [vmem:[#allocation2 + $0x7b0] sm:$0xff]
        %v2395 = vld [vmem:[#allocation2 + $0x7b8] sm:$0xff]
        %v2396 = vld [vmem:[#allocation2 + $0x7c0] sm:$0xff]
        %v2397 = vld [vmem:[#allocation2 + $0x7c8] sm:$0xff]
        %v2398 = vld [vmem:[#allocation2 + $0x7d0] sm:$0xff]
        %vm2399 = vcmask 130048
        %v2401 = vsel %vm2399, %v2180, 0
        %v2404 = vsel %vm2399, %v2182, 0
        %2406 = vmatpush.msra.mxu0 %v2363
        %2407 = vmatpush.msra.mxu0 %v2351
        %2408 = vmatpush.msra.mxu0 %v2339
        %2409 = vmatpush.msra.mxu0 %v2327
        %2410 = vmatpush.msra.mxu0 %v2315
        %2411 = vmatpush.msra.mxu0 %v2303
        %2412 = vmatpush.msra.mxu0 %v2291
        %2413 = vmatpush.msra.mxu0 %v2279
        %2414 = vmatpush.msra.mxu0 %v2267
        %2415 = vmatpush.msra.mxu0 %v2255
        %2416 = vmatpush.msra.mxu0 %v2243
        %2417 = vmatpush.msra.mxu0 %v2231
        %2418 = vmatpush.msra.mxu0 %v2219
        %2419 = vmatpush.msra.mxu0 %v2207
        %2420 = vmatpush.msra.mxu0 %v2195
        %2421 = vmatpush.msra.mxu0 %v2183
        %2422 = vmatmul.f32.gmra.mxu0 %v2179
        %v2423 = vpop.f32.mrf.mxu0
        %v2424 = vadd.f32 0.0, %v2423
        %2425 = vmatmul.f32.gmra.mxu0 %v2181
        %v2426 = vpop.f32.mrf.mxu0
        %v2427 = vadd.f32 0.0, %v2426
        %2428 = vdwg.mxu0
        %2429 = vmatpush.msra.mxu0 0.0
        %2430 = vmatpush.msra.mxu0 0.0
        %2431 = vmatpush.msra.mxu0 0.0
        %2432 = vmatpush.msra.mxu0 0.0
        %2433 = vmatpush.msra.mxu0 0.0
        %2434 = vmatpush.msra.mxu0 0.0
        %2435 = vmatpush.msra.mxu0 0.0
        %2436 = vmatpush.msra.mxu0 0.0
        %2437 = vmatpush.msra.mxu0 0.0
        %2438 = vmatpush.msra.mxu0 0.0
        %2439 = vmatpush.msra.mxu0 0.0
        %2440 = vmatpush.msra.mxu0 0.0
        %2441 = vmatpush.msra.mxu0 0.0
        %2442 = vmatpush.msra.mxu0 0.0
        %2443 = vmatpush.msra.mxu0 %v2387
        %2444 = vmatpush.msra.mxu0 %v2375
        %2445 = vmatmul.f32.gmra.mxu0 %v2401
        %v2446 = vpop.f32.mrf.mxu0
        %v2447 = vadd.f32 %v2424, %v2446
        %2448 = vmatmul.f32.gmra.mxu0 %v2404
        %v2449 = vpop.f32.mrf.mxu0
        %v2450 = vadd.f32 %v2427, %v2449
        %2451 = vdwg.mxu0
        %2452 = vmatpush.msra.mxu0 %v2364
        %2453 = vmatpush.msra.mxu0 %v2352
        %2454 = vmatpush.msra.mxu0 %v2340
        %2455 = vmatpush.msra.mxu0 %v2328
        %2456 = vmatpush.msra.mxu0 %v2316
        %2457 = vmatpush.msra.mxu0 %v2304
        %2458 = vmatpush.msra.mxu0 %v2292
        %2459 = vmatpush.msra.mxu0 %v2280
        %2460 = vmatpush.msra.mxu0 %v2268
        %2461 = vmatpush.msra.mxu0 %v2256
        %2462 = vmatpush.msra.mxu0 %v2244
        %2463 = vmatpush.msra.mxu0 %v2232
        %2464 = vmatpush.msra.mxu0 %v2220
        %2465 = vmatpush.msra.mxu0 %v2208
        %2466 = vmatpush.msra.mxu0 %v2196
        %2467 = vmatpush.msra.mxu0 %v2184
        %2468 = vmatmul.f32.gmra.mxu0 %v2179
        %v2469 = vpop.f32.mrf.mxu0
        %v2470 = vadd.f32 0.0, %v2469
        %2471 = vmatmul.f32.gmra.mxu0 %v2181
        %v2472 = vpop.f32.mrf.mxu0
        %v2473 = vadd.f32 0.0, %v2472
        %2474 = vdwg.mxu0
        %2475 = vmatpush.msra.mxu0 0.0
        %2476 = vmatpush.msra.mxu0 0.0
        %2477 = vmatpush.msra.mxu0 0.0
        %2478 = vmatpush.msra.mxu0 0.0
        %2479 = vmatpush.msra.mxu0 0.0
        %2480 = vmatpush.msra.mxu0 0.0
        %2481 = vmatpush.msra.mxu0 0.0
        %2482 = vmatpush.msra.mxu0 0.0
        %2483 = vmatpush.msra.mxu0 0.0
        %2484 = vmatpush.msra.mxu0 0.0
        %2485 = vmatpush.msra.mxu0 0.0
        %2486 = vmatpush.msra.mxu0 0.0
        %2487 = vmatpush.msra.mxu0 0.0
        %2488 = vmatpush.msra.mxu0 0.0
        %2489 = vmatpush.msra.mxu0 %v2388
        %2490 = vmatpush.msra.mxu0 %v2376
        %2491 = vmatmul.f32.gmra.mxu0 %v2401
        %v2492 = vpop.f32.mrf.mxu0
        %v2493 = vadd.f32 %v2470, %v2492
        %2494 = vmatmul.f32.gmra.mxu0 %v2404
        %v2495 = vpop.f32.mrf.mxu0
        %v2496 = vadd.f32 %v2473, %v2495
        %2497 = vdwg.mxu0
        %2498 = vmatpush.msra.mxu0 %v2365
        %2499 = vmatpush.msra.mxu0 %v2353
        %2500 = vmatpush.msra.mxu0 %v2341
        %2501 = vmatpush.msra.mxu0 %v2329
        %2502 = vmatpush.msra.mxu0 %v2317
        %2503 = vmatpush.msra.mxu0 %v2305
        %2504 = vmatpush.msra.mxu0 %v2293
        %2505 = vmatpush.msra.mxu0 %v2281
        %2506 = vmatpush.msra.mxu0 %v2269
        %2507 = vmatpush.msra.mxu0 %v2257
        %2508 = vmatpush.msra.mxu0 %v2245
        %2509 = vmatpush.msra.mxu0 %v2233
        %2510 = vmatpush.msra.mxu0 %v2221
        %2511 = vmatpush.msra.mxu0 %v2209
        %2512 = vmatpush.msra.mxu0 %v2197
        %2513 = vmatpush.msra.mxu0 %v2185
        %2514 = vmatmul.f32.gmra.mxu0 %v2179
        %v2515 = vpop.f32.mrf.mxu0
        %v2516 = vadd.f32 0.0, %v2515
        %2517 = vmatmul.f32.gmra.mxu0 %v2181
        %v2518 = vpop.f32.mrf.mxu0
        %v2519 = vadd.f32 0.0, %v2518
        %2520 = vdwg.mxu0
        %2521 = vmatpush.msra.mxu0 0.0
        %2522 = vmatpush.msra.mxu0 0.0
        %2523 = vmatpush.msra.mxu0 0.0
        %2524 = vmatpush.msra.mxu0 0.0
        %2525 = vmatpush.msra.mxu0 0.0
        %2526 = vmatpush.msra.mxu0 0.0
        %2527 = vmatpush.msra.mxu0 0.0
        %2528 = vmatpush.msra.mxu0 0.0
        %2529 = vmatpush.msra.mxu0 0.0
        %2530 = vmatpush.msra.mxu0 0.0
        %2531 = vmatpush.msra.mxu0 0.0
        %2532 = vmatpush.msra.mxu0 0.0
        %2533 = vmatpush.msra.mxu0 0.0
        %2534 = vmatpush.msra.mxu0 0.0
        %2535 = vmatpush.msra.mxu0 %v2389
        %2536 = vmatpush.msra.mxu0 %v2377
        %2537 = vmatmul.f32.gmra.mxu0 %v2401
        %v2538 = vpop.f32.mrf.mxu0
        %v2539 = vadd.f32 %v2516, %v2538
        %2540 = vmatmul.f32.gmra.mxu0 %v2404
        %v2541 = vpop.f32.mrf.mxu0
        %v2542 = vadd.f32 %v2519, %v2541
        %2543 = vdwg.mxu0
        %2544 = vmatpush.msra.mxu0 %v2366
        %2545 = vmatpush.msra.mxu0 %v2354
        %2546 = vmatpush.msra.mxu0 %v2342
        %2547 = vmatpush.msra.mxu0 %v2330
        %2548 = vmatpush.msra.mxu0 %v2318
        %2549 = vmatpush.msra.mxu0 %v2306
        %2550 = vmatpush.msra.mxu0 %v2294
        %2551 = vmatpush.msra.mxu0 %v2282
        %2552 = vmatpush.msra.mxu0 %v2270
        %2553 = vmatpush.msra.mxu0 %v2258
        %2554 = vmatpush.msra.mxu0 %v2246
        %2555 = vmatpush.msra.mxu0 %v2234
        %2556 = vmatpush.msra.mxu0 %v2222
        %2557 = vmatpush.msra.mxu0 %v2210
        %2558 = vmatpush.msra.mxu0 %v2198
        %2559 = vmatpush.msra.mxu0 %v2186
        %2560 = vmatmul.f32.gmra.mxu0 %v2179
        %v2561 = vpop.f32.mrf.mxu0
        %v2562 = vadd.f32 0.0, %v2561
        %2563 = vmatmul.f32.gmra.mxu0 %v2181
        %v2564 = vpop.f32.mrf.mxu0
        %v2565 = vadd.f32 0.0, %v2564
        %2566 = vdwg.mxu0
        %2567 = vmatpush.msra.mxu0 0.0
        %2568 = vmatpush.msra.mxu0 0.0
        %2569 = vmatpush.msra.mxu0 0.0
        %2570 = vmatpush.msra.mxu0 0.0
        %2571 = vmatpush.msra.mxu0 0.0
        %2572 = vmatpush.msra.mxu0 0.0
        %2573 = vmatpush.msra.mxu0 0.0
        %2574 = vmatpush.msra.mxu0 0.0
        %2575 = vmatpush.msra.mxu0 0.0
        %2576 = vmatpush.msra.mxu0 0.0
        %2577 = vmatpush.msra.mxu0 0.0
        %2578 = vmatpush.msra.mxu0 0.0
        %2579 = vmatpush.msra.mxu0 0.0
        %2580 = vmatpush.msra.mxu0 0.0
        %2581 = vmatpush.msra.mxu0 %v2390
        %2582 = vmatpush.msra.mxu0 %v2378
        %2583 = vmatmul.f32.gmra.mxu0 %v2401
        %v2584 = vpop.f32.mrf.mxu0
        %v2585 = vadd.f32 %v2562, %v2584
        %2586 = vmatmul.f32.gmra.mxu0 %v2404
        %v2587 = vpop.f32.mrf.mxu0
        %v2588 = vadd.f32 %v2565, %v2587
        %2589 = vdwg.mxu0
        %2590 = vmatpush.msra.mxu0 %v2367
        %2591 = vmatpush.msra.mxu0 %v2355
        %2592 = vmatpush.msra.mxu0 %v2343
        %2593 = vmatpush.msra.mxu0 %v2331
        %2594 = vmatpush.msra.mxu0 %v2319
        %2595 = vmatpush.msra.mxu0 %v2307
        %2596 = vmatpush.msra.mxu0 %v2295
        %2597 = vmatpush.msra.mxu0 %v2283
        %2598 = vmatpush.msra.mxu0 %v2271
        %2599 = vmatpush.msra.mxu0 %v2259
        %2600 = vmatpush.msra.mxu0 %v2247
        %2601 = vmatpush.msra.mxu0 %v2235
        %2602 = vmatpush.msra.mxu0 %v2223
        %2603 = vmatpush.msra.mxu0 %v2211
        %2604 = vmatpush.msra.mxu0 %v2199
        %2605 = vmatpush.msra.mxu0 %v2187
        %2606 = vmatmul.f32.gmra.mxu0 %v2179
        %v2607 = vpop.f32.mrf.mxu0
        %v2608 = vadd.f32 0.0, %v2607
        %2609 = vmatmul.f32.gmra.mxu0 %v2181
        %v2610 = vpop.f32.mrf.mxu0
        %v2611 = vadd.f32 0.0, %v2610
        %2612 = vdwg.mxu0
        %2613 = vmatpush.msra.mxu0 0.0
        %2614 = vmatpush.msra.mxu0 0.0
        %2615 = vmatpush.msra.mxu0 0.0
        %2616 = vmatpush.msra.mxu0 0.0
        %2617 = vmatpush.msra.mxu0 0.0
        %2618 = vmatpush.msra.mxu0 0.0
        %2619 = vmatpush.msra.mxu0 0.0
        %2620 = vmatpush.msra.mxu0 0.0
        %2621 = vmatpush.msra.mxu0 0.0
        %2622 = vmatpush.msra.mxu0 0.0
        %2623 = vmatpush.msra.mxu0 0.0
        %2624 = vmatpush.msra.mxu0 0.0
        %2625 = vmatpush.msra.mxu0 0.0
        %2626 = vmatpush.msra.mxu0 0.0
        %2627 = vmatpush.msra.mxu0 %v2391
        %2628 = vmatpush.msra.mxu0 %v2379
        %2629 = vmatmul.f32.gmra.mxu0 %v2401
        %v2630 = vpop.f32.mrf.mxu0
        %v2631 = vadd.f32 %v2608, %v2630
        %2632 = vmatmul.f32.gmra.mxu0 %v2404
        %v2633 = vpop.f32.mrf.mxu0
        %v2634 = vadd.f32 %v2611, %v2633
        %2635 = vdwg.mxu0
        %2636 = vmatpush.msra.mxu0 %v2368
        %2637 = vmatpush.msra.mxu0 %v2356
        %2638 = vmatpush.msra.mxu0 %v2344
        %2639 = vmatpush.msra.mxu0 %v2332
        %2640 = vmatpush.msra.mxu0 %v2320
        %2641 = vmatpush.msra.mxu0 %v2308
        %2642 = vmatpush.msra.mxu0 %v2296
        %2643 = vmatpush.msra.mxu0 %v2284
        %2644 = vmatpush.msra.mxu0 %v2272
        %2645 = vmatpush.msra.mxu0 %v2260
        %2646 = vmatpush.msra.mxu0 %v2248
        %2647 = vmatpush.msra.mxu0 %v2236
        %2648 = vmatpush.msra.mxu0 %v2224
        %2649 = vmatpush.msra.mxu0 %v2212
        %2650 = vmatpush.msra.mxu0 %v2200
        %2651 = vmatpush.msra.mxu0 %v2188
        %2652 = vmatmul.f32.gmra.mxu0 %v2179
        %v2653 = vpop.f32.mrf.mxu0
        %v2654 = vadd.f32 0.0, %v2653
        %2655 = vmatmul.f32.gmra.mxu0 %v2181
        %v2656 = vpop.f32.mrf.mxu0
        %v2657 = vadd.f32 0.0, %v2656
        %2658 = vdwg.mxu0
        %2659 = vmatpush.msra.mxu0 0.0
        %2660 = vmatpush.msra.mxu0 0.0
        %2661 = vmatpush.msra.mxu0 0.0
        %2662 = vmatpush.msra.mxu0 0.0
        %2663 = vmatpush.msra.mxu0 0.0
        %2664 = vmatpush.msra.mxu0 0.0
        %2665 = vmatpush.msra.mxu0 0.0
        %2666 = vmatpush.msra.mxu0 0.0
        %2667 = vmatpush.msra.mxu0 0.0
        %2668 = vmatpush.msra.mxu0 0.0
        %2669 = vmatpush.msra.mxu0 0.0
        %2670 = vmatpush.msra.mxu0 0.0
        %2671 = vmatpush.msra.mxu0 0.0
        %2672 = vmatpush.msra.mxu0 0.0
        %2673 = vmatpush.msra.mxu0 %v2392
        %2674 = vmatpush.msra.mxu0 %v2380
        %2675 = vmatmul.f32.gmra.mxu0 %v2401
        %v2676 = vpop.f32.mrf.mxu0
        %v2677 = vadd.f32 %v2654, %v2676
        %2678 = vmatmul.f32.gmra.mxu0 %v2404
        %v2679 = vpop.f32.mrf.mxu0
        %v2680 = vadd.f32 %v2657, %v2679
        %2681 = vdwg.mxu0
        %2682 = vmatpush.msra.mxu0 %v2369
        %2683 = vmatpush.msra.mxu0 %v2357
        %2684 = vmatpush.msra.mxu0 %v2345
        %2685 = vmatpush.msra.mxu0 %v2333
        %2686 = vmatpush.msra.mxu0 %v2321
        %2687 = vmatpush.msra.mxu0 %v2309
        %2688 = vmatpush.msra.mxu0 %v2297
        %2689 = vmatpush.msra.mxu0 %v2285
        %2690 = vmatpush.msra.mxu0 %v2273
        %2691 = vmatpush.msra.mxu0 %v2261
        %2692 = vmatpush.msra.mxu0 %v2249
        %2693 = vmatpush.msra.mxu0 %v2237
        %2694 = vmatpush.msra.mxu0 %v2225
        %2695 = vmatpush.msra.mxu0 %v2213
        %2696 = vmatpush.msra.mxu0 %v2201
        %2697 = vmatpush.msra.mxu0 %v2189
        %2698 = vmatmul.f32.gmra.mxu0 %v2179
        %v2699 = vpop.f32.mrf.mxu0
        %v2700 = vadd.f32 0.0, %v2699
        %2701 = vmatmul.f32.gmra.mxu0 %v2181
        %v2702 = vpop.f32.mrf.mxu0
        %v2703 = vadd.f32 0.0, %v2702
        %2704 = vdwg.mxu0
        %2705 = vmatpush.msra.mxu0 0.0
        %2706 = vmatpush.msra.mxu0 0.0
        %2707 = vmatpush.msra.mxu0 0.0
        %2708 = vmatpush.msra.mxu0 0.0
        %2709 = vmatpush.msra.mxu0 0.0
        %2710 = vmatpush.msra.mxu0 0.0
        %2711 = vmatpush.msra.mxu0 0.0
        %2712 = vmatpush.msra.mxu0 0.0
        %2713 = vmatpush.msra.mxu0 0.0
        %2714 = vmatpush.msra.mxu0 0.0
        %2715 = vmatpush.msra.mxu0 0.0
        %2716 = vmatpush.msra.mxu0 0.0
        %2717 = vmatpush.msra.mxu0 0.0
        %2718 = vmatpush.msra.mxu0 0.0
        %2719 = vmatpush.msra.mxu0 %v2393
        %2720 = vmatpush.msra.mxu0 %v2381
        %2721 = vmatmul.f32.gmra.mxu0 %v2401
        %v2722 = vpop.f32.mrf.mxu0
        %v2723 = vadd.f32 %v2700, %v2722
        %2724 = vmatmul.f32.gmra.mxu0 %v2404
        %v2725 = vpop.f32.mrf.mxu0
        %v2726 = vadd.f32 %v2703, %v2725
        %2727 = vdwg.mxu0
        %2728 = vmatpush.msra.mxu0 %v2370
        %2729 = vmatpush.msra.mxu0 %v2358
        %2730 = vmatpush.msra.mxu0 %v2346
        %2731 = vmatpush.msra.mxu0 %v2334
        %2732 = vmatpush.msra.mxu0 %v2322
        %2733 = vmatpush.msra.mxu0 %v2310
        %2734 = vmatpush.msra.mxu0 %v2298
        %2735 = vmatpush.msra.mxu0 %v2286
        %2736 = vmatpush.msra.mxu0 %v2274
        %2737 = vmatpush.msra.mxu0 %v2262
        %2738 = vmatpush.msra.mxu0 %v2250
        %2739 = vmatpush.msra.mxu0 %v2238
        %2740 = vmatpush.msra.mxu0 %v2226
        %2741 = vmatpush.msra.mxu0 %v2214
        %2742 = vmatpush.msra.mxu0 %v2202
        %2743 = vmatpush.msra.mxu0 %v2190
        %2744 = vmatmul.f32.gmra.mxu0 %v2179
        %v2745 = vpop.f32.mrf.mxu0
        %v2746 = vadd.f32 0.0, %v2745
        %2747 = vmatmul.f32.gmra.mxu0 %v2181
        %v2748 = vpop.f32.mrf.mxu0
        %v2749 = vadd.f32 0.0, %v2748
        %2750 = vdwg.mxu0
        %2751 = vmatpush.msra.mxu0 0.0
        %2752 = vmatpush.msra.mxu0 0.0
        %2753 = vmatpush.msra.mxu0 0.0
        %2754 = vmatpush.msra.mxu0 0.0
        %2755 = vmatpush.msra.mxu0 0.0
        %2756 = vmatpush.msra.mxu0 0.0
        %2757 = vmatpush.msra.mxu0 0.0
        %2758 = vmatpush.msra.mxu0 0.0
        %2759 = vmatpush.msra.mxu0 0.0
        %2760 = vmatpush.msra.mxu0 0.0
        %2761 = vmatpush.msra.mxu0 0.0
        %2762 = vmatpush.msra.mxu0 0.0
        %2763 = vmatpush.msra.mxu0 0.0
        %2764 = vmatpush.msra.mxu0 0.0
        %2765 = vmatpush.msra.mxu0 %v2394
        %2766 = vmatpush.msra.mxu0 %v2382
        %2767 = vmatmul.f32.gmra.mxu0 %v2401
        %v2768 = vpop.f32.mrf.mxu0
        %v2769 = vadd.f32 %v2746, %v2768
        %2770 = vmatmul.f32.gmra.mxu0 %v2404
        %v2771 = vpop.f32.mrf.mxu0
        %v2772 = vadd.f32 %v2749, %v2771
        %2773 = vdwg.mxu0
        %2774 = vmatpush.msra.mxu0 %v2371
        %2775 = vmatpush.msra.mxu0 %v2359
        %2776 = vmatpush.msra.mxu0 %v2347
        %2777 = vmatpush.msra.mxu0 %v2335
        %2778 = vmatpush.msra.mxu0 %v2323
        %2779 = vmatpush.msra.mxu0 %v2311
        %2780 = vmatpush.msra.mxu0 %v2299
        %2781 = vmatpush.msra.mxu0 %v2287
        %2782 = vmatpush.msra.mxu0 %v2275
        %2783 = vmatpush.msra.mxu0 %v2263
        %2784 = vmatpush.msra.mxu0 %v2251
        %2785 = vmatpush.msra.mxu0 %v2239
        %2786 = vmatpush.msra.mxu0 %v2227
        %2787 = vmatpush.msra.mxu0 %v2215
        %2788 = vmatpush.msra.mxu0 %v2203
        %2789 = vmatpush.msra.mxu0 %v2191
        %2790 = vmatmul.f32.gmra.mxu0 %v2179
        %v2791 = vpop.f32.mrf.mxu0
        %v2792 = vadd.f32 0.0, %v2791
        %2793 = vmatmul.f32.gmra.mxu0 %v2181
        %v2794 = vpop.f32.mrf.mxu0
        %v2795 = vadd.f32 0.0, %v2794
        %2796 = vdwg.mxu0
        %2797 = vmatpush.msra.mxu0 0.0
        %2798 = vmatpush.msra.mxu0 0.0
        %2799 = vmatpush.msra.mxu0 0.0
        %2800 = vmatpush.msra.mxu0 0.0
        %2801 = vmatpush.msra.mxu0 0.0
        %2802 = vmatpush.msra.mxu0 0.0
        %2803 = vmatpush.msra.mxu0 0.0
        %2804 = vmatpush.msra.mxu0 0.0
        %2805 = vmatpush.msra.mxu0 0.0
        %2806 = vmatpush.msra.mxu0 0.0
        %2807 = vmatpush.msra.mxu0 0.0
        %2808 = vmatpush.msra.mxu0 0.0
        %2809 = vmatpush.msra.mxu0 0.0
        %2810 = vmatpush.msra.mxu0 0.0
        %2811 = vmatpush.msra.mxu0 %v2395
        %2812 = vmatpush.msra.mxu0 %v2383
        %2813 = vmatmul.f32.gmra.mxu0 %v2401
        %v2814 = vpop.f32.mrf.mxu0
        %v2815 = vadd.f32 %v2792, %v2814
        %2816 = vmatmul.f32.gmra.mxu0 %v2404
        %v2817 = vpop.f32.mrf.mxu0
        %v2818 = vadd.f32 %v2795, %v2817
        %2819 = vdwg.mxu0
        %2820 = vmatpush.msra.mxu0 %v2372
        %2821 = vmatpush.msra.mxu0 %v2360
        %2822 = vmatpush.msra.mxu0 %v2348
        %2823 = vmatpush.msra.mxu0 %v2336
        %2824 = vmatpush.msra.mxu0 %v2324
        %2825 = vmatpush.msra.mxu0 %v2312
        %2826 = vmatpush.msra.mxu0 %v2300
        %2827 = vmatpush.msra.mxu0 %v2288
        %2828 = vmatpush.msra.mxu0 %v2276
        %2829 = vmatpush.msra.mxu0 %v2264
        %2830 = vmatpush.msra.mxu0 %v2252
        %2831 = vmatpush.msra.mxu0 %v2240
        %2832 = vmatpush.msra.mxu0 %v2228
        %2833 = vmatpush.msra.mxu0 %v2216
        %2834 = vmatpush.msra.mxu0 %v2204
        %2835 = vmatpush.msra.mxu0 %v2192
        %2836 = vmatmul.f32.gmra.mxu0 %v2179
        %v2837 = vpop.f32.mrf.mxu0
        %v2838 = vadd.f32 0.0, %v2837
        %2839 = vmatmul.f32.gmra.mxu0 %v2181
        %v2840 = vpop.f32.mrf.mxu0
        %v2841 = vadd.f32 0.0, %v2840
        %2842 = vdwg.mxu0
        %2843 = vmatpush.msra.mxu0 0.0
        %2844 = vmatpush.msra.mxu0 0.0
        %2845 = vmatpush.msra.mxu0 0.0
        %2846 = vmatpush.msra.mxu0 0.0
        %2847 = vmatpush.msra.mxu0 0.0
        %2848 = vmatpush.msra.mxu0 0.0
        %2849 = vmatpush.msra.mxu0 0.0
        %2850 = vmatpush.msra.mxu0 0.0
        %2851 = vmatpush.msra.mxu0 0.0
        %2852 = vmatpush.msra.mxu0 0.0
        %2853 = vmatpush.msra.mxu0 0.0
        %2854 = vmatpush.msra.mxu0 0.0
        %2855 = vmatpush.msra.mxu0 0.0
        %2856 = vmatpush.msra.mxu0 0.0
        %2857 = vmatpush.msra.mxu0 %v2396
        %2858 = vmatpush.msra.mxu0 %v2384
        %2859 = vmatmul.f32.gmra.mxu0 %v2401
        %v2860 = vpop.f32.mrf.mxu0
        %v2861 = vadd.f32 %v2838, %v2860
        %2862 = vmatmul.f32.gmra.mxu0 %v2404
        %v2863 = vpop.f32.mrf.mxu0
        %v2864 = vadd.f32 %v2841, %v2863
        %2865 = vdwg.mxu0
        %2866 = vmatpush.msra.mxu0 %v2373
        %2867 = vmatpush.msra.mxu0 %v2361
        %2868 = vmatpush.msra.mxu0 %v2349
        %2869 = vmatpush.msra.mxu0 %v2337
        %2870 = vmatpush.msra.mxu0 %v2325
        %2871 = vmatpush.msra.mxu0 %v2313
        %2872 = vmatpush.msra.mxu0 %v2301
        %2873 = vmatpush.msra.mxu0 %v2289
        %2874 = vmatpush.msra.mxu0 %v2277
        %2875 = vmatpush.msra.mxu0 %v2265
        %2876 = vmatpush.msra.mxu0 %v2253
        %2877 = vmatpush.msra.mxu0 %v2241
        %2878 = vmatpush.msra.mxu0 %v2229
        %2879 = vmatpush.msra.mxu0 %v2217
        %2880 = vmatpush.msra.mxu0 %v2205
        %2881 = vmatpush.msra.mxu0 %v2193
        %2882 = vmatmul.f32.gmra.mxu0 %v2179
        %v2883 = vpop.f32.mrf.mxu0
        %v2884 = vadd.f32 0.0, %v2883
        %2885 = vmatmul.f32.gmra.mxu0 %v2181
        %v2886 = vpop.f32.mrf.mxu0
        %v2887 = vadd.f32 0.0, %v2886
        %2888 = vdwg.mxu0
        %2889 = vmatpush.msra.mxu0 0.0
        %2890 = vmatpush.msra.mxu0 0.0
        %2891 = vmatpush.msra.mxu0 0.0
        %2892 = vmatpush.msra.mxu0 0.0
        %2893 = vmatpush.msra.mxu0 0.0
        %2894 = vmatpush.msra.mxu0 0.0
        %2895 = vmatpush.msra.mxu0 0.0
        %2896 = vmatpush.msra.mxu0 0.0
        %2897 = vmatpush.msra.mxu0 0.0
        %2898 = vmatpush.msra.mxu0 0.0
        %2899 = vmatpush.msra.mxu0 0.0
        %2900 = vmatpush.msra.mxu0 0.0
        %2901 = vmatpush.msra.mxu0 0.0
        %2902 = vmatpush.msra.mxu0 0.0
        %2903 = vmatpush.msra.mxu0 %v2397
        %2904 = vmatpush.msra.mxu0 %v2385
        %2905 = vmatmul.f32.gmra.mxu0 %v2401
        %v2906 = vpop.f32.mrf.mxu0
        %v2907 = vadd.f32 %v2884, %v2906
        %2908 = vmatmul.f32.gmra.mxu0 %v2404
        %v2909 = vpop.f32.mrf.mxu0
        %v2910 = vadd.f32 %v2887, %v2909
        %2911 = vdwg.mxu0
        %2912 = vmatpush.msra.mxu0 %v2374
        %2913 = vmatpush.msra.mxu0 %v2362
        %2914 = vmatpush.msra.mxu0 %v2350
        %2915 = vmatpush.msra.mxu0 %v2338
        %2916 = vmatpush.msra.mxu0 %v2326
        %2917 = vmatpush.msra.mxu0 %v2314
        %2918 = vmatpush.msra.mxu0 %v2302
        %2919 = vmatpush.msra.mxu0 %v2290
        %2920 = vmatpush.msra.mxu0 %v2278
        %2921 = vmatpush.msra.mxu0 %v2266
        %2922 = vmatpush.msra.mxu0 %v2254
        %2923 = vmatpush.msra.mxu0 %v2242
        %2924 = vmatpush.msra.mxu0 %v2230
        %2925 = vmatpush.msra.mxu0 %v2218
        %2926 = vmatpush.msra.mxu0 %v2206
        %2927 = vmatpush.msra.mxu0 %v2194
        %2928 = vmatmul.f32.gmra.mxu0 %v2179
        %v2929 = vpop.f32.mrf.mxu0
        %v2930 = vadd.f32 0.0, %v2929
        %2931 = vmatmul.f32.gmra.mxu0 %v2181
        %v2932 = vpop.f32.mrf.mxu0
        %v2933 = vadd.f32 0.0, %v2932
        %2934 = vdwg.mxu0
        %2935 = vmatpush.msra.mxu0 0.0
        %2936 = vmatpush.msra.mxu0 0.0
        %2937 = vmatpush.msra.mxu0 0.0
        %2938 = vmatpush.msra.mxu0 0.0
        %2939 = vmatpush.msra.mxu0 0.0
        %2940 = vmatpush.msra.mxu0 0.0
        %2941 = vmatpush.msra.mxu0 0.0
        %2942 = vmatpush.msra.mxu0 0.0
        %2943 = vmatpush.msra.mxu0 0.0
        %2944 = vmatpush.msra.mxu0 0.0
        %2945 = vmatpush.msra.mxu0 0.0
        %2946 = vmatpush.msra.mxu0 0.0
        %2947 = vmatpush.msra.mxu0 0.0
        %2948 = vmatpush.msra.mxu0 0.0
        %2949 = vmatpush.msra.mxu0 %v2398
        %2950 = vmatpush.msra.mxu0 %v2386
        %2951 = vmatmul.f32.gmra.mxu0 %v2401
        %v2952 = vpop.f32.mrf.mxu0
        %v2953 = vadd.f32 %v2930, %v2952
        %2954 = vmatmul.f32.gmra.mxu0 %v2404
        %v2955 = vpop.f32.mrf.mxu0
        %v2956 = vadd.f32 %v2933, %v2955
        %2957 = vdwg.mxu0
        %v2958 = vadd.f32 %v413, %v2447
        %v2959 = vadd.f32 %v436, %v2493
        %v2960 = vadd.f32 %v459, %v2539
        %v2961 = vadd.f32 %v482, %v2585
        %v2962 = vadd.f32 %v505, %v2631
        %v2963 = vadd.f32 %v528, %v2677
        %v2964 = vadd.f32 %v551, %v2723
        %v2965 = vadd.f32 %v574, %v2769
        %v2966 = vadd.f32 %v597, %v2815
        %v2967 = vadd.f32 %v620, %v2861
        %v2968 = vadd.f32 %v643, %v2907
        %v2969 = vadd.f32 %v666, %v2953
        %v2970 = vadd.f32 %v416, %v2450
        %v2971 = vadd.f32 %v439, %v2496
        %v2972 = vadd.f32 %v462, %v2542
        %v2973 = vadd.f32 %v485, %v2588
        %v2974 = vadd.f32 %v508, %v2634
        %v2975 = vadd.f32 %v531, %v2680
        %v2976 = vadd.f32 %v554, %v2726
        %v2977 = vadd.f32 %v577, %v2772
        %v2978 = vadd.f32 %v600, %v2818
        %v2979 = vadd.f32 %v623, %v2864
        %v2980 = vadd.f32 %v646, %v2910
        %v2981 = vadd.f32 %v669, %v2956
        %2982 = vst [vmem:[%s271] sm:$0xff] %v2958
        %2983 = vst [vmem:[%s271 + $0x8] sm:$0xff] %v2959
        %2984 = vst [vmem:[%s271 + $0x10] sm:$0xff] %v2960
        %2985 = vst [vmem:[%s271 + $0x18] sm:$0xff] %v2961
        %2986 = vst [vmem:[%s271 + $0x20] sm:$0xff] %v2962
        %2987 = vst [vmem:[%s271 + $0x28] sm:$0xff] %v2963
        %2988 = vst [vmem:[%s271 + $0x30] sm:$0xff] %v2964
        %2989 = vst [vmem:[%s271 + $0x38] sm:$0xff] %v2965
        %2990 = vst [vmem:[%s271 + $0x40] sm:$0xff] %v2966
        %2991 = vst [vmem:[%s271 + $0x48] sm:$0xff] %v2967
        %2992 = vst [vmem:[%s271 + $0x50] sm:$0xff] %v2968
        %2993 = vst [vmem:[%s271 + $0x58] sm:$0xff] %v2969
        %2994 = vst [vmem:[%s271 + $0x60] sm:$0xff] %v2970
        %2995 = vst [vmem:[%s271 + $0x68] sm:$0xff] %v2971
        %2996 = vst [vmem:[%s271 + $0x70] sm:$0xff] %v2972
        %2997 = vst [vmem:[%s271 + $0x78] sm:$0xff] %v2973
        %2998 = vst [vmem:[%s271 + $0x80] sm:$0xff] %v2974
        %2999 = vst [vmem:[%s271 + $0x88] sm:$0xff] %v2975
        %3000 = vst [vmem:[%s271 + $0x90] sm:$0xff] %v2976
        %3001 = vst [vmem:[%s271 + $0x98] sm:$0xff] %v2977
        %3002 = vst [vmem:[%s271 + $0xa0] sm:$0xff] %v2978
        %3003 = vst [vmem:[%s271 + $0xa8] sm:$0xff] %v2979
        %3004 = vst [vmem:[%s271 + $0xb0] sm:$0xff] %v2980
        %3005 = vst [vmem:[%s271 + $0xb8] sm:$0xff] %v2981
        %s3006 = sand.u32 %s181, 1
        %s3007 = scalar_lea.sflag [#allocation4], %s3006
        %s3008 = sand.u32 %s181, 1
        %s3009 = smul.addr %s3008, 192
        %s3010 = scalar_lea.vmem [#allocation3], %s3009
        // Predicated region
        $region49: #{tpu_custom_call.1} parent=47 // pred_check
          %p3011 = pneg %p191
        $region50: #{tpu_custom_call.1} parent=47 // pred_check_branch
          %3013 = sbr.rel (%p3011) target = $region52
        $region51: #{tpu_custom_call.1} parent=47 // pred_region
          %3015 = vsyncadd %s3007, 0
          %s3016 = smul.addr %s21, 24
          %s3017 = smul.addr %s3016, 8
          %s3018 = scalar_lea.hbm %s7, %s3017
          %s3019 = sshll.u32 %s3010, 4
          %s3020 = int_to_ptr.vmem [resolvable:$true] %s3019
          %s3021 = sshll.u32 %s3018, 4
          %s3022 = int_to_ptr.hbm [resolvable:$true] %s3021
          %3027 = dma.vmem_to_hbm [thread:$0]  %s3020, 3072, %s3022, %s3007, 1536, 1536, 96
        $region52: #{tpu_custom_call.1} parent=47 // pred_fallthru
          _
      $region48: #{tpu_custom_call.1} parent=5 // pred_fallthru
        _
      %p3028 = scmp.le.s32.totalorder 2, %s16
      // Predicated region
      $region53: #{tpu_custom_call.1} parent=5 // pred_check
        %p3029 = pneg %p3028
      $region54: #{tpu_custom_call.1} parent=5 // pred_check_branch
        %3031 = sbr.rel (%p3029) target = $region56
      $region55: #{tpu_custom_call.1} parent=5 // pred_region
        %s3032 = ssub.s32 %s16, 2
        // Predicated region
        $region57: #{tpu_custom_call.1} parent=55 // pred_check
          %p3033 = pneg %p197
        $region58: #{tpu_custom_call.1} parent=55 // pred_check_branch
          %3035 = sbr.rel (%p3033) target = $region60
        $region59: #{tpu_custom_call.1} parent=55 // pred_region
          %s3036 = sand.u32 %s182, 1
          %s3037 = scalar_lea.sflag [#allocation4], %s3036
          %s3038 = sand.u32 %s182, 1
          %s3039 = smul.addr %s3038, 192
          %s3040 = scalar_lea.vmem [#allocation3], %s3039
          %3042 = dma.done %s3037, 3072
        $region60: #{tpu_custom_call.1} parent=55 // pred_fallthru
          _
      $region56: #{tpu_custom_call.1} parent=5 // pred_fallthru
        _
    $region6: #{tpu_custom_call.1} parent=1 // loop_footer
      %s20 = sadd.s32 1, %s16
    $region7: #{tpu_custom_call.1} parent=1 // loop_footer_branch
      %15 = sbr.rel target = $region3
    $region8: #{tpu_custom_call.1} parent=1 // loop_exit
      _
    %3043 = vsyncpa [#allocation4], 1
    %s3044 = scalar_lea.sflag [#allocation4], 1
    %3045 = vsyncpa %s3044, 1

</llo_original>
